<compile_context>
chip_gen: v6e
topology: v6e:2x2x1
jax: 0.10.0
libtpu: 0.0.40
codegen_flags: <defaults>
</compile_context>

<pallas_src>
import math
from functools import partial

import jax
import jax.numpy as jnp
from jax.experimental import pallas as pl
from jax.experimental.pallas import tpu as pltpu


def _round_up(a, b):
    return ((a + b - 1) // b) * b


def _normalize_rows(w, eps=1e-12):
    """Row-wise L2 normalize, matching F.normalize(weight) with eps=1e-12."""
    w32 = w.astype(jnp.float32)
    sq = jnp.sum(w32 * w32, axis=1, keepdims=True)
    return w32 * jax.lax.rsqrt(jnp.maximum(sq, eps * eps))


def _arcface_kernel(x_ref, w_ref, lab_ref, o_ref, *,
                    s, cos_m, sin_m, th, mm,
                    normalize_in_kernel, mxu_dtype, margin_dtype):
    # x_ref:   (tm, E) mxu dtype
    # w_ref:   (tn, E) raw f32 rows (normalize_in_kernel) or pre-normalized mxu dtype
    # lab_ref: (tm, 1) int32
    # o_ref:   (tm, tn) out dtype
    w = w_ref[...]
    if normalize_in_kernel:
        # Per-row L2 normalization of the raw weight tile (lane-axis reduce on XLU,
        # rsqrt on EUP: both are filler slots under the weight DMA / MXU work).
        w32 = w.astype(jnp.float32)
        sq = jnp.sum(w32 * w32, axis=1, keepdims=True)
        w = (w32 * jax.lax.rsqrt(jnp.maximum(sq, 1e-24))).astype(mxu_dtype)

    # cosine = x @ wn.T via a (1,1) contraction (no XLU transpose), f32 MXU accumulation.
    cosine = jax.lax.dot_general(
        x_ref[...], w,
        dimension_numbers=(((1,), (1,)), ((), ())),
        preferred_element_type=jnp.float32)                       # (tm, tn) f32

    # Angular-margin math (VPU/EUP filler under the MXU / weight stream).
    c = cosine.astype(margin_dtype)
    sine = jnp.sqrt(jnp.clip(1.0 - c * c, 0.0, 1.0))
    phi = c * cos_m - sine * sin_m
    phi = jnp.where(c > th, phi, c - mm)

    # One-hot selection: phi at the label column, cosine elsewhere, then * s.
    tm, tn = o_ref.shape
    col = jax.lax.broadcasted_iota(jnp.int32, (tm, tn), 1) + pl.program_id(1) * tn
    onehot = col == lab_ref[...]                                  # (tm, tn) bool
    out = jnp.where(onehot, phi, c).astype(jnp.float32) * s
    o_ref[...] = out.astype(o_ref.dtype)


def arcface_head(x, weight, label, *, s=64.0, m=0.5,
                 mxu_dtype=jnp.bfloat16, margin_dtype=jnp.float32,
                 out_dtype=jnp.float32, tm=None, tn=None):
    """x: (B, E), weight: (N, E), label: (B,) int -> (B, N) logits."""
    B, E = x.shape
    N, E2 = weight.shape
    assert E == E2

    cos_m = math.cos(m)
    sin_m = math.sin(m)
    th = math.cos(math.pi - m)
    mm = math.sin(math.pi - m) * m

    # --- tile selection (no padding; cdiv grid + masked partial blocks) ---
    if tm is None:
        if B <= 16:
            tm = B                              # block == full dim, always legal
        elif B <= 128:
            tm = min(128, _round_up(B, 16))     # bf16 packs 16 rows / vreg sublane group
        else:
            tm = 128
    if tn is None:
        # Big lane-dense output tiles: few grid steps, >=0.5 MB weight DMAs, still only
        # a few MB of VMEM (well under the 32 MiB default scoped limit on v5e/v6e/v7x).
        tn = min(2048, _round_up(N, 128))

    grid_m = pl.cdiv(B, tm)
    grid_n = pl.cdiv(N, tn)

    # Small-batch (grid_m == 1): normalize the weight rows inside the kernel so the
    # weight only crosses HBM once (raw f32 read), instead of f32 read + bf16 write +
    # bf16 read for the hoisted path.  With grid_m >= 2 the hoisted bf16 copy wins
    # because weight tiles are re-read once per batch tile.
    normalize_in_kernel = (grid_m == 1)
    if normalize_in_kernel:
        w_in = weight.astype(jnp.float32)
        w_item = 4
    else:
        w_in = _normalize_rows(weight).astype(mxu_dtype)
        w_item = jnp.dtype(mxu_dtype).itemsize

    xc = x.astype(mxu_dtype)
    lab2d = label.astype(jnp.int32).reshape(B, 1)

    x_item = jnp.dtype(mxu_dtype).itemsize
    out_item = jnp.dtype(out_dtype).itemsize
    cost = pl.CostEstimate(
        flops=2 * B * N * E,
        transcendentals=B * N,                                    # sqrt per output element
        bytes_accessed=(B * E * x_item                            # x read once (j is inner)
                        + grid_m * N * E * w_item                 # weight re-read per B tile
                        + B * N * out_item))                      # output write

    kernel = partial(_arcface_kernel, s=s, cos_m=cos_m, sin_m=sin_m, th=th, mm=mm,
                     normalize_in_kernel=normalize_in_kernel,
                     mxu_dtype=mxu_dtype, margin_dtype=margin_dtype)

    out = pl.pallas_call(
        kernel,
        out_shape=jax.ShapeDtypeStruct((B, N), out_dtype),
        grid_spec=pltpu.PrefetchScalarGridSpec(
            num_scalar_prefetch=0,
            grid=(grid_m, grid_n),
            in_specs=[
                pl.BlockSpec((tm, E), lambda i, j: (i, 0)),       # x block
                pl.BlockSpec((tn, E), lambda i, j: (j, 0)),       # weight block (raw or normed)
                pl.BlockSpec((tm, 1), lambda i, j: (i, 0)),       # labels block
            ],
            out_specs=pl.BlockSpec((tm, tn), lambda i, j: (i, j)),
        ),
        compiler_params=pltpu.CompilerParams(
            dimension_semantics=("parallel", "parallel")),
        cost_estimate=cost,
    )(xc, w_in, lab2d)

    return out


def arcface_ref(x, weight, label, *, s=64.0, m=0.5, mxu_dtype=None):
    """Pure-JAX reference mirroring the PyTorch forward.

    If mxu_dtype is given, the matmul operands go through the same low-precision cast
    as the kernel, so numerics match the kernel's design choice.
    """
    cos_m, sin_m = math.cos(m), math.sin(m)
    th, mm = math.cos(math.pi - m), math.sin(math.pi - m) * m
    wn = _normalize_rows(weight)
    xc = x.astype(jnp.float32)
    if mxu_dtype is not None:
        wn = wn.astype(mxu_dtype).astype(jnp.float32)
        xc = xc.astype(mxu_dtype).astype(jnp.float32)
    cosine = xc @ wn.T
    sine = jnp.sqrt(jnp.clip(1.0 - cosine ** 2, 0.0, 1.0))
    phi = cosine * cos_m - sine * sin_m
    phi = jnp.where(cosine > th, phi, cosine - mm)
    one_hot = jax.nn.one_hot(label, weight.shape[0], dtype=cosine.dtype)
    return (one_hot * phi + (1.0 - one_hot) * cosine) * s


if __name__ == "__main__":
    # Module defaults: embedding_size=128, num_classes=10575.  N is non-divisible by the
    # column tile, so the masked partial output block and the garbage-in-OOB-rows path
    # are exercised.  B=16 exercises the in-kernel weight-normalization path (grid_m==1).
    B, E, N = 16, 128, 10575
    key = jax.random.PRNGKey(0)
    kx, kw, kl = jax.random.split(key, 3)

    x = jax.random.normal(kx, (B, E), dtype=jnp.float32)

    # Xavier-uniform init for weight (num_classes, embedding_size), as in __init__.
    bound = math.sqrt(6.0 / (N + E))
    weight = jax.random.uniform(kw, (N, E), dtype=jnp.float32,
                                minval=-bound, maxval=bound)
    label = jax.random.randint(kl, (B,), 0, N, dtype=jnp.int32)

    out = jax.block_until_ready(arcface_head(x, weight, label))
    assert out.shape == (B, N)
    ref = arcface_ref(x, weight, label, mxu_dtype=jnp.bfloat16)
    assert jnp.allclose(out, ref, atol=1e-1, rtol=1e-2), \
        f"max abs err (small-B path): {float(jnp.max(jnp.abs(out - ref)))}"

    # Also exercise the hoisted-normalization / multi-row-tile path (grid_m >= 2).
    B2 = 256
    x2 = jax.random.normal(kx, (B2, E), dtype=jnp.float32)
    label2 = jax.random.randint(kl, (B2,), 0, N, dtype=jnp.int32)
    out2 = jax.block_until_ready(arcface_head(x2, weight, label2))
    assert out2.shape == (B2, N)
    ref2 = arcface_ref(x2, weight, label2, mxu_dtype=jnp.bfloat16)
    assert jnp.allclose(out2, ref2, atol=1e-1, rtol=1e-2), \
        f"max abs err (large-B path): {float(jnp.max(jnp.abs(out2 - ref2)))}"

    # Informational drift vs. full-f32 reference (bf16 MXU operands).
    _ = float(jnp.max(jnp.abs(out - arcface_ref(x, weight, label))))

    print("KERNEL_OK")
</pallas_src>

<mosaic_0001>
module attributes {stable_mosaic.version = 11 : i64} {
  func.func @_arcface_kernel(%arg0: i32, %arg1: i32, %arg2: memref<16x128xbf16, #tpu.memory_space<vmem>>, %arg3: memref<2048x128xf32, #tpu.memory_space<vmem>>, %arg4: memref<16x1xi32, #tpu.memory_space<vmem>>, %arg5: memref<16x2048xf32, #tpu.memory_space<vmem>>) attributes {dimension_semantics = [#tpu.dimension_semantics<parallel>, #tpu.dimension_semantics<parallel>], iteration_bounds = array<i64: 1, 6>, scalar_prefetch = 0 : i64, scratch_operands = 0 : i64, tpu.core_type = #tpu.core_type<tc>, window_params = [{transform_indices = @transform_0, window_bounds = array<i64: 16, 128>}, {transform_indices = @transform_1, window_bounds = array<i64: 2048, 128>}, {transform_indices = @transform_2, window_bounds = array<i64: 16, 1>}, {transform_indices = @transform_3, window_bounds = array<i64: 16, 2048>}]} {
    %c0 = arith.constant 0 : index
    %c0_0 = arith.constant 0 : index
    %0 = vector.load %arg3[%c0, %c0_0] : memref<2048x128xf32, #tpu.memory_space<vmem>>, vector<2048x128xf32>
    %1 = arith.mulf %0, %0 : vector<2048x128xf32>
    %cst = arith.constant dense<0.000000e+00> : vector<2048xf32>
    %2 = vector.multi_reduction <add>, %1, %cst [1] : vector<2048x128xf32> to vector<2048xf32>
    %3 = vector.shape_cast %2 : vector<2048xf32> to vector<2048x1xf32>
    %cst_1 = arith.constant 1.000000e-24 : f32
    %4 = vector.broadcast %cst_1 : f32 to vector<2048x1xf32>
    %5 = arith.maximumf %3, %4 : vector<2048x1xf32>
    %6 = math.rsqrt %5 : vector<2048x1xf32>
    %7 = vector.broadcast %6 : vector<2048x1xf32> to vector<2048x128xf32>
    %8 = arith.mulf %0, %7 : vector<2048x128xf32>
    %9 = arith.truncf %8 : vector<2048x128xf32> to vector<2048x128xbf16>
    %c0_2 = arith.constant 0 : index
    %c0_3 = arith.constant 0 : index
    %10 = vector.load %arg2[%c0_2, %c0_3] : memref<16x128xbf16, #tpu.memory_space<vmem>>, vector<16x128xbf16>
    %cst_4 = arith.constant dense<0.000000e+00> : vector<16x2048xf32>
    %11 = tpu.matmul %10, %9, %cst_4 {dimension_numbers = #tpu.dot_dimension_numbers<[1], [1], [0], [0], [0, 0, 1, 0], [], []>} : vector<16x128xbf16>, vector<2048x128xbf16>, vector<16x2048xf32> -> vector<16x2048xf32>
    %12 = arith.mulf %11, %11 : vector<16x2048xf32>
    %cst_5 = arith.constant 1.000000e+00 : f32
    %13 = vector.broadcast %cst_5 : f32 to vector<16x2048xf32>
    %14 = arith.subf %13, %12 : vector<16x2048xf32>
    %cst_6 = arith.constant 0.000000e+00 : f32
    %cst_7 = arith.constant 1.000000e+00 : f32
    %15 = vector.broadcast %cst_6 : f32 to vector<16x2048xf32>
    %16 = arith.maximumf %15, %14 : vector<16x2048xf32>
    %17 = vector.broadcast %cst_7 : f32 to vector<16x2048xf32>
    %18 = arith.minimumf %17, %16 : vector<16x2048xf32>
    %19 = math.sqrt %18 : vector<16x2048xf32>
    %cst_8 = arith.constant 0.87758255 : f32
    %20 = vector.broadcast %cst_8 : f32 to vector<16x2048xf32>
    %21 = arith.mulf %11, %20 : vector<16x2048xf32>
    %cst_9 = arith.constant 0.47942555 : f32
    %22 = vector.broadcast %cst_9 : f32 to vector<16x2048xf32>
    %23 = arith.mulf %19, %22 : vector<16x2048xf32>
    %24 = arith.subf %21, %23 : vector<16x2048xf32>
    %cst_10 = arith.constant -0.87758255 : f32
    %25 = vector.broadcast %cst_10 : f32 to vector<16x2048xf32>
    %26 = arith.cmpf ogt, %11, %25 : vector<16x2048xf32>
    %cst_11 = arith.constant 0.239712775 : f32
    %27 = vector.broadcast %cst_11 : f32 to vector<16x2048xf32>
    %28 = arith.subf %11, %27 : vector<16x2048xf32>
    %29 = arith.select %26, %24, %28 : vector<16x2048xi1>, vector<16x2048xf32>
    %30 = tpu.iota {dimensions = array<i32: 1>} : vector<16x2048xi32>
    %c2048_i32 = arith.constant 2048 : i32
    %31 = arith.muli %arg1, %c2048_i32 : i32
    %32 = vector.broadcast %31 : i32 to vector<16x2048xi32>
    %33 = arith.addi %30, %32 : vector<16x2048xi32>
    %c0_12 = arith.constant 0 : index
    %c0_13 = arith.constant 0 : index
    %34 = vector.load %arg4[%c0_12, %c0_13] : memref<16x1xi32, #tpu.memory_space<vmem>>, vector<16x1xi32>
    %35 = vector.broadcast %34 : vector<16x1xi32> to vector<16x2048xi32>
    %36 = arith.cmpi eq, %33, %35 : vector<16x2048xi32>
    %37 = arith.select %36, %29, %11 : vector<16x2048xi1>, vector<16x2048xf32>
    %cst_14 = arith.constant 6.400000e+01 : f32
    %38 = vector.broadcast %cst_14 : f32 to vector<16x2048xf32>
    %39 = arith.mulf %37, %38 : vector<16x2048xf32>
    %c0_15 = arith.constant 0 : index
    %c0_16 = arith.constant 0 : index
    %40 = vector.load %arg5[%c0_15, %c0_16] : memref<16x2048xf32, #tpu.memory_space<vmem>>, vector<16x2048xf32>
    tpu.vector_store %arg5[%c0_15, %c0_16], %39 {strides = array<i32>} : memref<16x2048xf32, #tpu.memory_space<vmem>>, vector<16x2048xf32>,
    return
  }
  func.func @transform_0(%arg0: i32, %arg1: i32) -> (i32, i32) {
    %c0_i32 = arith.constant 0 : i32
    %c0_i32_0 = arith.constant 0 : i32
    return %arg0, %c0_i32 : i32, i32
  }
  func.func @transform_1(%arg0: i32, %arg1: i32) -> (i32, i32) {
    %c0_i32 = arith.constant 0 : i32
    %c0_i32_0 = arith.constant 0 : i32
    return %arg1, %c0_i32 : i32, i32
  }
  func.func @transform_2(%arg0: i32, %arg1: i32) -> (i32, i32) {
    %c0_i32 = arith.constant 0 : i32
    %c0_i32_0 = arith.constant 0 : i32
    return %arg0, %c0_i32 : i32, i32
  }
  func.func @transform_3(%arg0: i32, %arg1: i32) -> (i32, i32) {
    %c0_i32 = arith.constant 0 : i32
    return %arg0, %arg1 : i32, i32
  }
}

</mosaic_0001>

<llo_original>
// kernel: tpu_custom_call.1
$region0: #{tpu_custom_call.1}
  #allocation0 [shape = 'u32[]', space=smem, size = 0x4, offset = 0x4, fixed_abs, tag = 'smem constant byte address 0x4 - core index']
  #allocation1 [shape = 'u32[144,128]{1,0:T(1,128)}', space=vmem, size = 0x12000, scoped, tag = 'internal scratch']
  %s0 = inlined_call_operand.hbm [shape: bf16[16,128], index: 0, kind: input, shape index: {}]
  %s1 = inlined_call_operand.hbm [shape: f32[10575,128], index: 1, kind: input, shape index: {}]
  %s2 = inlined_call_operand.vmem [shape: s32[16,1], index: 2, kind: input, shape index: {}]
  %s3 = inlined_call_operand.hbm [shape: f32[16,10575], index: 3, kind: output, shape index: {}]
  %s4 = sld [smem:[#allocation0]]
  $region53: #{tpu_custom_call.1} parent=0
    _
  %s6 = ssub.s32 1, %s4
  %s7 = scalar_select 0, %s6, %s4
  $region1: #{tpu_custom_call.1} parent=0
    #allocation2 [shape = 'u8[4096]{0}', space=vmem, size = 0x1000, scoped, tag = 'input window, operand 0, single buffered']
    #allocation3 [shape = 's32[2]{0}', space=sflag, size = 0x8, scoped, tag = 'scoped memory for tpu_custom_call.1']
    #allocation4 [shape = 's32[2]{0}', space=sflag, size = 0x8, scoped, tag = 'scoped memory for tpu_custom_call.1']
    #allocation5 [shape = 'u8[2097152]{0}', space=vmem, size = 0x200000, scoped, tag = 'input window, operand 1']
    #allocation6 [shape = 's32[2]{0}', space=sflag, size = 0x8, scoped, tag = 'scoped memory for tpu_custom_call.1']
    #allocation7 [shape = 'u8[262144]{0}', space=vmem, size = 0x40000, scoped, tag = 'output window, operand 0']
    %8 = vsyncpa [#allocation3], 0
    %9 = vsyncpa [#allocation6], 0
    %s10 = scalar_lea.sflag [#allocation6], 1
    %11 = vsyncpa %s10, 0
    %12 = vsyncpa [#allocation4], 0
    %s13 = scalar_lea.sflag [#allocation4], 1
    %14 = vsyncpa %s13, 0
    loop: start=0, step=1, limit=8
    $region2: #{tpu_custom_call.1} parent=1 // loop_pre_header
      _
    $region3: #{tpu_custom_call.1} parent=1 // loop_header
      %s16 = sphi 0, %s20
      %p17 = scmp.ge.s32.totalorder %s16, 8
      %s23 = sphi 0, %s35
      %s24 = sphi 0, %s31
      %s25 = sphi 0, %s23
      %s26 = sphi 0, %s24
      %s27 = sphi 0, %s25
      %s28 = sphi 0, %s26
      %s38 = sphi 0, %s40
      %s41 = sphi 0, %s38
      %s42 = sphi 0, %s41
      %s58 = sphi 0, %s42
      %s64 = sphi 0, %s66
      %s67 = sphi 0, %s64
      %s68 = sphi 0, %s67
      %s84 = sphi 0, %s68
      %s90 = sphi 0, %s92
      %s93 = sphi 0, %s90
      %s94 = sphi 0, %s93
      %s110 = sphi 0, %s94
      %s118 = sphi 0, %s120
      %s121 = sphi 0, %s118
      %s122 = sphi 0, %s121
      %s138 = sphi 0, %s122
    $region4: #{tpu_custom_call.1} parent=1 // loop_header_branch
      %19 = sbr.rel (%p17) target = $region8
    $region5: #{tpu_custom_call.1} parent=1 // loop_body
      %s21 = ssub.s32 %s16, 1
      %s22 = ssub.s32 %s16, 2
      %s29 = sadd.s32 1, %s24
      %p30 = scmp.ge.s32.totalorder %s29, 6
      %s31 = scalar_select %p30, 0, %s29
      %s32 = sadd.s32 1, %s23
      %s33 = scalar_select %p30, %s32, %s23
      %p34 = scmp.ge.s32.totalorder %s33, 1
      %s35 = scalar_select %p34, 0, %s33
      %s36 = ssub.s32 %s23, %s35
      %p37 = scmp.eq.s32.totalorder %s36, 0
      %s39 = sadd.s32 %s38, 1
      %s40 = scalar_select %p37, %s38, %s39
      %p43 = pneg %p37
      %p44 = scmp.eq.s32.totalorder %s16, 5
      %p45 = por %p43, %p44
      %p46 = scmp.ne.s32.totalorder %s38, %s41
      %p47 = scmp.eq.s32.totalorder %s16, 0
      %p48 = por %p46, %p47
      %p49 = scmp.ne.s32.totalorder %s38, %s41
      %p50 = scmp.eq.s32.totalorder %s21, 5
      %p51 = por %p49, %p50
      %p52 = scmp.ne.s32.totalorder %s41, %s42
      %p53 = scmp.eq.s32.totalorder %s21, 0
      %p54 = por %p52, %p53
      %p55 = scmp.ne.s32.totalorder %s41, %s42
      %p56 = scmp.eq.s32.totalorder %s22, 5
      %p57 = por %p55, %p56
      %p59 = scmp.ne.s32.totalorder %s42, %s58
      %p60 = scmp.eq.s32.totalorder %s22, 0
      %p61 = por %p59, %p60
      %s62 = ssub.s32 %s24, %s31
      %p63 = scmp.eq.s32.totalorder %s62, 0
      %s65 = sadd.s32 %s64, 1
      %s66 = scalar_select %p63, %s64, %s65
      %p69 = pneg %p63
      %p70 = scmp.eq.s32.totalorder %s16, 5
      %p71 = por %p69, %p70
      %p72 = scmp.ne.s32.totalorder %s64, %s67
      %p73 = scmp.eq.s32.totalorder %s16, 0
      %p74 = por %p72, %p73
      %p75 = scmp.ne.s32.totalorder %s64, %s67
      %p76 = scmp.eq.s32.totalorder %s21, 5
      %p77 = por %p75, %p76
      %p78 = scmp.ne.s32.totalorder %s67, %s68
      %p79 = scmp.eq.s32.totalorder %s21, 0
      %p80 = por %p78, %p79
      %p81 = scmp.ne.s32.totalorder %s67, %s68
      %p82 = scmp.eq.s32.totalorder %s22, 5
      %p83 = por %p81, %p82
      %p85 = scmp.ne.s32.totalorder %s68, %s84
      %p86 = scmp.eq.s32.totalorder %s22, 0
      %p87 = por %p85, %p86
      %s88 = ssub.s32 %s23, %s35
      %p89 = scmp.eq.s32.totalorder %s88, 0
      %s91 = sadd.s32 %s90, 1
      %s92 = scalar_select %p89, %s90, %s91
      %p95 = pneg %p89
      %p96 = scmp.eq.s32.totalorder %s16, 5
      %p97 = por %p95, %p96
      %p98 = scmp.ne.s32.totalorder %s90, %s93
      %p99 = scmp.eq.s32.totalorder %s16, 0
      %p100 = por %p98, %p99
      %p101 = scmp.ne.s32.totalorder %s90, %s93
      %p102 = scmp.eq.s32.totalorder %s21, 5
      %p103 = por %p101, %p102
      %p104 = scmp.ne.s32.totalorder %s93, %s94
      %p105 = scmp.eq.s32.totalorder %s21, 0
      %p106 = por %p104, %p105
      %p107 = scmp.ne.s32.totalorder %s93, %s94
      %p108 = scmp.eq.s32.totalorder %s22, 5
      %p109 = por %p107, %p108
      %p111 = scmp.ne.s32.totalorder %s94, %s110
      %p112 = scmp.eq.s32.totalorder %s22, 0
      %p113 = por %p111, %p112
      %s114 = ssub.s32 %s23, %s35
      %s115 = ssub.s32 %s24, %s31
      %s116 = sor.u32 %s114, %s115
      %p117 = scmp.eq.s32.totalorder %s116, 0
      %s119 = sadd.s32 %s118, 1
      %s120 = scalar_select %p117, %s118, %s119
      %p123 = pneg %p117
      %p124 = scmp.eq.s32.totalorder %s16, 5
      %p125 = por %p123, %p124
      %p126 = scmp.ne.s32.totalorder %s118, %s121
      %p127 = scmp.eq.s32.totalorder %s16, 0
      %p128 = por %p126, %p127
      %p129 = scmp.ne.s32.totalorder %s118, %s121
      %p130 = scmp.eq.s32.totalorder %s21, 5
      %p131 = por %p129, %p130
      %p132 = scmp.ne.s32.totalorder %s121, %s122
      %p133 = scmp.eq.s32.totalorder %s21, 0
      %p134 = por %p132, %p133
      %p135 = scmp.ne.s32.totalorder %s121, %s122
      %p136 = scmp.eq.s32.totalorder %s22, 5
      %p137 = por %p135, %p136
      %p139 = scmp.ne.s32.totalorder %s122, %s138
      %p140 = scmp.eq.s32.totalorder %s22, 0
      %p141 = por %p139, %p140
      %p142 = scmp.le.s32.totalorder 1, %s16
      %p143 = scmp.lt.s32.totalorder %s16, 7
      %p144 = pnand %p142, %p143
      %p145 = pneg %p144
      // Predicated region
      $region9: #{tpu_custom_call.1} parent=5 // pred_check
        _
      $region10: #{tpu_custom_call.1} parent=5 // pred_check_branch
        %147 = sbr.rel (%p144) target = $region12
      $region11: #{tpu_custom_call.1} parent=5 // pred_region
        %s148 = ssub.s32 %s16, 1
        // Predicated region
        $region13: #{tpu_custom_call.1} parent=11 // pred_check
          %p149 = pneg %p54
        $region14: #{tpu_custom_call.1} parent=11 // pred_check_branch
          %151 = sbr.rel (%p149) target = $region16
        $region15: #{tpu_custom_call.1} parent=11 // pred_region
          %s152 = smul.u32 2, %s25
          %s154 = ssub.s32 128, 128
          %155 = vsyncadd [#allocation3], %s154
          %s156 = smul.addr %s152, 64
          %s157 = scalar_lea.hbm %s0, %s156
          %s158 = sshll.u32 [#allocation2], 4
          %s159 = int_to_ptr.vmem [resolvable:$true] %s158
          %164 = dma.hbm_to_vmem [thread:$0]  %s157, 128, %s159, [#allocation3], 64, 64, 4
        $region16: #{tpu_custom_call.1} parent=11 // pred_fallthru
          _
        // Predicated region
        $region17: #{tpu_custom_call.1} parent=11 // pred_check
          %p165 = pneg %p106
        $region18: #{tpu_custom_call.1} parent=11 // pred_check_branch
          %167 = sbr.rel (%p165) target = $region20
        $region19: #{tpu_custom_call.1} parent=11 // pred_region
          %s168 = smul.u32 2, %s25
          %p169 = scmp.lt.s32.totalorder %s168, 1
          %s170 = scalar_select %p169, %s168, 1
          %s171 = smul.addr %s170, 8
          %s172 = scalar_lea.vmem %s2, %s171
          %s173 = smul.u32 2, %s25
        $region20: #{tpu_custom_call.1} parent=11 // pred_fallthru
          _
      $region12: #{tpu_custom_call.1} parent=5 // pred_fallthru
        _
      %p174 = scmp.lt.s32.totalorder %s16, 6
      // Predicated region
      $region21: #{tpu_custom_call.1} parent=5 // pred_check
        %p175 = pneg %p174
      $region22: #{tpu_custom_call.1} parent=5 // pred_check_branch
        %177 = sbr.rel (%p175) target = $region24
      $region23: #{tpu_custom_call.1} parent=5 // pred_region
        // Predicated region
        $region25: #{tpu_custom_call.1} parent=23 // pred_check
          %p178 = pneg %p74
        $region26: #{tpu_custom_call.1} parent=23 // pred_check_branch
          %180 = sbr.rel (%p178) target = $region28
        $region27: #{tpu_custom_call.1} parent=23 // pred_region
          %s181 = sand.u32 %s64, 1
          %s182 = scalar_lea.sflag [#allocation6], %s181
          %s183 = sand.u32 %s64, 1
          %s184 = smul.addr %s183, 2048
          %s185 = scalar_lea.vmem [#allocation5], %s184
          %s186 = smul.u32 256, %s24
          %s187 = ssub.s32 1322, %s186
          %p188 = scmp.lt.s32.totalorder %s187, 256
          %s189 = scalar_select %p188, %s187, 256
          %s190 = smul.u32 128, %s189
          %s192 = ssub.s32 32768, %s190
          %193 = vsyncadd %s182, %s192
          %p194 = scmp.ne.s32.totalorder 0, %s190
          %s195 = smul.addr %s186, 128
          %s196 = scalar_lea.hbm %s1, %s195
          %s197 = smul.u32 8, %s189
          %s198 = sshll.u32 %s185, 4
          %s199 = int_to_ptr.vmem [resolvable:$true] %s198
          %s200 = sshll.u32 %s197, 4
          %204 = dma.hbm_to_vmem [thread:$0]  (%p194), %s196, %s200, %s199, %s182, 128, 128, 8
        $region28: #{tpu_custom_call.1} parent=23 // pred_fallthru
          _
      $region24: #{tpu_custom_call.1} parent=5 // pred_fallthru
        _
      %p205 = scmp.le.s32.totalorder 1, %s16
      %p206 = scmp.lt.s32.totalorder %s16, 7
      %p207 = pnand %p205, %p206
      %p208 = pneg %p207
      // Predicated region
      $region29: #{tpu_custom_call.1} parent=5 // pred_check
        _
      $region30: #{tpu_custom_call.1} parent=5 // pred_check_branch
        %210 = sbr.rel (%p207) target = $region32
      $region31: #{tpu_custom_call.1} parent=5 // pred_region
        %s211 = ssub.s32 %s16, 1
        // Predicated region
        $region33: #{tpu_custom_call.1} parent=31 // pred_check
          %p212 = pneg %p54
        $region34: #{tpu_custom_call.1} parent=31 // pred_check_branch
          %214 = sbr.rel (%p212) target = $region36
        $region35: #{tpu_custom_call.1} parent=31 // pred_region
          %215 = dma.done [#allocation3], 128
        $region36: #{tpu_custom_call.1} parent=31 // pred_fallthru
          _
        %s216 = sand.u32 %s67, 1
        %s217 = scalar_lea.sflag [#allocation6], %s216
        %s218 = sand.u32 %s67, 1
        %s219 = smul.addr %s218, 2048
        %s220 = scalar_lea.vmem [#allocation5], %s219
        // Predicated region
        $region37: #{tpu_custom_call.1} parent=31 // pred_check
          %p221 = pneg %p80
        $region38: #{tpu_custom_call.1} parent=31 // pred_check_branch
          %223 = sbr.rel (%p221) target = $region40
        $region39: #{tpu_custom_call.1} parent=31 // pred_region
          %224 = dma.done %s217, 32768
        $region40: #{tpu_custom_call.1} parent=31 // pred_fallthru
          _
        %p225 = pneg %p54
        %p226 = pneg %p51
        %s227 = sand.u32 %s67, 1
        %s228 = scalar_lea.sflag [#allocation6], %s227
        %s229 = sand.u32 %s67, 1
        %s230 = smul.addr %s229, 2048
        %s231 = scalar_lea.vmem [#allocation5], %s230
        %p232 = pneg %p80
        %p233 = pneg %p77
        %s234 = smul.u32 2, %s25
        %p235 = scmp.lt.s32.totalorder %s234, 1
        %s236 = scalar_select %p235, %s234, 1
        %s237 = smul.addr %s236, 8
        %s238 = scalar_lea.vmem %s2, %s237
        %p239 = pneg %p106
        %p240 = pneg %p103
        %p241 = pneg %p134
        %p242 = pneg %p131
        %s243 = sand.u32 %s121, 1
        %s244 = scalar_lea.sflag [#allocation4], %s243
        %s245 = sand.u32 %s121, 1
        %s246 = smul.addr %s245, 256
        %s247 = scalar_lea.vmem [#allocation7], %s246
        %s248 = smul.u32 2, %s25
        %s249 = smul.u32 256, %s26
        %s250 = ssub.s32 1322, %s249
        %p251 = scmp.lt.s32.totalorder %s250, 256
        %s252 = scalar_select %p251, %s250, 256
        %s253 = smul.u32 128, %s252
        %s254 = smul.u32 2, %s25
        %p255 = scmp.lt.s32.totalorder %s254, 1
        %s256 = scalar_select %p255, %s254, 1
        %s257 = smul.addr %s256, 8
        %s258 = scalar_lea.vmem %s2, %s257
        %s259 = smul.u32 2, %s25
        %s260 = smul.u32 2, %s25
        %s261 = smul.u32 16, %s26
        %s262 = ssub.s32 83, %s261
        %p263 = scmp.lt.s32.totalorder %s262, 16
        %s264 = scalar_select %p263, %s262, 16
        %s265 = smul.u32 256, %s264
        %v267 = vld [vmem:[%s220] sm:$0xff]
        %v268 = vld [vmem:[%s220 + $0x8] sm:$0xff]
        %v269 = vld [vmem:[%s220 + $0x10] sm:$0xff]
        %v270 = vld [vmem:[%s220 + $0x18] sm:$0xff]
        %v271 = vld [vmem:[%s220 + $0x20] sm:$0xff]
        %v272 = vld [vmem:[%s220 + $0x28] sm:$0xff]
        %v273 = vld [vmem:[%s220 + $0x30] sm:$0xff]
        %v274 = vld [vmem:[%s220 + $0x38] sm:$0xff]
        %v275 = vld [vmem:[%s220 + $0x40] sm:$0xff]
        %v276 = vld [vmem:[%s220 + $0x48] sm:$0xff]
        %v277 = vld [vmem:[%s220 + $0x50] sm:$0xff]
        %v278 = vld [vmem:[%s220 + $0x58] sm:$0xff]
        %v279 = vld [vmem:[%s220 + $0x60] sm:$0xff]
        %v280 = vld [vmem:[%s220 + $0x68] sm:$0xff]
        %v281 = vld [vmem:[%s220 + $0x70] sm:$0xff]
        %v282 = vld [vmem:[%s220 + $0x78] sm:$0xff]
        %v283 = vld [vmem:[%s220 + $0x80] sm:$0xff]
        %v284 = vld [vmem:[%s220 + $0x88] sm:$0xff]
        %v285 = vld [vmem:[%s220 + $0x90] sm:$0xff]
        %v286 = vld [vmem:[%s220 + $0x98] sm:$0xff]
        %v287 = vld [vmem:[%s220 + $0xa0] sm:$0xff]
        %v288 = vld [vmem:[%s220 + $0xa8] sm:$0xff]
        %v289 = vld [vmem:[%s220 + $0xb0] sm:$0xff]
        %v290 = vld [vmem:[%s220 + $0xb8] sm:$0xff]
        %v291 = vld [vmem:[%s220 + $0xc0] sm:$0xff]
        %v292 = vld [vmem:[%s220 + $0xc8] sm:$0xff]
        %v293 = vld [vmem:[%s220 + $0xd0] sm:$0xff]
        %v294 = vld [vmem:[%s220 + $0xd8] sm:$0xff]
        %v295 = vld [vmem:[%s220 + $0xe0] sm:$0xff]
        %v296 = vld [vmem:[%s220 + $0xe8] sm:$0xff]
        %v297 = vld [vmem:[%s220 + $0xf0] sm:$0xff]
        %v298 = vld [vmem:[%s220 + $0xf8] sm:$0xff]
        %v299 = vld [vmem:[%s220 + $0x100] sm:$0xff]
        %v300 = vld [vmem:[%s220 + $0x108] sm:$0xff]
        %v301 = vld [vmem:[%s220 + $0x110] sm:$0xff]
        %v302 = vld [vmem:[%s220 + $0x118] sm:$0xff]
        %v303 = vld [vmem:[%s220 + $0x120] sm:$0xff]
        %v304 = vld [vmem:[%s220 + $0x128] sm:$0xff]
        %v305 = vld [vmem:[%s220 + $0x130] sm:$0xff]
        %v306 = vld [vmem:[%s220 + $0x138] sm:$0xff]
        %v307 = vld [vmem:[%s220 + $0x140] sm:$0xff]
        %v308 = vld [vmem:[%s220 + $0x148] sm:$0xff]
        %v309 = vld [vmem:[%s220 + $0x150] sm:$0xff]
        %v310 = vld [vmem:[%s220 + $0x158] sm:$0xff]
        %v311 = vld [vmem:[%s220 + $0x160] sm:$0xff]
        %v312 = vld [vmem:[%s220 + $0x168] sm:$0xff]
        %v313 = vld [vmem:[%s220 + $0x170] sm:$0xff]
        %v314 = vld [vmem:[%s220 + $0x178] sm:$0xff]
        %v315 = vld [vmem:[%s220 + $0x180] sm:$0xff]
        %v316 = vld [vmem:[%s220 + $0x188] sm:$0xff]
        %v317 = vld [vmem:[%s220 + $0x190] sm:$0xff]
        %v318 = vld [vmem:[%s220 + $0x198] sm:$0xff]
        %v319 = vld [vmem:[%s220 + $0x1a0] sm:$0xff]
        %v320 = vld [vmem:[%s220 + $0x1a8] sm:$0xff]
        %v321 = vld [vmem:[%s220 + $0x1b0] sm:$0xff]
        %v322 = vld [vmem:[%s220 + $0x1b8] sm:$0xff]
        %v323 = vld [vmem:[%s220 + $0x1c0] sm:$0xff]
        %v324 = vld [vmem:[%s220 + $0x1c8] sm:$0xff]
        %v325 = vld [vmem:[%s220 + $0x1d0] sm:$0xff]
        %v326 = vld [vmem:[%s220 + $0x1d8] sm:$0xff]
        %v327 = vld [vmem:[%s220 + $0x1e0] sm:$0xff]
        %v328 = vld [vmem:[%s220 + $0x1e8] sm:$0xff]
        %v329 = vld [vmem:[%s220 + $0x1f0] sm:$0xff]
        %v330 = vld [vmem:[%s220 + $0x1f8] sm:$0xff]
        %v331 = vld [vmem:[%s220 + $0x200] sm:$0xff]
        %v332 = vld [vmem:[%s220 + $0x208] sm:$0xff]
        %v333 = vld [vmem:[%s220 + $0x210] sm:$0xff]
        %v334 = vld [vmem:[%s220 + $0x218] sm:$0xff]
        %v335 = vld [vmem:[%s220 + $0x220] sm:$0xff]
        %v336 = vld [vmem:[%s220 + $0x228] sm:$0xff]
        %v337 = vld [vmem:[%s220 + $0x230] sm:$0xff]
        %v338 = vld [vmem:[%s220 + $0x238] sm:$0xff]
        %v339 = vld [vmem:[%s220 + $0x240] sm:$0xff]
        %v340 = vld [vmem:[%s220 + $0x248] sm:$0xff]
        %v341 = vld [vmem:[%s220 + $0x250] sm:$0xff]
        %v342 = vld [vmem:[%s220 + $0x258] sm:$0xff]
        %v343 = vld [vmem:[%s220 + $0x260] sm:$0xff]
        %v344 = vld [vmem:[%s220 + $0x268] sm:$0xff]
        %v345 = vld [vmem:[%s220 + $0x270] sm:$0xff]
        %v346 = vld [vmem:[%s220 + $0x278] sm:$0xff]
        %v347 = vld [vmem:[%s220 + $0x280] sm:$0xff]
        %v348 = vld [vmem:[%s220 + $0x288] sm:$0xff]
        %v349 = vld [vmem:[%s220 + $0x290] sm:$0xff]
        %v350 = vld [vmem:[%s220 + $0x298] sm:$0xff]
        %v351 = vld [vmem:[%s220 + $0x2a0] sm:$0xff]
        %v352 = vld [vmem:[%s220 + $0x2a8] sm:$0xff]
        %v353 = vld [vmem:[%s220 + $0x2b0] sm:$0xff]
        %v354 = vld [vmem:[%s220 + $0x2b8] sm:$0xff]
        %v355 = vld [vmem:[%s220 + $0x2c0] sm:$0xff]
        %v356 = vld [vmem:[%s220 + $0x2c8] sm:$0xff]
        %v357 = vld [vmem:[%s220 + $0x2d0] sm:$0xff]
        %v358 = vld [vmem:[%s220 + $0x2d8] sm:$0xff]
        %v359 = vld [vmem:[%s220 + $0x2e0] sm:$0xff]
        %v360 = vld [vmem:[%s220 + $0x2e8] sm:$0xff]
        %v361 = vld [vmem:[%s220 + $0x2f0] sm:$0xff]
        %v362 = vld [vmem:[%s220 + $0x2f8] sm:$0xff]
        %v363 = vld [vmem:[%s220 + $0x300] sm:$0xff]
        %v364 = vld [vmem:[%s220 + $0x308] sm:$0xff]
        %v365 = vld [vmem:[%s220 + $0x310] sm:$0xff]
        %v366 = vld [vmem:[%s220 + $0x318] sm:$0xff]
        %v367 = vld [vmem:[%s220 + $0x320] sm:$0xff]
        %v368 = vld [vmem:[%s220 + $0x328] sm:$0xff]
        %v369 = vld [vmem:[%s220 + $0x330] sm:$0xff]
        %v370 = vld [vmem:[%s220 + $0x338] sm:$0xff]
        %v371 = vld [vmem:[%s220 + $0x340] sm:$0xff]
        %v372 = vld [vmem:[%s220 + $0x348] sm:$0xff]
        %v373 = vld [vmem:[%s220 + $0x350] sm:$0xff]
        %v374 = vld [vmem:[%s220 + $0x358] sm:$0xff]
        %v375 = vld [vmem:[%s220 + $0x360] sm:$0xff]
        %v376 = vld [vmem:[%s220 + $0x368] sm:$0xff]
        %v377 = vld [vmem:[%s220 + $0x370] sm:$0xff]
        %v378 = vld [vmem:[%s220 + $0x378] sm:$0xff]
        %v379 = vld [vmem:[%s220 + $0x380] sm:$0xff]
        %v380 = vld [vmem:[%s220 + $0x388] sm:$0xff]
        %v381 = vld [vmem:[%s220 + $0x390] sm:$0xff]
        %v382 = vld [vmem:[%s220 + $0x398] sm:$0xff]
        %v383 = vld [vmem:[%s220 + $0x3a0] sm:$0xff]
        %v384 = vld [vmem:[%s220 + $0x3a8] sm:$0xff]
        %v385 = vld [vmem:[%s220 + $0x3b0] sm:$0xff]
        %v386 = vld [vmem:[%s220 + $0x3b8] sm:$0xff]
        %v387 = vld [vmem:[%s220 + $0x3c0] sm:$0xff]
        %v388 = vld [vmem:[%s220 + $0x3c8] sm:$0xff]
        %v389 = vld [vmem:[%s220 + $0x3d0] sm:$0xff]
        %v390 = vld [vmem:[%s220 + $0x3d8] sm:$0xff]
        %v391 = vld [vmem:[%s220 + $0x3e0] sm:$0xff]
        %v392 = vld [vmem:[%s220 + $0x3e8] sm:$0xff]
        %v393 = vld [vmem:[%s220 + $0x3f0] sm:$0xff]
        %v394 = vld [vmem:[%s220 + $0x3f8] sm:$0xff]
        %v395 = vld [vmem:[%s220 + $0x400] sm:$0xff]
        %v396 = vld [vmem:[%s220 + $0x408] sm:$0xff]
        %v397 = vld [vmem:[%s220 + $0x410] sm:$0xff]
        %v398 = vld [vmem:[%s220 + $0x418] sm:$0xff]
        %v399 = vld [vmem:[%s220 + $0x420] sm:$0xff]
        %v400 = vld [vmem:[%s220 + $0x428] sm:$0xff]
        %v401 = vld [vmem:[%s220 + $0x430] sm:$0xff]
        %v402 = vld [vmem:[%s220 + $0x438] sm:$0xff]
        %v403 = vld [vmem:[%s220 + $0x440] sm:$0xff]
        %v404 = vld [vmem:[%s220 + $0x448] sm:$0xff]
        %v405 = vld [vmem:[%s220 + $0x450] sm:$0xff]
        %v406 = vld [vmem:[%s220 + $0x458] sm:$0xff]
        %v407 = vld [vmem:[%s220 + $0x460] sm:$0xff]
        %v408 = vld [vmem:[%s220 + $0x468] sm:$0xff]
        %v409 = vld [vmem:[%s220 + $0x470] sm:$0xff]
        %v410 = vld [vmem:[%s220 + $0x478] sm:$0xff]
        %v411 = vld [vmem:[%s220 + $0x480] sm:$0xff]
        %v412 = vld [vmem:[%s220 + $0x488] sm:$0xff]
        %v413 = vld [vmem:[%s220 + $0x490] sm:$0xff]
        %v414 = vld [vmem:[%s220 + $0x498] sm:$0xff]
        %v415 = vld [vmem:[%s220 + $0x4a0] sm:$0xff]
        %v416 = vld [vmem:[%s220 + $0x4a8] sm:$0xff]
        %v417 = vld [vmem:[%s220 + $0x4b0] sm:$0xff]
        %v418 = vld [vmem:[%s220 + $0x4b8] sm:$0xff]
        %v419 = vld [vmem:[%s220 + $0x4c0] sm:$0xff]
        %v420 = vld [vmem:[%s220 + $0x4c8] sm:$0xff]
        %v421 = vld [vmem:[%s220 + $0x4d0] sm:$0xff]
        %v422 = vld [vmem:[%s220 + $0x4d8] sm:$0xff]
        %v423 = vld [vmem:[%s220 + $0x4e0] sm:$0xff]
        %v424 = vld [vmem:[%s220 + $0x4e8] sm:$0xff]
        %v425 = vld [vmem:[%s220 + $0x4f0] sm:$0xff]
        %v426 = vld [vmem:[%s220 + $0x4f8] sm:$0xff]
        %v427 = vld [vmem:[%s220 + $0x500] sm:$0xff]
        %v428 = vld [vmem:[%s220 + $0x508] sm:$0xff]
        %v429 = vld [vmem:[%s220 + $0x510] sm:$0xff]
        %v430 = vld [vmem:[%s220 + $0x518] sm:$0xff]
        %v431 = vld [vmem:[%s220 + $0x520] sm:$0xff]
        %v432 = vld [vmem:[%s220 + $0x528] sm:$0xff]
        %v433 = vld [vmem:[%s220 + $0x530] sm:$0xff]
        %v434 = vld [vmem:[%s220 + $0x538] sm:$0xff]
        %v435 = vld [vmem:[%s220 + $0x540] sm:$0xff]
        %v436 = vld [vmem:[%s220 + $0x548] sm:$0xff]
        %v437 = vld [vmem:[%s220 + $0x550] sm:$0xff]
        %v438 = vld [vmem:[%s220 + $0x558] sm:$0xff]
        %v439 = vld [vmem:[%s220 + $0x560] sm:$0xff]
        %v440 = vld [vmem:[%s220 + $0x568] sm:$0xff]
        %v441 = vld [vmem:[%s220 + $0x570] sm:$0xff]
        %v442 = vld [vmem:[%s220 + $0x578] sm:$0xff]
        %v443 = vld [vmem:[%s220 + $0x580] sm:$0xff]
        %v444 = vld [vmem:[%s220 + $0x588] sm:$0xff]
        %v445 = vld [vmem:[%s220 + $0x590] sm:$0xff]
        %v446 = vld [vmem:[%s220 + $0x598] sm:$0xff]
        %v447 = vld [vmem:[%s220 + $0x5a0] sm:$0xff]
        %v448 = vld [vmem:[%s220 + $0x5a8] sm:$0xff]
        %v449 = vld [vmem:[%s220 + $0x5b0] sm:$0xff]
        %v450 = vld [vmem:[%s220 + $0x5b8] sm:$0xff]
        %v451 = vld [vmem:[%s220 + $0x5c0] sm:$0xff]
        %v452 = vld [vmem:[%s220 + $0x5c8] sm:$0xff]
        %v453 = vld [vmem:[%s220 + $0x5d0] sm:$0xff]
        %v454 = vld [vmem:[%s220 + $0x5d8] sm:$0xff]
        %v455 = vld [vmem:[%s220 + $0x5e0] sm:$0xff]
        %v456 = vld [vmem:[%s220 + $0x5e8] sm:$0xff]
        %v457 = vld [vmem:[%s220 + $0x5f0] sm:$0xff]
        %v458 = vld [vmem:[%s220 + $0x5f8] sm:$0xff]
        %v459 = vld [vmem:[%s220 + $0x600] sm:$0xff]
        %v460 = vld [vmem:[%s220 + $0x608] sm:$0xff]
        %v461 = vld [vmem:[%s220 + $0x610] sm:$0xff]
        %v462 = vld [vmem:[%s220 + $0x618] sm:$0xff]
        %v463 = vld [vmem:[%s220 + $0x620] sm:$0xff]
        %v464 = vld [vmem:[%s220 + $0x628] sm:$0xff]
        %v465 = vld [vmem:[%s220 + $0x630] sm:$0xff]
        %v466 = vld [vmem:[%s220 + $0x638] sm:$0xff]
        %v467 = vld [vmem:[%s220 + $0x640] sm:$0xff]
        %v468 = vld [vmem:[%s220 + $0x648] sm:$0xff]
        %v469 = vld [vmem:[%s220 + $0x650] sm:$0xff]
        %v470 = vld [vmem:[%s220 + $0x658] sm:$0xff]
        %v471 = vld [vmem:[%s220 + $0x660] sm:$0xff]
        %v472 = vld [vmem:[%s220 + $0x668] sm:$0xff]
        %v473 = vld [vmem:[%s220 + $0x670] sm:$0xff]
        %v474 = vld [vmem:[%s220 + $0x678] sm:$0xff]
        %v475 = vld [vmem:[%s220 + $0x680] sm:$0xff]
        %v476 = vld [vmem:[%s220 + $0x688] sm:$0xff]
        %v477 = vld [vmem:[%s220 + $0x690] sm:$0xff]
        %v478 = vld [vmem:[%s220 + $0x698] sm:$0xff]
        %v479 = vld [vmem:[%s220 + $0x6a0] sm:$0xff]
        %v480 = vld [vmem:[%s220 + $0x6a8] sm:$0xff]
        %v481 = vld [vmem:[%s220 + $0x6b0] sm:$0xff]
        %v482 = vld [vmem:[%s220 + $0x6b8] sm:$0xff]
        %v483 = vld [vmem:[%s220 + $0x6c0] sm:$0xff]
        %v484 = vld [vmem:[%s220 + $0x6c8] sm:$0xff]
        %v485 = vld [vmem:[%s220 + $0x6d0] sm:$0xff]
        %v486 = vld [vmem:[%s220 + $0x6d8] sm:$0xff]
        %v487 = vld [vmem:[%s220 + $0x6e0] sm:$0xff]
        %v488 = vld [vmem:[%s220 + $0x6e8] sm:$0xff]
        %v489 = vld [vmem:[%s220 + $0x6f0] sm:$0xff]
        %v490 = vld [vmem:[%s220 + $0x6f8] sm:$0xff]
        %v491 = vld [vmem:[%s220 + $0x700] sm:$0xff]
        %v492 = vld [vmem:[%s220 + $0x708] sm:$0xff]
        %v493 = vld [vmem:[%s220 + $0x710] sm:$0xff]
        %v494 = vld [vmem:[%s220 + $0x718] sm:$0xff]
        %v495 = vld [vmem:[%s220 + $0x720] sm:$0xff]
        %v496 = vld [vmem:[%s220 + $0x728] sm:$0xff]
        %v497 = vld [vmem:[%s220 + $0x730] sm:$0xff]
        %v498 = vld [vmem:[%s220 + $0x738] sm:$0xff]
        %v499 = vld [vmem:[%s220 + $0x740] sm:$0xff]
        %v500 = vld [vmem:[%s220 + $0x748] sm:$0xff]
        %v501 = vld [vmem:[%s220 + $0x750] sm:$0xff]
        %v502 = vld [vmem:[%s220 + $0x758] sm:$0xff]
        %v503 = vld [vmem:[%s220 + $0x760] sm:$0xff]
        %v504 = vld [vmem:[%s220 + $0x768] sm:$0xff]
        %v505 = vld [vmem:[%s220 + $0x770] sm:$0xff]
        %v506 = vld [vmem:[%s220 + $0x778] sm:$0xff]
        %v507 = vld [vmem:[%s220 + $0x780] sm:$0xff]
        %v508 = vld [vmem:[%s220 + $0x788] sm:$0xff]
        %v509 = vld [vmem:[%s220 + $0x790] sm:$0xff]
        %v510 = vld [vmem:[%s220 + $0x798] sm:$0xff]
        %v511 = vld [vmem:[%s220 + $0x7a0] sm:$0xff]
        %v512 = vld [vmem:[%s220 + $0x7a8] sm:$0xff]
        %v513 = vld [vmem:[%s220 + $0x7b0] sm:$0xff]
        %v514 = vld [vmem:[%s220 + $0x7b8] sm:$0xff]
        %v515 = vld [vmem:[%s220 + $0x7c0] sm:$0xff]
        %v516 = vld [vmem:[%s220 + $0x7c8] sm:$0xff]
        %v517 = vld [vmem:[%s220 + $0x7d0] sm:$0xff]
        %v518 = vld [vmem:[%s220 + $0x7d8] sm:$0xff]
        %v519 = vld [vmem:[%s220 + $0x7e0] sm:$0xff]
        %v520 = vld [vmem:[%s220 + $0x7e8] sm:$0xff]
        %v521 = vld [vmem:[%s220 + $0x7f0] sm:$0xff]
        %v522 = vld [vmem:[%s220 + $0x7f8] sm:$0xff]
        %v523 = vmul.f32 %v267, %v267
        %v524 = vmul.f32 %v268, %v268
        %v525 = vmul.f32 %v269, %v269
        %v526 = vmul.f32 %v270, %v270
        %v527 = vmul.f32 %v271, %v271
        %v528 = vmul.f32 %v272, %v272
        %v529 = vmul.f32 %v273, %v273
        %v530 = vmul.f32 %v274, %v274
        %v531 = vmul.f32 %v275, %v275
        %v532 = vmul.f32 %v276, %v276
        %v533 = vmul.f32 %v277, %v277
        %v534 = vmul.f32 %v278, %v278
        %v535 = vmul.f32 %v279, %v279
        %v536 = vmul.f32 %v280, %v280
        %v537 = vmul.f32 %v281, %v281
        %v538 = vmul.f32 %v282, %v282
        %v539 = vmul.f32 %v283, %v283
        %v540 = vmul.f32 %v284, %v284
        %v541 = vmul.f32 %v285, %v285
        %v542 = vmul.f32 %v286, %v286
        %v543 = vmul.f32 %v287, %v287
        %v544 = vmul.f32 %v288, %v288
        %v545 = vmul.f32 %v289, %v289
        %v546 = vmul.f32 %v290, %v290
        %v547 = vmul.f32 %v291, %v291
        %v548 = vmul.f32 %v292, %v292
        %v549 = vmul.f32 %v293, %v293
        %v550 = vmul.f32 %v294, %v294
        %v551 = vmul.f32 %v295, %v295
        %v552 = vmul.f32 %v296, %v296
        %v553 = vmul.f32 %v297, %v297
        %v554 = vmul.f32 %v298, %v298
        %v555 = vmul.f32 %v299, %v299
        %v556 = vmul.f32 %v300, %v300
        %v557 = vmul.f32 %v301, %v301
        %v558 = vmul.f32 %v302, %v302
        %v559 = vmul.f32 %v303, %v303
        %v560 = vmul.f32 %v304, %v304
        %v561 = vmul.f32 %v305, %v305
        %v562 = vmul.f32 %v306, %v306
        %v563 = vmul.f32 %v307, %v307
        %v564 = vmul.f32 %v308, %v308
        %v565 = vmul.f32 %v309, %v309
        %v566 = vmul.f32 %v310, %v310
        %v567 = vmul.f32 %v311, %v311
        %v568 = vmul.f32 %v312, %v312
        %v569 = vmul.f32 %v313, %v313
        %v570 = vmul.f32 %v314, %v314
        %v571 = vmul.f32 %v315, %v315
        %v572 = vmul.f32 %v316, %v316
        %v573 = vmul.f32 %v317, %v317
        %v574 = vmul.f32 %v318, %v318
        %v575 = vmul.f32 %v319, %v319
        %v576 = vmul.f32 %v320, %v320
        %v577 = vmul.f32 %v321, %v321
        %v578 = vmul.f32 %v322, %v322
        %v579 = vmul.f32 %v323, %v323
        %v580 = vmul.f32 %v324, %v324
        %v581 = vmul.f32 %v325, %v325
        %v582 = vmul.f32 %v326, %v326
        %v583 = vmul.f32 %v327, %v327
        %v584 = vmul.f32 %v328, %v328
        %v585 = vmul.f32 %v329, %v329
        %v586 = vmul.f32 %v330, %v330
        %v587 = vmul.f32 %v331, %v331
        %v588 = vmul.f32 %v332, %v332
        %v589 = vmul.f32 %v333, %v333
        %v590 = vmul.f32 %v334, %v334
        %v591 = vmul.f32 %v335, %v335
        %v592 = vmul.f32 %v336, %v336
        %v593 = vmul.f32 %v337, %v337
        %v594 = vmul.f32 %v338, %v338
        %v595 = vmul.f32 %v339, %v339
        %v596 = vmul.f32 %v340, %v340
        %v597 = vmul.f32 %v341, %v341
        %v598 = vmul.f32 %v342, %v342
        %v599 = vmul.f32 %v343, %v343
        %v600 = vmul.f32 %v344, %v344
        %v601 = vmul.f32 %v345, %v345
        %v602 = vmul.f32 %v346, %v346
        %v603 = vmul.f32 %v347, %v347
        %v604 = vmul.f32 %v348, %v348
        %v605 = vmul.f32 %v349, %v349
        %v606 = vmul.f32 %v350, %v350
        %v607 = vmul.f32 %v351, %v351
        %v608 = vmul.f32 %v352, %v352
        %v609 = vmul.f32 %v353, %v353
        %v610 = vmul.f32 %v354, %v354
        %v611 = vmul.f32 %v355, %v355
        %v612 = vmul.f32 %v356, %v356
        %v613 = vmul.f32 %v357, %v357
        %v614 = vmul.f32 %v358, %v358
        %v615 = vmul.f32 %v359, %v359
        %v616 = vmul.f32 %v360, %v360
        %v617 = vmul.f32 %v361, %v361
        %v618 = vmul.f32 %v362, %v362
        %v619 = vmul.f32 %v363, %v363
        %v620 = vmul.f32 %v364, %v364
        %v621 = vmul.f32 %v365, %v365
        %v622 = vmul.f32 %v366, %v366
        %v623 = vmul.f32 %v367, %v367
        %v624 = vmul.f32 %v368, %v368
        %v625 = vmul.f32 %v369, %v369
        %v626 = vmul.f32 %v370, %v370
        %v627 = vmul.f32 %v371, %v371
        %v628 = vmul.f32 %v372, %v372
        %v629 = vmul.f32 %v373, %v373
        %v630 = vmul.f32 %v374, %v374
        %v631 = vmul.f32 %v375, %v375
        %v632 = vmul.f32 %v376, %v376
        %v633 = vmul.f32 %v377, %v377
        %v634 = vmul.f32 %v378, %v378
        %v635 = vmul.f32 %v379, %v379
        %v636 = vmul.f32 %v380, %v380
        %v637 = vmul.f32 %v381, %v381
        %v638 = vmul.f32 %v382, %v382
        %v639 = vmul.f32 %v383, %v383
        %v640 = vmul.f32 %v384, %v384
        %v641 = vmul.f32 %v385, %v385
        %v642 = vmul.f32 %v386, %v386
        %v643 = vmul.f32 %v387, %v387
        %v644 = vmul.f32 %v388, %v388
        %v645 = vmul.f32 %v389, %v389
        %v646 = vmul.f32 %v390, %v390
        %v647 = vmul.f32 %v391, %v391
        %v648 = vmul.f32 %v392, %v392
        %v649 = vmul.f32 %v393, %v393
        %v650 = vmul.f32 %v394, %v394
        %v651 = vmul.f32 %v395, %v395
        %v652 = vmul.f32 %v396, %v396
        %v653 = vmul.f32 %v397, %v397
        %v654 = vmul.f32 %v398, %v398
        %v655 = vmul.f32 %v399, %v399
        %v656 = vmul.f32 %v400, %v400
        %v657 = vmul.f32 %v401, %v401
        %v658 = vmul.f32 %v402, %v402
        %v659 = vmul.f32 %v403, %v403
        %v660 = vmul.f32 %v404, %v404
        %v661 = vmul.f32 %v405, %v405
        %v662 = vmul.f32 %v406, %v406
        %v663 = vmul.f32 %v407, %v407
        %v664 = vmul.f32 %v408, %v408
        %v665 = vmul.f32 %v409, %v409
        %v666 = vmul.f32 %v410, %v410
        %v667 = vmul.f32 %v411, %v411
        %v668 = vmul.f32 %v412, %v412
        %v669 = vmul.f32 %v413, %v413
        %v670 = vmul.f32 %v414, %v414
        %v671 = vmul.f32 %v415, %v415
        %v672 = vmul.f32 %v416, %v416
        %v673 = vmul.f32 %v417, %v417
        %v674 = vmul.f32 %v418, %v418
        %v675 = vmul.f32 %v419, %v419
        %v676 = vmul.f32 %v420, %v420
        %v677 = vmul.f32 %v421, %v421
        %v678 = vmul.f32 %v422, %v422
        %v679 = vmul.f32 %v423, %v423
        %v680 = vmul.f32 %v424, %v424
        %v681 = vmul.f32 %v425, %v425
        %v682 = vmul.f32 %v426, %v426
        %v683 = vmul.f32 %v427, %v427
        %v684 = vmul.f32 %v428, %v428
        %v685 = vmul.f32 %v429, %v429
        %v686 = vmul.f32 %v430, %v430
        %v687 = vmul.f32 %v431, %v431
        %v688 = vmul.f32 %v432, %v432
        %v689 = vmul.f32 %v433, %v433
        %v690 = vmul.f32 %v434, %v434
        %v691 = vmul.f32 %v435, %v435
        %v692 = vmul.f32 %v436, %v436
        %v693 = vmul.f32 %v437, %v437
        %v694 = vmul.f32 %v438, %v438
        %v695 = vmul.f32 %v439, %v439
        %v696 = vmul.f32 %v440, %v440
        %v697 = vmul.f32 %v441, %v441
        %v698 = vmul.f32 %v442, %v442
        %v699 = vmul.f32 %v443, %v443
        %v700 = vmul.f32 %v444, %v444
        %v701 = vmul.f32 %v445, %v445
        %v702 = vmul.f32 %v446, %v446
        %v703 = vmul.f32 %v447, %v447
        %v704 = vmul.f32 %v448, %v448
        %v705 = vmul.f32 %v449, %v449
        %v706 = vmul.f32 %v450, %v450
        %v707 = vmul.f32 %v451, %v451
        %v708 = vmul.f32 %v452, %v452
        %v709 = vmul.f32 %v453, %v453
        %v710 = vmul.f32 %v454, %v454
        %v711 = vmul.f32 %v455, %v455
        %v712 = vmul.f32 %v456, %v456
        %v713 = vmul.f32 %v457, %v457
        %v714 = vmul.f32 %v458, %v458
        %v715 = vmul.f32 %v459, %v459
        %v716 = vmul.f32 %v460, %v460
        %v717 = vmul.f32 %v461, %v461
        %v718 = vmul.f32 %v462, %v462
        %v719 = vmul.f32 %v463, %v463
        %v720 = vmul.f32 %v464, %v464
        %v721 = vmul.f32 %v465, %v465
        %v722 = vmul.f32 %v466, %v466
        %v723 = vmul.f32 %v467, %v467
        %v724 = vmul.f32 %v468, %v468
        %v725 = vmul.f32 %v469, %v469
        %v726 = vmul.f32 %v470, %v470
        %v727 = vmul.f32 %v471, %v471
        %v728 = vmul.f32 %v472, %v472
        %v729 = vmul.f32 %v473, %v473
        %v730 = vmul.f32 %v474, %v474
        %v731 = vmul.f32 %v475, %v475
        %v732 = vmul.f32 %v476, %v476
        %v733 = vmul.f32 %v477, %v477
        %v734 = vmul.f32 %v478, %v478
        %v735 = vmul.f32 %v479, %v479
        %v736 = vmul.f32 %v480, %v480
        %v737 = vmul.f32 %v481, %v481
        %v738 = vmul.f32 %v482, %v482
        %v739 = vmul.f32 %v483, %v483
        %v740 = vmul.f32 %v484, %v484
        %v741 = vmul.f32 %v485, %v485
        %v742 = vmul.f32 %v486, %v486
        %v743 = vmul.f32 %v487, %v487
        %v744 = vmul.f32 %v488, %v488
        %v745 = vmul.f32 %v489, %v489
        %v746 = vmul.f32 %v490, %v490
        %v747 = vmul.f32 %v491, %v491
        %v748 = vmul.f32 %v492, %v492
        %v749 = vmul.f32 %v493, %v493
        %v750 = vmul.f32 %v494, %v494
        %v751 = vmul.f32 %v495, %v495
        %v752 = vmul.f32 %v496, %v496
        %v753 = vmul.f32 %v497, %v497
        %v754 = vmul.f32 %v498, %v498
        %v755 = vmul.f32 %v499, %v499
        %v756 = vmul.f32 %v500, %v500
        %v757 = vmul.f32 %v501, %v501
        %v758 = vmul.f32 %v502, %v502
        %v759 = vmul.f32 %v503, %v503
        %v760 = vmul.f32 %v504, %v504
        %v761 = vmul.f32 %v505, %v505
        %v762 = vmul.f32 %v506, %v506
        %v763 = vmul.f32 %v507, %v507
        %v764 = vmul.f32 %v508, %v508
        %v765 = vmul.f32 %v509, %v509
        %v766 = vmul.f32 %v510, %v510
        %v767 = vmul.f32 %v511, %v511
        %v768 = vmul.f32 %v512, %v512
        %v769 = vmul.f32 %v513, %v513
        %v770 = vmul.f32 %v514, %v514
        %v771 = vmul.f32 %v515, %v515
        %v772 = vmul.f32 %v516, %v516
        %v773 = vmul.f32 %v517, %v517
        %v774 = vmul.f32 %v518, %v518
        %v775 = vmul.f32 %v519, %v519
        %v776 = vmul.f32 %v520, %v520
        %v777 = vmul.f32 %v521, %v521
        %v778 = vmul.f32 %v522, %v522
        %779 = vadd.xlane.f32.xlu0 %v523
        %v780 = vpop.xlane.xlu0 %779
        %781 = vadd.xlane.f32.xlu0 %v524
        %v782 = vpop.xlane.xlu0 %781
        %783 = vadd.xlane.f32.xlu0 %v525
        %v784 = vpop.xlane.xlu0 %783
        %785 = vadd.xlane.f32.xlu0 %v526
        %v786 = vpop.xlane.xlu0 %785
        %787 = vadd.xlane.f32.xlu0 %v527
        %v788 = vpop.xlane.xlu0 %787
        %789 = vadd.xlane.f32.xlu0 %v528
        %v790 = vpop.xlane.xlu0 %789
        %791 = vadd.xlane.f32.xlu0 %v529
        %v792 = vpop.xlane.xlu0 %791
        %793 = vadd.xlane.f32.xlu0 %v530
        %v794 = vpop.xlane.xlu0 %793
        %795 = vadd.xlane.f32.xlu0 %v531
        %v796 = vpop.xlane.xlu0 %795
        %797 = vadd.xlane.f32.xlu0 %v532
        %v798 = vpop.xlane.xlu0 %797
        %799 = vadd.xlane.f32.xlu0 %v533
        %v800 = vpop.xlane.xlu0 %799
        %801 = vadd.xlane.f32.xlu0 %v534
        %v802 = vpop.xlane.xlu0 %801
        %803 = vadd.xlane.f32.xlu0 %v535
        %v804 = vpop.xlane.xlu0 %803
        %805 = vadd.xlane.f32.xlu0 %v536
        %v806 = vpop.xlane.xlu0 %805
        %807 = vadd.xlane.f32.xlu0 %v537
        %v808 = vpop.xlane.xlu0 %807
        %809 = vadd.xlane.f32.xlu0 %v538
        %v810 = vpop.xlane.xlu0 %809
        %811 = vadd.xlane.f32.xlu0 %v539
        %v812 = vpop.xlane.xlu0 %811
        %813 = vadd.xlane.f32.xlu0 %v540
        %v814 = vpop.xlane.xlu0 %813
        %815 = vadd.xlane.f32.xlu0 %v541
        %v816 = vpop.xlane.xlu0 %815
        %817 = vadd.xlane.f32.xlu0 %v542
        %v818 = vpop.xlane.xlu0 %817
        %819 = vadd.xlane.f32.xlu0 %v543
        %v820 = vpop.xlane.xlu0 %819
        %821 = vadd.xlane.f32.xlu0 %v544
        %v822 = vpop.xlane.xlu0 %821
        %823 = vadd.xlane.f32.xlu0 %v545
        %v824 = vpop.xlane.xlu0 %823
        %825 = vadd.xlane.f32.xlu0 %v546
        %v826 = vpop.xlane.xlu0 %825
        %827 = vadd.xlane.f32.xlu0 %v547
        %v828 = vpop.xlane.xlu0 %827
        %829 = vadd.xlane.f32.xlu0 %v548
        %v830 = vpop.xlane.xlu0 %829
        %831 = vadd.xlane.f32.xlu0 %v549
        %v832 = vpop.xlane.xlu0 %831
        %833 = vadd.xlane.f32.xlu0 %v550
        %v834 = vpop.xlane.xlu0 %833
        %835 = vadd.xlane.f32.xlu0 %v551
        %v836 = vpop.xlane.xlu0 %835
        %837 = vadd.xlane.f32.xlu0 %v552
        %v838 = vpop.xlane.xlu0 %837
        %839 = vadd.xlane.f32.xlu0 %v553
        %v840 = vpop.xlane.xlu0 %839
        %841 = vadd.xlane.f32.xlu0 %v554
        %v842 = vpop.xlane.xlu0 %841
        %843 = vadd.xlane.f32.xlu0 %v555
        %v844 = vpop.xlane.xlu0 %843
        %845 = vadd.xlane.f32.xlu0 %v556
        %v846 = vpop.xlane.xlu0 %845
        %847 = vadd.xlane.f32.xlu0 %v557
        %v848 = vpop.xlane.xlu0 %847
        %849 = vadd.xlane.f32.xlu0 %v558
        %v850 = vpop.xlane.xlu0 %849
        %851 = vadd.xlane.f32.xlu0 %v559
        %v852 = vpop.xlane.xlu0 %851
        %853 = vadd.xlane.f32.xlu0 %v560
        %v854 = vpop.xlane.xlu0 %853
        %855 = vadd.xlane.f32.xlu0 %v561
        %v856 = vpop.xlane.xlu0 %855
        %857 = vadd.xlane.f32.xlu0 %v562
        %v858 = vpop.xlane.xlu0 %857
        %859 = vadd.xlane.f32.xlu0 %v563
        %v860 = vpop.xlane.xlu0 %859
        %861 = vadd.xlane.f32.xlu0 %v564
        %v862 = vpop.xlane.xlu0 %861
        %863 = vadd.xlane.f32.xlu0 %v565
        %v864 = vpop.xlane.xlu0 %863
        %865 = vadd.xlane.f32.xlu0 %v566
        %v866 = vpop.xlane.xlu0 %865
        %867 = vadd.xlane.f32.xlu0 %v567
        %v868 = vpop.xlane.xlu0 %867
        %869 = vadd.xlane.f32.xlu0 %v568
        %v870 = vpop.xlane.xlu0 %869
        %871 = vadd.xlane.f32.xlu0 %v569
        %v872 = vpop.xlane.xlu0 %871
        %873 = vadd.xlane.f32.xlu0 %v570
        %v874 = vpop.xlane.xlu0 %873
        %875 = vadd.xlane.f32.xlu0 %v571
        %v876 = vpop.xlane.xlu0 %875
        %877 = vadd.xlane.f32.xlu0 %v572
        %v878 = vpop.xlane.xlu0 %877
        %879 = vadd.xlane.f32.xlu0 %v573
        %v880 = vpop.xlane.xlu0 %879
        %881 = vadd.xlane.f32.xlu0 %v574
        %v882 = vpop.xlane.xlu0 %881
        %883 = vadd.xlane.f32.xlu0 %v575
        %v884 = vpop.xlane.xlu0 %883
        %885 = vadd.xlane.f32.xlu0 %v576
        %v886 = vpop.xlane.xlu0 %885
        %887 = vadd.xlane.f32.xlu0 %v577
        %v888 = vpop.xlane.xlu0 %887
        %889 = vadd.xlane.f32.xlu0 %v578
        %v890 = vpop.xlane.xlu0 %889
        %891 = vadd.xlane.f32.xlu0 %v579
        %v892 = vpop.xlane.xlu0 %891
        %893 = vadd.xlane.f32.xlu0 %v580
        %v894 = vpop.xlane.xlu0 %893
        %895 = vadd.xlane.f32.xlu0 %v581
        %v896 = vpop.xlane.xlu0 %895
        %897 = vadd.xlane.f32.xlu0 %v582
        %v898 = vpop.xlane.xlu0 %897
        %899 = vadd.xlane.f32.xlu0 %v583
        %v900 = vpop.xlane.xlu0 %899
        %901 = vadd.xlane.f32.xlu0 %v584
        %v902 = vpop.xlane.xlu0 %901
        %903 = vadd.xlane.f32.xlu0 %v585
        %v904 = vpop.xlane.xlu0 %903
        %905 = vadd.xlane.f32.xlu0 %v586
        %v906 = vpop.xlane.xlu0 %905
        %907 = vadd.xlane.f32.xlu0 %v587
        %v908 = vpop.xlane.xlu0 %907
        %909 = vadd.xlane.f32.xlu0 %v588
        %v910 = vpop.xlane.xlu0 %909
        %911 = vadd.xlane.f32.xlu0 %v589
        %v912 = vpop.xlane.xlu0 %911
        %913 = vadd.xlane.f32.xlu0 %v590
        %v914 = vpop.xlane.xlu0 %913
        %915 = vadd.xlane.f32.xlu0 %v591
        %v916 = vpop.xlane.xlu0 %915
        %917 = vadd.xlane.f32.xlu0 %v592
        %v918 = vpop.xlane.xlu0 %917
        %919 = vadd.xlane.f32.xlu0 %v593
        %v920 = vpop.xlane.xlu0 %919
        %921 = vadd.xlane.f32.xlu0 %v594
        %v922 = vpop.xlane.xlu0 %921
        %923 = vadd.xlane.f32.xlu0 %v595
        %v924 = vpop.xlane.xlu0 %923
        %925 = vadd.xlane.f32.xlu0 %v596
        %v926 = vpop.xlane.xlu0 %925
        %927 = vadd.xlane.f32.xlu0 %v597
        %v928 = vpop.xlane.xlu0 %927
        %929 = vadd.xlane.f32.xlu0 %v598
        %v930 = vpop.xlane.xlu0 %929
        %931 = vadd.xlane.f32.xlu0 %v599
        %v932 = vpop.xlane.xlu0 %931
        %933 = vadd.xlane.f32.xlu0 %v600
        %v934 = vpop.xlane.xlu0 %933
        %935 = vadd.xlane.f32.xlu0 %v601
        %v936 = vpop.xlane.xlu0 %935
        %937 = vadd.xlane.f32.xlu0 %v602
        %v938 = vpop.xlane.xlu0 %937
        %939 = vadd.xlane.f32.xlu0 %v603
        %v940 = vpop.xlane.xlu0 %939
        %941 = vadd.xlane.f32.xlu0 %v604
        %v942 = vpop.xlane.xlu0 %941
        %943 = vadd.xlane.f32.xlu0 %v605
        %v944 = vpop.xlane.xlu0 %943
        %945 = vadd.xlane.f32.xlu0 %v606
        %v946 = vpop.xlane.xlu0 %945
        %947 = vadd.xlane.f32.xlu0 %v607
        %v948 = vpop.xlane.xlu0 %947
        %949 = vadd.xlane.f32.xlu0 %v608
        %v950 = vpop.xlane.xlu0 %949
        %951 = vadd.xlane.f32.xlu0 %v609
        %v952 = vpop.xlane.xlu0 %951
        %953 = vadd.xlane.f32.xlu0 %v610
        %v954 = vpop.xlane.xlu0 %953
        %955 = vadd.xlane.f32.xlu0 %v611
        %v956 = vpop.xlane.xlu0 %955
        %957 = vadd.xlane.f32.xlu0 %v612
        %v958 = vpop.xlane.xlu0 %957
        %959 = vadd.xlane.f32.xlu0 %v613
        %v960 = vpop.xlane.xlu0 %959
        %961 = vadd.xlane.f32.xlu0 %v614
        %v962 = vpop.xlane.xlu0 %961
        %963 = vadd.xlane.f32.xlu0 %v615
        %v964 = vpop.xlane.xlu0 %963
        %965 = vadd.xlane.f32.xlu0 %v616
        %v966 = vpop.xlane.xlu0 %965
        %967 = vadd.xlane.f32.xlu0 %v617
        %v968 = vpop.xlane.xlu0 %967
        %969 = vadd.xlane.f32.xlu0 %v618
        %v970 = vpop.xlane.xlu0 %969
        %971 = vadd.xlane.f32.xlu0 %v619
        %v972 = vpop.xlane.xlu0 %971
        %973 = vadd.xlane.f32.xlu0 %v620
        %v974 = vpop.xlane.xlu0 %973
        %975 = vadd.xlane.f32.xlu0 %v621
        %v976 = vpop.xlane.xlu0 %975
        %977 = vadd.xlane.f32.xlu0 %v622
        %v978 = vpop.xlane.xlu0 %977
        %979 = vadd.xlane.f32.xlu0 %v623
        %v980 = vpop.xlane.xlu0 %979
        %981 = vadd.xlane.f32.xlu0 %v624
        %v982 = vpop.xlane.xlu0 %981
        %983 = vadd.xlane.f32.xlu0 %v625
        %v984 = vpop.xlane.xlu0 %983
        %985 = vadd.xlane.f32.xlu0 %v626
        %v986 = vpop.xlane.xlu0 %985
        %987 = vadd.xlane.f32.xlu0 %v627
        %v988 = vpop.xlane.xlu0 %987
        %989 = vadd.xlane.f32.xlu0 %v628
        %v990 = vpop.xlane.xlu0 %989
        %991 = vadd.xlane.f32.xlu0 %v629
        %v992 = vpop.xlane.xlu0 %991
        %993 = vadd.xlane.f32.xlu0 %v630
        %v994 = vpop.xlane.xlu0 %993
        %995 = vadd.xlane.f32.xlu0 %v631
        %v996 = vpop.xlane.xlu0 %995
        %997 = vadd.xlane.f32.xlu0 %v632
        %v998 = vpop.xlane.xlu0 %997
        %999 = vadd.xlane.f32.xlu0 %v633
        %v1000 = vpop.xlane.xlu0 %999
        %1001 = vadd.xlane.f32.xlu0 %v634
        %v1002 = vpop.xlane.xlu0 %1001
        %1003 = vadd.xlane.f32.xlu0 %v635
        %v1004 = vpop.xlane.xlu0 %1003
        %1005 = vadd.xlane.f32.xlu0 %v636
        %v1006 = vpop.xlane.xlu0 %1005
        %1007 = vadd.xlane.f32.xlu0 %v637
        %v1008 = vpop.xlane.xlu0 %1007
        %1009 = vadd.xlane.f32.xlu0 %v638
        %v1010 = vpop.xlane.xlu0 %1009
        %1011 = vadd.xlane.f32.xlu0 %v639
        %v1012 = vpop.xlane.xlu0 %1011
        %1013 = vadd.xlane.f32.xlu0 %v640
        %v1014 = vpop.xlane.xlu0 %1013
        %1015 = vadd.xlane.f32.xlu0 %v641
        %v1016 = vpop.xlane.xlu0 %1015
        %1017 = vadd.xlane.f32.xlu0 %v642
        %v1018 = vpop.xlane.xlu0 %1017
        %1019 = vadd.xlane.f32.xlu0 %v643
        %v1020 = vpop.xlane.xlu0 %1019
        %1021 = vadd.xlane.f32.xlu0 %v644
        %v1022 = vpop.xlane.xlu0 %1021
        %1023 = vadd.xlane.f32.xlu0 %v645
        %v1024 = vpop.xlane.xlu0 %1023
        %1025 = vadd.xlane.f32.xlu0 %v646
        %v1026 = vpop.xlane.xlu0 %1025
        %1027 = vadd.xlane.f32.xlu0 %v647
        %v1028 = vpop.xlane.xlu0 %1027
        %1029 = vadd.xlane.f32.xlu0 %v648
        %v1030 = vpop.xlane.xlu0 %1029
        %1031 = vadd.xlane.f32.xlu0 %v649
        %v1032 = vpop.xlane.xlu0 %1031
        %1033 = vadd.xlane.f32.xlu0 %v650
        %v1034 = vpop.xlane.xlu0 %1033
        %1035 = vadd.xlane.f32.xlu0 %v651
        %v1036 = vpop.xlane.xlu0 %1035
        %1037 = vadd.xlane.f32.xlu0 %v652
        %v1038 = vpop.xlane.xlu0 %1037
        %1039 = vadd.xlane.f32.xlu0 %v653
        %v1040 = vpop.xlane.xlu0 %1039
        %1041 = vadd.xlane.f32.xlu0 %v654
        %v1042 = vpop.xlane.xlu0 %1041
        %1043 = vadd.xlane.f32.xlu0 %v655
        %v1044 = vpop.xlane.xlu0 %1043
        %1045 = vadd.xlane.f32.xlu0 %v656
        %v1046 = vpop.xlane.xlu0 %1045
        %1047 = vadd.xlane.f32.xlu0 %v657
        %v1048 = vpop.xlane.xlu0 %1047
        %1049 = vadd.xlane.f32.xlu0 %v658
        %v1050 = vpop.xlane.xlu0 %1049
        %1051 = vadd.xlane.f32.xlu0 %v659
        %v1052 = vpop.xlane.xlu0 %1051
        %1053 = vadd.xlane.f32.xlu0 %v660
        %v1054 = vpop.xlane.xlu0 %1053
        %1055 = vadd.xlane.f32.xlu0 %v661
        %v1056 = vpop.xlane.xlu0 %1055
        %1057 = vadd.xlane.f32.xlu0 %v662
        %v1058 = vpop.xlane.xlu0 %1057
        %1059 = vadd.xlane.f32.xlu0 %v663
        %v1060 = vpop.xlane.xlu0 %1059
        %1061 = vadd.xlane.f32.xlu0 %v664
        %v1062 = vpop.xlane.xlu0 %1061
        %1063 = vadd.xlane.f32.xlu0 %v665
        %v1064 = vpop.xlane.xlu0 %1063
        %1065 = vadd.xlane.f32.xlu0 %v666
        %v1066 = vpop.xlane.xlu0 %1065
        %1067 = vadd.xlane.f32.xlu0 %v667
        %v1068 = vpop.xlane.xlu0 %1067
        %1069 = vadd.xlane.f32.xlu0 %v668
        %v1070 = vpop.xlane.xlu0 %1069
        %1071 = vadd.xlane.f32.xlu0 %v669
        %v1072 = vpop.xlane.xlu0 %1071
        %1073 = vadd.xlane.f32.xlu0 %v670
        %v1074 = vpop.xlane.xlu0 %1073
        %1075 = vadd.xlane.f32.xlu0 %v671
        %v1076 = vpop.xlane.xlu0 %1075
        %1077 = vadd.xlane.f32.xlu0 %v672
        %v1078 = vpop.xlane.xlu0 %1077
        %1079 = vadd.xlane.f32.xlu0 %v673
        %v1080 = vpop.xlane.xlu0 %1079
        %1081 = vadd.xlane.f32.xlu0 %v674
        %v1082 = vpop.xlane.xlu0 %1081
        %1083 = vadd.xlane.f32.xlu0 %v675
        %v1084 = vpop.xlane.xlu0 %1083
        %1085 = vadd.xlane.f32.xlu0 %v676
        %v1086 = vpop.xlane.xlu0 %1085
        %1087 = vadd.xlane.f32.xlu0 %v677
        %v1088 = vpop.xlane.xlu0 %1087
        %1089 = vadd.xlane.f32.xlu0 %v678
        %v1090 = vpop.xlane.xlu0 %1089
        %1091 = vadd.xlane.f32.xlu0 %v679
        %v1092 = vpop.xlane.xlu0 %1091
        %1093 = vadd.xlane.f32.xlu0 %v680
        %v1094 = vpop.xlane.xlu0 %1093
        %1095 = vadd.xlane.f32.xlu0 %v681
        %v1096 = vpop.xlane.xlu0 %1095
        %1097 = vadd.xlane.f32.xlu0 %v682
        %v1098 = vpop.xlane.xlu0 %1097
        %1099 = vadd.xlane.f32.xlu0 %v683
        %v1100 = vpop.xlane.xlu0 %1099
        %1101 = vadd.xlane.f32.xlu0 %v684
        %v1102 = vpop.xlane.xlu0 %1101
        %1103 = vadd.xlane.f32.xlu0 %v685
        %v1104 = vpop.xlane.xlu0 %1103
        %1105 = vadd.xlane.f32.xlu0 %v686
        %v1106 = vpop.xlane.xlu0 %1105
        %1107 = vadd.xlane.f32.xlu0 %v687
        %v1108 = vpop.xlane.xlu0 %1107
        %1109 = vadd.xlane.f32.xlu0 %v688
        %v1110 = vpop.xlane.xlu0 %1109
        %1111 = vadd.xlane.f32.xlu0 %v689
        %v1112 = vpop.xlane.xlu0 %1111
        %1113 = vadd.xlane.f32.xlu0 %v690
        %v1114 = vpop.xlane.xlu0 %1113
        %1115 = vadd.xlane.f32.xlu0 %v691
        %v1116 = vpop.xlane.xlu0 %1115
        %1117 = vadd.xlane.f32.xlu0 %v692
        %v1118 = vpop.xlane.xlu0 %1117
        %1119 = vadd.xlane.f32.xlu0 %v693
        %v1120 = vpop.xlane.xlu0 %1119
        %1121 = vadd.xlane.f32.xlu0 %v694
        %v1122 = vpop.xlane.xlu0 %1121
        %1123 = vadd.xlane.f32.xlu0 %v695
        %v1124 = vpop.xlane.xlu0 %1123
        %1125 = vadd.xlane.f32.xlu0 %v696
        %v1126 = vpop.xlane.xlu0 %1125
        %1127 = vadd.xlane.f32.xlu0 %v697
        %v1128 = vpop.xlane.xlu0 %1127
        %1129 = vadd.xlane.f32.xlu0 %v698
        %v1130 = vpop.xlane.xlu0 %1129
        %1131 = vadd.xlane.f32.xlu0 %v699
        %v1132 = vpop.xlane.xlu0 %1131
        %1133 = vadd.xlane.f32.xlu0 %v700
        %v1134 = vpop.xlane.xlu0 %1133
        %1135 = vadd.xlane.f32.xlu0 %v701
        %v1136 = vpop.xlane.xlu0 %1135
        %1137 = vadd.xlane.f32.xlu0 %v702
        %v1138 = vpop.xlane.xlu0 %1137
        %1139 = vadd.xlane.f32.xlu0 %v703
        %v1140 = vpop.xlane.xlu0 %1139
        %1141 = vadd.xlane.f32.xlu0 %v704
        %v1142 = vpop.xlane.xlu0 %1141
        %1143 = vadd.xlane.f32.xlu0 %v705
        %v1144 = vpop.xlane.xlu0 %1143
        %1145 = vadd.xlane.f32.xlu0 %v706
        %v1146 = vpop.xlane.xlu0 %1145
        %1147 = vadd.xlane.f32.xlu0 %v707
        %v1148 = vpop.xlane.xlu0 %1147
        %1149 = vadd.xlane.f32.xlu0 %v708
        %v1150 = vpop.xlane.xlu0 %1149
        %1151 = vadd.xlane.f32.xlu0 %v709
        %v1152 = vpop.xlane.xlu0 %1151
        %1153 = vadd.xlane.f32.xlu0 %v710
        %v1154 = vpop.xlane.xlu0 %1153
        %1155 = vadd.xlane.f32.xlu0 %v711
        %v1156 = vpop.xlane.xlu0 %1155
        %1157 = vadd.xlane.f32.xlu0 %v712
        %v1158 = vpop.xlane.xlu0 %1157
        %1159 = vadd.xlane.f32.xlu0 %v713
        %v1160 = vpop.xlane.xlu0 %1159
        %1161 = vadd.xlane.f32.xlu0 %v714
        %v1162 = vpop.xlane.xlu0 %1161
        %1163 = vadd.xlane.f32.xlu0 %v715
        %v1164 = vpop.xlane.xlu0 %1163
        %1165 = vadd.xlane.f32.xlu0 %v716
        %v1166 = vpop.xlane.xlu0 %1165
        %1167 = vadd.xlane.f32.xlu0 %v717
        %v1168 = vpop.xlane.xlu0 %1167
        %1169 = vadd.xlane.f32.xlu0 %v718
        %v1170 = vpop.xlane.xlu0 %1169
        %1171 = vadd.xlane.f32.xlu0 %v719
        %v1172 = vpop.xlane.xlu0 %1171
        %1173 = vadd.xlane.f32.xlu0 %v720
        %v1174 = vpop.xlane.xlu0 %1173
        %1175 = vadd.xlane.f32.xlu0 %v721
        %v1176 = vpop.xlane.xlu0 %1175
        %1177 = vadd.xlane.f32.xlu0 %v722
        %v1178 = vpop.xlane.xlu0 %1177
        %1179 = vadd.xlane.f32.xlu0 %v723
        %v1180 = vpop.xlane.xlu0 %1179
        %1181 = vadd.xlane.f32.xlu0 %v724
        %v1182 = vpop.xlane.xlu0 %1181
        %1183 = vadd.xlane.f32.xlu0 %v725
        %v1184 = vpop.xlane.xlu0 %1183
        %1185 = vadd.xlane.f32.xlu0 %v726
        %v1186 = vpop.xlane.xlu0 %1185
        %1187 = vadd.xlane.f32.xlu0 %v727
        %v1188 = vpop.xlane.xlu0 %1187
        %1189 = vadd.xlane.f32.xlu0 %v728
        %v1190 = vpop.xlane.xlu0 %1189
        %1191 = vadd.xlane.f32.xlu0 %v729
        %v1192 = vpop.xlane.xlu0 %1191
        %1193 = vadd.xlane.f32.xlu0 %v730
        %v1194 = vpop.xlane.xlu0 %1193
        %1195 = vadd.xlane.f32.xlu0 %v731
        %v1196 = vpop.xlane.xlu0 %1195
        %1197 = vadd.xlane.f32.xlu0 %v732
        %v1198 = vpop.xlane.xlu0 %1197
        %1199 = vadd.xlane.f32.xlu0 %v733
        %v1200 = vpop.xlane.xlu0 %1199
        %1201 = vadd.xlane.f32.xlu0 %v734
        %v1202 = vpop.xlane.xlu0 %1201
        %1203 = vadd.xlane.f32.xlu0 %v735
        %v1204 = vpop.xlane.xlu0 %1203
        %1205 = vadd.xlane.f32.xlu0 %v736
        %v1206 = vpop.xlane.xlu0 %1205
        %1207 = vadd.xlane.f32.xlu0 %v737
        %v1208 = vpop.xlane.xlu0 %1207
        %1209 = vadd.xlane.f32.xlu0 %v738
        %v1210 = vpop.xlane.xlu0 %1209
        %1211 = vadd.xlane.f32.xlu0 %v739
        %v1212 = vpop.xlane.xlu0 %1211
        %1213 = vadd.xlane.f32.xlu0 %v740
        %v1214 = vpop.xlane.xlu0 %1213
        %1215 = vadd.xlane.f32.xlu0 %v741
        %v1216 = vpop.xlane.xlu0 %1215
        %1217 = vadd.xlane.f32.xlu0 %v742
        %v1218 = vpop.xlane.xlu0 %1217
        %1219 = vadd.xlane.f32.xlu0 %v743
        %v1220 = vpop.xlane.xlu0 %1219
        %1221 = vadd.xlane.f32.xlu0 %v744
        %v1222 = vpop.xlane.xlu0 %1221
        %1223 = vadd.xlane.f32.xlu0 %v745
        %v1224 = vpop.xlane.xlu0 %1223
        %1225 = vadd.xlane.f32.xlu0 %v746
        %v1226 = vpop.xlane.xlu0 %1225
        %1227 = vadd.xlane.f32.xlu0 %v747
        %v1228 = vpop.xlane.xlu0 %1227
        %1229 = vadd.xlane.f32.xlu0 %v748
        %v1230 = vpop.xlane.xlu0 %1229
        %1231 = vadd.xlane.f32.xlu0 %v749
        %v1232 = vpop.xlane.xlu0 %1231
        %1233 = vadd.xlane.f32.xlu0 %v750
        %v1234 = vpop.xlane.xlu0 %1233
        %1235 = vadd.xlane.f32.xlu0 %v751
        %v1236 = vpop.xlane.xlu0 %1235
        %1237 = vadd.xlane.f32.xlu0 %v752
        %v1238 = vpop.xlane.xlu0 %1237
        %1239 = vadd.xlane.f32.xlu0 %v753
        %v1240 = vpop.xlane.xlu0 %1239
        %1241 = vadd.xlane.f32.xlu0 %v754
        %v1242 = vpop.xlane.xlu0 %1241
        %1243 = vadd.xlane.f32.xlu0 %v755
        %v1244 = vpop.xlane.xlu0 %1243
        %1245 = vadd.xlane.f32.xlu0 %v756
        %v1246 = vpop.xlane.xlu0 %1245
        %1247 = vadd.xlane.f32.xlu0 %v757
        %v1248 = vpop.xlane.xlu0 %1247
        %1249 = vadd.xlane.f32.xlu0 %v758
        %v1250 = vpop.xlane.xlu0 %1249
        %1251 = vadd.xlane.f32.xlu0 %v759
        %v1252 = vpop.xlane.xlu0 %1251
        %1253 = vadd.xlane.f32.xlu0 %v760
        %v1254 = vpop.xlane.xlu0 %1253
        %1255 = vadd.xlane.f32.xlu0 %v761
        %v1256 = vpop.xlane.xlu0 %1255
        %1257 = vadd.xlane.f32.xlu0 %v762
        %v1258 = vpop.xlane.xlu0 %1257
        %1259 = vadd.xlane.f32.xlu0 %v763
        %v1260 = vpop.xlane.xlu0 %1259
        %1261 = vadd.xlane.f32.xlu0 %v764
        %v1262 = vpop.xlane.xlu0 %1261
        %1263 = vadd.xlane.f32.xlu0 %v765
        %v1264 = vpop.xlane.xlu0 %1263
        %1265 = vadd.xlane.f32.xlu0 %v766
        %v1266 = vpop.xlane.xlu0 %1265
        %1267 = vadd.xlane.f32.xlu0 %v767
        %v1268 = vpop.xlane.xlu0 %1267
        %1269 = vadd.xlane.f32.xlu0 %v768
        %v1270 = vpop.xlane.xlu0 %1269
        %1271 = vadd.xlane.f32.xlu0 %v769
        %v1272 = vpop.xlane.xlu0 %1271
        %1273 = vadd.xlane.f32.xlu0 %v770
        %v1274 = vpop.xlane.xlu0 %1273
        %1275 = vadd.xlane.f32.xlu0 %v771
        %v1276 = vpop.xlane.xlu0 %1275
        %1277 = vadd.xlane.f32.xlu0 %v772
        %v1278 = vpop.xlane.xlu0 %1277
        %1279 = vadd.xlane.f32.xlu0 %v773
        %v1280 = vpop.xlane.xlu0 %1279
        %1281 = vadd.xlane.f32.xlu0 %v774
        %v1282 = vpop.xlane.xlu0 %1281
        %1283 = vadd.xlane.f32.xlu0 %v775
        %v1284 = vpop.xlane.xlu0 %1283
        %1285 = vadd.xlane.f32.xlu0 %v776
        %v1286 = vpop.xlane.xlu0 %1285
        %1287 = vadd.xlane.f32.xlu0 %v777
        %v1288 = vpop.xlane.xlu0 %1287
        %1289 = vadd.xlane.f32.xlu0 %v778
        %v1290 = vpop.xlane.xlu0 %1289
        %v1291 = vmax.f32 %v780, 1e-24
        %v1292 = vmax.f32 %v782, 1e-24
        %v1293 = vmax.f32 %v784, 1e-24
        %v1294 = vmax.f32 %v786, 1e-24
        %v1295 = vmax.f32 %v788, 1e-24
        %v1296 = vmax.f32 %v790, 1e-24
        %v1297 = vmax.f32 %v792, 1e-24
        %v1298 = vmax.f32 %v794, 1e-24
        %v1299 = vmax.f32 %v796, 1e-24
        %v1300 = vmax.f32 %v798, 1e-24
        %v1301 = vmax.f32 %v800, 1e-24
        %v1302 = vmax.f32 %v802, 1e-24
        %v1303 = vmax.f32 %v804, 1e-24
        %v1304 = vmax.f32 %v806, 1e-24
        %v1305 = vmax.f32 %v808, 1e-24
        %v1306 = vmax.f32 %v810, 1e-24
        %v1307 = vmax.f32 %v812, 1e-24
        %v1308 = vmax.f32 %v814, 1e-24
        %v1309 = vmax.f32 %v816, 1e-24
        %v1310 = vmax.f32 %v818, 1e-24
        %v1311 = vmax.f32 %v820, 1e-24
        %v1312 = vmax.f32 %v822, 1e-24
        %v1313 = vmax.f32 %v824, 1e-24
        %v1314 = vmax.f32 %v826, 1e-24
        %v1315 = vmax.f32 %v828, 1e-24
        %v1316 = vmax.f32 %v830, 1e-24
        %v1317 = vmax.f32 %v832, 1e-24
        %v1318 = vmax.f32 %v834, 1e-24
        %v1319 = vmax.f32 %v836, 1e-24
        %v1320 = vmax.f32 %v838, 1e-24
        %v1321 = vmax.f32 %v840, 1e-24
        %v1322 = vmax.f32 %v842, 1e-24
        %v1323 = vmax.f32 %v844, 1e-24
        %v1324 = vmax.f32 %v846, 1e-24
        %v1325 = vmax.f32 %v848, 1e-24
        %v1326 = vmax.f32 %v850, 1e-24
        %v1327 = vmax.f32 %v852, 1e-24
        %v1328 = vmax.f32 %v854, 1e-24
        %v1329 = vmax.f32 %v856, 1e-24
        %v1330 = vmax.f32 %v858, 1e-24
        %v1331 = vmax.f32 %v860, 1e-24
        %v1332 = vmax.f32 %v862, 1e-24
        %v1333 = vmax.f32 %v864, 1e-24
        %v1334 = vmax.f32 %v866, 1e-24
        %v1335 = vmax.f32 %v868, 1e-24
        %v1336 = vmax.f32 %v870, 1e-24
        %v1337 = vmax.f32 %v872, 1e-24
        %v1338 = vmax.f32 %v874, 1e-24
        %v1339 = vmax.f32 %v876, 1e-24
        %v1340 = vmax.f32 %v878, 1e-24
        %v1341 = vmax.f32 %v880, 1e-24
        %v1342 = vmax.f32 %v882, 1e-24
        %v1343 = vmax.f32 %v884, 1e-24
        %v1344 = vmax.f32 %v886, 1e-24
        %v1345 = vmax.f32 %v888, 1e-24
        %v1346 = vmax.f32 %v890, 1e-24
        %v1347 = vmax.f32 %v892, 1e-24
        %v1348 = vmax.f32 %v894, 1e-24
        %v1349 = vmax.f32 %v896, 1e-24
        %v1350 = vmax.f32 %v898, 1e-24
        %v1351 = vmax.f32 %v900, 1e-24
        %v1352 = vmax.f32 %v902, 1e-24
        %v1353 = vmax.f32 %v904, 1e-24
        %v1354 = vmax.f32 %v906, 1e-24
        %v1355 = vmax.f32 %v908, 1e-24
        %v1356 = vmax.f32 %v910, 1e-24
        %v1357 = vmax.f32 %v912, 1e-24
        %v1358 = vmax.f32 %v914, 1e-24
        %v1359 = vmax.f32 %v916, 1e-24
        %v1360 = vmax.f32 %v918, 1e-24
        %v1361 = vmax.f32 %v920, 1e-24
        %v1362 = vmax.f32 %v922, 1e-24
        %v1363 = vmax.f32 %v924, 1e-24
        %v1364 = vmax.f32 %v926, 1e-24
        %v1365 = vmax.f32 %v928, 1e-24
        %v1366 = vmax.f32 %v930, 1e-24
        %v1367 = vmax.f32 %v932, 1e-24
        %v1368 = vmax.f32 %v934, 1e-24
        %v1369 = vmax.f32 %v936, 1e-24
        %v1370 = vmax.f32 %v938, 1e-24
        %v1371 = vmax.f32 %v940, 1e-24
        %v1372 = vmax.f32 %v942, 1e-24
        %v1373 = vmax.f32 %v944, 1e-24
        %v1374 = vmax.f32 %v946, 1e-24
        %v1375 = vmax.f32 %v948, 1e-24
        %v1376 = vmax.f32 %v950, 1e-24
        %v1377 = vmax.f32 %v952, 1e-24
        %v1378 = vmax.f32 %v954, 1e-24
        %v1379 = vmax.f32 %v956, 1e-24
        %v1380 = vmax.f32 %v958, 1e-24
        %v1381 = vmax.f32 %v960, 1e-24
        %v1382 = vmax.f32 %v962, 1e-24
        %v1383 = vmax.f32 %v964, 1e-24
        %v1384 = vmax.f32 %v966, 1e-24
        %v1385 = vmax.f32 %v968, 1e-24
        %v1386 = vmax.f32 %v970, 1e-24
        %v1387 = vmax.f32 %v972, 1e-24
        %v1388 = vmax.f32 %v974, 1e-24
        %v1389 = vmax.f32 %v976, 1e-24
        %v1390 = vmax.f32 %v978, 1e-24
        %v1391 = vmax.f32 %v980, 1e-24
        %v1392 = vmax.f32 %v982, 1e-24
        %v1393 = vmax.f32 %v984, 1e-24
        %v1394 = vmax.f32 %v986, 1e-24
        %v1395 = vmax.f32 %v988, 1e-24
        %v1396 = vmax.f32 %v990, 1e-24
        %v1397 = vmax.f32 %v992, 1e-24
        %v1398 = vmax.f32 %v994, 1e-24
        %v1399 = vmax.f32 %v996, 1e-24
        %v1400 = vmax.f32 %v998, 1e-24
        %v1401 = vmax.f32 %v1000, 1e-24
        %v1402 = vmax.f32 %v1002, 1e-24
        %v1403 = vmax.f32 %v1004, 1e-24
        %v1404 = vmax.f32 %v1006, 1e-24
        %v1405 = vmax.f32 %v1008, 1e-24
        %v1406 = vmax.f32 %v1010, 1e-24
        %v1407 = vmax.f32 %v1012, 1e-24
        %v1408 = vmax.f32 %v1014, 1e-24
        %v1409 = vmax.f32 %v1016, 1e-24
        %v1410 = vmax.f32 %v1018, 1e-24
        %v1411 = vmax.f32 %v1020, 1e-24
        %v1412 = vmax.f32 %v1022, 1e-24
        %v1413 = vmax.f32 %v1024, 1e-24
        %v1414 = vmax.f32 %v1026, 1e-24
        %v1415 = vmax.f32 %v1028, 1e-24
        %v1416 = vmax.f32 %v1030, 1e-24
        %v1417 = vmax.f32 %v1032, 1e-24
        %v1418 = vmax.f32 %v1034, 1e-24
        %v1419 = vmax.f32 %v1036, 1e-24
        %v1420 = vmax.f32 %v1038, 1e-24
        %v1421 = vmax.f32 %v1040, 1e-24
        %v1422 = vmax.f32 %v1042, 1e-24
        %v1423 = vmax.f32 %v1044, 1e-24
        %v1424 = vmax.f32 %v1046, 1e-24
        %v1425 = vmax.f32 %v1048, 1e-24
        %v1426 = vmax.f32 %v1050, 1e-24
        %v1427 = vmax.f32 %v1052, 1e-24
        %v1428 = vmax.f32 %v1054, 1e-24
        %v1429 = vmax.f32 %v1056, 1e-24
        %v1430 = vmax.f32 %v1058, 1e-24
        %v1431 = vmax.f32 %v1060, 1e-24
        %v1432 = vmax.f32 %v1062, 1e-24
        %v1433 = vmax.f32 %v1064, 1e-24
        %v1434 = vmax.f32 %v1066, 1e-24
        %v1435 = vmax.f32 %v1068, 1e-24
        %v1436 = vmax.f32 %v1070, 1e-24
        %v1437 = vmax.f32 %v1072, 1e-24
        %v1438 = vmax.f32 %v1074, 1e-24
        %v1439 = vmax.f32 %v1076, 1e-24
        %v1440 = vmax.f32 %v1078, 1e-24
        %v1441 = vmax.f32 %v1080, 1e-24
        %v1442 = vmax.f32 %v1082, 1e-24
        %v1443 = vmax.f32 %v1084, 1e-24
        %v1444 = vmax.f32 %v1086, 1e-24
        %v1445 = vmax.f32 %v1088, 1e-24
        %v1446 = vmax.f32 %v1090, 1e-24
        %v1447 = vmax.f32 %v1092, 1e-24
        %v1448 = vmax.f32 %v1094, 1e-24
        %v1449 = vmax.f32 %v1096, 1e-24
        %v1450 = vmax.f32 %v1098, 1e-24
        %v1451 = vmax.f32 %v1100, 1e-24
        %v1452 = vmax.f32 %v1102, 1e-24
        %v1453 = vmax.f32 %v1104, 1e-24
        %v1454 = vmax.f32 %v1106, 1e-24
        %v1455 = vmax.f32 %v1108, 1e-24
        %v1456 = vmax.f32 %v1110, 1e-24
        %v1457 = vmax.f32 %v1112, 1e-24
        %v1458 = vmax.f32 %v1114, 1e-24
        %v1459 = vmax.f32 %v1116, 1e-24
        %v1460 = vmax.f32 %v1118, 1e-24
        %v1461 = vmax.f32 %v1120, 1e-24
        %v1462 = vmax.f32 %v1122, 1e-24
        %v1463 = vmax.f32 %v1124, 1e-24
        %v1464 = vmax.f32 %v1126, 1e-24
        %v1465 = vmax.f32 %v1128, 1e-24
        %v1466 = vmax.f32 %v1130, 1e-24
        %v1467 = vmax.f32 %v1132, 1e-24
        %v1468 = vmax.f32 %v1134, 1e-24
        %v1469 = vmax.f32 %v1136, 1e-24
        %v1470 = vmax.f32 %v1138, 1e-24
        %v1471 = vmax.f32 %v1140, 1e-24
        %v1472 = vmax.f32 %v1142, 1e-24
        %v1473 = vmax.f32 %v1144, 1e-24
        %v1474 = vmax.f32 %v1146, 1e-24
        %v1475 = vmax.f32 %v1148, 1e-24
        %v1476 = vmax.f32 %v1150, 1e-24
        %v1477 = vmax.f32 %v1152, 1e-24
        %v1478 = vmax.f32 %v1154, 1e-24
        %v1479 = vmax.f32 %v1156, 1e-24
        %v1480 = vmax.f32 %v1158, 1e-24
        %v1481 = vmax.f32 %v1160, 1e-24
        %v1482 = vmax.f32 %v1162, 1e-24
        %v1483 = vmax.f32 %v1164, 1e-24
        %v1484 = vmax.f32 %v1166, 1e-24
        %v1485 = vmax.f32 %v1168, 1e-24
        %v1486 = vmax.f32 %v1170, 1e-24
        %v1487 = vmax.f32 %v1172, 1e-24
        %v1488 = vmax.f32 %v1174, 1e-24
        %v1489 = vmax.f32 %v1176, 1e-24
        %v1490 = vmax.f32 %v1178, 1e-24
        %v1491 = vmax.f32 %v1180, 1e-24
        %v1492 = vmax.f32 %v1182, 1e-24
        %v1493 = vmax.f32 %v1184, 1e-24
        %v1494 = vmax.f32 %v1186, 1e-24
        %v1495 = vmax.f32 %v1188, 1e-24
        %v1496 = vmax.f32 %v1190, 1e-24
        %v1497 = vmax.f32 %v1192, 1e-24
        %v1498 = vmax.f32 %v1194, 1e-24
        %v1499 = vmax.f32 %v1196, 1e-24
        %v1500 = vmax.f32 %v1198, 1e-24
        %v1501 = vmax.f32 %v1200, 1e-24
        %v1502 = vmax.f32 %v1202, 1e-24
        %v1503 = vmax.f32 %v1204, 1e-24
        %v1504 = vmax.f32 %v1206, 1e-24
        %v1505 = vmax.f32 %v1208, 1e-24
        %v1506 = vmax.f32 %v1210, 1e-24
        %v1507 = vmax.f32 %v1212, 1e-24
        %v1508 = vmax.f32 %v1214, 1e-24
        %v1509 = vmax.f32 %v1216, 1e-24
        %v1510 = vmax.f32 %v1218, 1e-24
        %v1511 = vmax.f32 %v1220, 1e-24
        %v1512 = vmax.f32 %v1222, 1e-24
        %v1513 = vmax.f32 %v1224, 1e-24
        %v1514 = vmax.f32 %v1226, 1e-24
        %v1515 = vmax.f32 %v1228, 1e-24
        %v1516 = vmax.f32 %v1230, 1e-24
        %v1517 = vmax.f32 %v1232, 1e-24
        %v1518 = vmax.f32 %v1234, 1e-24
        %v1519 = vmax.f32 %v1236, 1e-24
        %v1520 = vmax.f32 %v1238, 1e-24
        %v1521 = vmax.f32 %v1240, 1e-24
        %v1522 = vmax.f32 %v1242, 1e-24
        %v1523 = vmax.f32 %v1244, 1e-24
        %v1524 = vmax.f32 %v1246, 1e-24
        %v1525 = vmax.f32 %v1248, 1e-24
        %v1526 = vmax.f32 %v1250, 1e-24
        %v1527 = vmax.f32 %v1252, 1e-24
        %v1528 = vmax.f32 %v1254, 1e-24
        %v1529 = vmax.f32 %v1256, 1e-24
        %v1530 = vmax.f32 %v1258, 1e-24
        %v1531 = vmax.f32 %v1260, 1e-24
        %v1532 = vmax.f32 %v1262, 1e-24
        %v1533 = vmax.f32 %v1264, 1e-24
        %v1534 = vmax.f32 %v1266, 1e-24
        %v1535 = vmax.f32 %v1268, 1e-24
        %v1536 = vmax.f32 %v1270, 1e-24
        %v1537 = vmax.f32 %v1272, 1e-24
        %v1538 = vmax.f32 %v1274, 1e-24
        %v1539 = vmax.f32 %v1276, 1e-24
        %v1540 = vmax.f32 %v1278, 1e-24
        %v1541 = vmax.f32 %v1280, 1e-24
        %v1542 = vmax.f32 %v1282, 1e-24
        %v1543 = vmax.f32 %v1284, 1e-24
        %v1544 = vmax.f32 %v1286, 1e-24
        %v1545 = vmax.f32 %v1288, 1e-24
        %v1546 = vmax.f32 %v1290, 1e-24
        %v1547 = vrsqrt.pop %v1291
        %v1548 = vrsqrt.pop %v1292
        %v1549 = vrsqrt.pop %v1293
        %v1550 = vrsqrt.pop %v1294
        %v1551 = vrsqrt.pop %v1295
        %v1552 = vrsqrt.pop %v1296
        %v1553 = vrsqrt.pop %v1297
        %v1554 = vrsqrt.pop %v1298
        %v1555 = vrsqrt.pop %v1299
        %v1556 = vrsqrt.pop %v1300
        %v1557 = vrsqrt.pop %v1301
        %v1558 = vrsqrt.pop %v1302
        %v1559 = vrsqrt.pop %v1303
        %v1560 = vrsqrt.pop %v1304
        %v1561 = vrsqrt.pop %v1305
        %v1562 = vrsqrt.pop %v1306
        %v1563 = vrsqrt.pop %v1307
        %v1564 = vrsqrt.pop %v1308
        %v1565 = vrsqrt.pop %v1309
        %v1566 = vrsqrt.pop %v1310
        %v1567 = vrsqrt.pop %v1311
        %v1568 = vrsqrt.pop %v1312
        %v1569 = vrsqrt.pop %v1313
        %v1570 = vrsqrt.pop %v1314
        %v1571 = vrsqrt.pop %v1315
        %v1572 = vrsqrt.pop %v1316
        %v1573 = vrsqrt.pop %v1317
        %v1574 = vrsqrt.pop %v1318
        %v1575 = vrsqrt.pop %v1319
        %v1576 = vrsqrt.pop %v1320
        %v1577 = vrsqrt.pop %v1321
        %v1578 = vrsqrt.pop %v1322
        %v1579 = vrsqrt.pop %v1323
        %v1580 = vrsqrt.pop %v1324
        %v1581 = vrsqrt.pop %v1325
        %v1582 = vrsqrt.pop %v1326
        %v1583 = vrsqrt.pop %v1327
        %v1584 = vrsqrt.pop %v1328
        %v1585 = vrsqrt.pop %v1329
        %v1586 = vrsqrt.pop %v1330
        %v1587 = vrsqrt.pop %v1331
        %v1588 = vrsqrt.pop %v1332
        %v1589 = vrsqrt.pop %v1333
        %v1590 = vrsqrt.pop %v1334
        %v1591 = vrsqrt.pop %v1335
        %v1592 = vrsqrt.pop %v1336
        %v1593 = vrsqrt.pop %v1337
        %v1594 = vrsqrt.pop %v1338
        %v1595 = vrsqrt.pop %v1339
        %v1596 = vrsqrt.pop %v1340
        %v1597 = vrsqrt.pop %v1341
        %v1598 = vrsqrt.pop %v1342
        %v1599 = vrsqrt.pop %v1343
        %v1600 = vrsqrt.pop %v1344
        %v1601 = vrsqrt.pop %v1345
        %v1602 = vrsqrt.pop %v1346
        %v1603 = vrsqrt.pop %v1347
        %v1604 = vrsqrt.pop %v1348
        %v1605 = vrsqrt.pop %v1349
        %v1606 = vrsqrt.pop %v1350
        %v1607 = vrsqrt.pop %v1351
        %v1608 = vrsqrt.pop %v1352
        %v1609 = vrsqrt.pop %v1353
        %v1610 = vrsqrt.pop %v1354
        %v1611 = vrsqrt.pop %v1355
        %v1612 = vrsqrt.pop %v1356
        %v1613 = vrsqrt.pop %v1357
        %v1614 = vrsqrt.pop %v1358
        %v1615 = vrsqrt.pop %v1359
        %v1616 = vrsqrt.pop %v1360
        %v1617 = vrsqrt.pop %v1361
        %v1618 = vrsqrt.pop %v1362
        %v1619 = vrsqrt.pop %v1363
        %v1620 = vrsqrt.pop %v1364
        %v1621 = vrsqrt.pop %v1365
        %v1622 = vrsqrt.pop %v1366
        %v1623 = vrsqrt.pop %v1367
        %v1624 = vrsqrt.pop %v1368
        %v1625 = vrsqrt.pop %v1369
        %v1626 = vrsqrt.pop %v1370
        %v1627 = vrsqrt.pop %v1371
        %v1628 = vrsqrt.pop %v1372
        %v1629 = vrsqrt.pop %v1373
        %v1630 = vrsqrt.pop %v1374
        %v1631 = vrsqrt.pop %v1375
        %v1632 = vrsqrt.pop %v1376
        %v1633 = vrsqrt.pop %v1377
        %v1634 = vrsqrt.pop %v1378
        %v1635 = vrsqrt.pop %v1379
        %v1636 = vrsqrt.pop %v1380
        %v1637 = vrsqrt.pop %v1381
        %v1638 = vrsqrt.pop %v1382
        %v1639 = vrsqrt.pop %v1383
        %v1640 = vrsqrt.pop %v1384
        %v1641 = vrsqrt.pop %v1385
        %v1642 = vrsqrt.pop %v1386
        %v1643 = vrsqrt.pop %v1387
        %v1644 = vrsqrt.pop %v1388
        %v1645 = vrsqrt.pop %v1389
        %v1646 = vrsqrt.pop %v1390
        %v1647 = vrsqrt.pop %v1391
        %v1648 = vrsqrt.pop %v1392
        %v1649 = vrsqrt.pop %v1393
        %v1650 = vrsqrt.pop %v1394
        %v1651 = vrsqrt.pop %v1395
        %v1652 = vrsqrt.pop %v1396
        %v1653 = vrsqrt.pop %v1397
        %v1654 = vrsqrt.pop %v1398
        %v1655 = vrsqrt.pop %v1399
        %v1656 = vrsqrt.pop %v1400
        %v1657 = vrsqrt.pop %v1401
        %v1658 = vrsqrt.pop %v1402
        %v1659 = vrsqrt.pop %v1403
        %v1660 = vrsqrt.pop %v1404
        %v1661 = vrsqrt.pop %v1405
        %v1662 = vrsqrt.pop %v1406
        %v1663 = vrsqrt.pop %v1407
        %v1664 = vrsqrt.pop %v1408
        %v1665 = vrsqrt.pop %v1409
        %v1666 = vrsqrt.pop %v1410
        %v1667 = vrsqrt.pop %v1411
        %v1668 = vrsqrt.pop %v1412
        %v1669 = vrsqrt.pop %v1413
        %v1670 = vrsqrt.pop %v1414
        %v1671 = vrsqrt.pop %v1415
        %v1672 = vrsqrt.pop %v1416
        %v1673 = vrsqrt.pop %v1417
        %v1674 = vrsqrt.pop %v1418
        %v1675 = vrsqrt.pop %v1419
        %v1676 = vrsqrt.pop %v1420
        %v1677 = vrsqrt.pop %v1421
        %v1678 = vrsqrt.pop %v1422
        %v1679 = vrsqrt.pop %v1423
        %v1680 = vrsqrt.pop %v1424
        %v1681 = vrsqrt.pop %v1425
        %v1682 = vrsqrt.pop %v1426
        %v1683 = vrsqrt.pop %v1427
        %v1684 = vrsqrt.pop %v1428
        %v1685 = vrsqrt.pop %v1429
        %v1686 = vrsqrt.pop %v1430
        %v1687 = vrsqrt.pop %v1431
        %v1688 = vrsqrt.pop %v1432
        %v1689 = vrsqrt.pop %v1433
        %v1690 = vrsqrt.pop %v1434
        %v1691 = vrsqrt.pop %v1435
        %v1692 = vrsqrt.pop %v1436
        %v1693 = vrsqrt.pop %v1437
        %v1694 = vrsqrt.pop %v1438
        %v1695 = vrsqrt.pop %v1439
        %v1696 = vrsqrt.pop %v1440
        %v1697 = vrsqrt.pop %v1441
        %v1698 = vrsqrt.pop %v1442
        %v1699 = vrsqrt.pop %v1443
        %v1700 = vrsqrt.pop %v1444
        %v1701 = vrsqrt.pop %v1445
        %v1702 = vrsqrt.pop %v1446
        %v1703 = vrsqrt.pop %v1447
        %v1704 = vrsqrt.pop %v1448
        %v1705 = vrsqrt.pop %v1449
        %v1706 = vrsqrt.pop %v1450
        %v1707 = vrsqrt.pop %v1451
        %v1708 = vrsqrt.pop %v1452
        %v1709 = vrsqrt.pop %v1453
        %v1710 = vrsqrt.pop %v1454
        %v1711 = vrsqrt.pop %v1455
        %v1712 = vrsqrt.pop %v1456
        %v1713 = vrsqrt.pop %v1457
        %v1714 = vrsqrt.pop %v1458
        %v1715 = vrsqrt.pop %v1459
        %v1716 = vrsqrt.pop %v1460
        %v1717 = vrsqrt.pop %v1461
        %v1718 = vrsqrt.pop %v1462
        %v1719 = vrsqrt.pop %v1463
        %v1720 = vrsqrt.pop %v1464
        %v1721 = vrsqrt.pop %v1465
        %v1722 = vrsqrt.pop %v1466
        %v1723 = vrsqrt.pop %v1467
        %v1724 = vrsqrt.pop %v1468
        %v1725 = vrsqrt.pop %v1469
        %v1726 = vrsqrt.pop %v1470
        %v1727 = vrsqrt.pop %v1471
        %v1728 = vrsqrt.pop %v1472
        %v1729 = vrsqrt.pop %v1473
        %v1730 = vrsqrt.pop %v1474
        %v1731 = vrsqrt.pop %v1475
        %v1732 = vrsqrt.pop %v1476
        %v1733 = vrsqrt.pop %v1477
        %v1734 = vrsqrt.pop %v1478
        %v1735 = vrsqrt.pop %v1479
        %v1736 = vrsqrt.pop %v1480
        %v1737 = vrsqrt.pop %v1481
        %v1738 = vrsqrt.pop %v1482
        %v1739 = vrsqrt.pop %v1483
        %v1740 = vrsqrt.pop %v1484
        %v1741 = vrsqrt.pop %v1485
        %v1742 = vrsqrt.pop %v1486
        %v1743 = vrsqrt.pop %v1487
        %v1744 = vrsqrt.pop %v1488
        %v1745 = vrsqrt.pop %v1489
        %v1746 = vrsqrt.pop %v1490
        %v1747 = vrsqrt.pop %v1491
        %v1748 = vrsqrt.pop %v1492
        %v1749 = vrsqrt.pop %v1493
        %v1750 = vrsqrt.pop %v1494
        %v1751 = vrsqrt.pop %v1495
        %v1752 = vrsqrt.pop %v1496
        %v1753 = vrsqrt.pop %v1497
        %v1754 = vrsqrt.pop %v1498
        %v1755 = vrsqrt.pop %v1499
        %v1756 = vrsqrt.pop %v1500
        %v1757 = vrsqrt.pop %v1501
        %v1758 = vrsqrt.pop %v1502
        %v1759 = vrsqrt.pop %v1503
        %v1760 = vrsqrt.pop %v1504
        %v1761 = vrsqrt.pop %v1505
        %v1762 = vrsqrt.pop %v1506
        %v1763 = vrsqrt.pop %v1507
        %v1764 = vrsqrt.pop %v1508
        %v1765 = vrsqrt.pop %v1509
        %v1766 = vrsqrt.pop %v1510
        %v1767 = vrsqrt.pop %v1511
        %v1768 = vrsqrt.pop %v1512
        %v1769 = vrsqrt.pop %v1513
        %v1770 = vrsqrt.pop %v1514
        %v1771 = vrsqrt.pop %v1515
        %v1772 = vrsqrt.pop %v1516
        %v1773 = vrsqrt.pop %v1517
        %v1774 = vrsqrt.pop %v1518
        %v1775 = vrsqrt.pop %v1519
        %v1776 = vrsqrt.pop %v1520
        %v1777 = vrsqrt.pop %v1521
        %v1778 = vrsqrt.pop %v1522
        %v1779 = vrsqrt.pop %v1523
        %v1780 = vrsqrt.pop %v1524
        %v1781 = vrsqrt.pop %v1525
        %v1782 = vrsqrt.pop %v1526
        %v1783 = vrsqrt.pop %v1527
        %v1784 = vrsqrt.pop %v1528
        %v1785 = vrsqrt.pop %v1529
        %v1786 = vrsqrt.pop %v1530
        %v1787 = vrsqrt.pop %v1531
        %v1788 = vrsqrt.pop %v1532
        %v1789 = vrsqrt.pop %v1533
        %v1790 = vrsqrt.pop %v1534
        %v1791 = vrsqrt.pop %v1535
        %v1792 = vrsqrt.pop %v1536
        %v1793 = vrsqrt.pop %v1537
        %v1794 = vrsqrt.pop %v1538
        %v1795 = vrsqrt.pop %v1539
        %v1796 = vrsqrt.pop %v1540
        %v1797 = vrsqrt.pop %v1541
        %v1798 = vrsqrt.pop %v1542
        %v1799 = vrsqrt.pop %v1543
        %v1800 = vrsqrt.pop %v1544
        %v1801 = vrsqrt.pop %v1545
        %v1802 = vrsqrt.pop %v1546
        %v1803 = vmul.f32 %v267, %v1547
        %v1804 = vmul.f32 %v268, %v1548
        %v1805 = vmul.f32 %v269, %v1549
        %v1806 = vmul.f32 %v270, %v1550
        %v1807 = vmul.f32 %v271, %v1551
        %v1808 = vmul.f32 %v272, %v1552
        %v1809 = vmul.f32 %v273, %v1553
        %v1810 = vmul.f32 %v274, %v1554
        %v1811 = vmul.f32 %v275, %v1555
        %v1812 = vmul.f32 %v276, %v1556
        %v1813 = vmul.f32 %v277, %v1557
        %v1814 = vmul.f32 %v278, %v1558
        %v1815 = vmul.f32 %v279, %v1559
        %v1816 = vmul.f32 %v280, %v1560
        %v1817 = vmul.f32 %v281, %v1561
        %v1818 = vmul.f32 %v282, %v1562
        %v1819 = vmul.f32 %v283, %v1563
        %v1820 = vmul.f32 %v284, %v1564
        %v1821 = vmul.f32 %v285, %v1565
        %v1822 = vmul.f32 %v286, %v1566
        %v1823 = vmul.f32 %v287, %v1567
        %v1824 = vmul.f32 %v288, %v1568
        %v1825 = vmul.f32 %v289, %v1569
        %v1826 = vmul.f32 %v290, %v1570
        %v1827 = vmul.f32 %v291, %v1571
        %v1828 = vmul.f32 %v292, %v1572
        %v1829 = vmul.f32 %v293, %v1573
        %v1830 = vmul.f32 %v294, %v1574
        %v1831 = vmul.f32 %v295, %v1575
        %v1832 = vmul.f32 %v296, %v1576
        %v1833 = vmul.f32 %v297, %v1577
        %v1834 = vmul.f32 %v298, %v1578
        %v1835 = vmul.f32 %v299, %v1579
        %v1836 = vmul.f32 %v300, %v1580
        %v1837 = vmul.f32 %v301, %v1581
        %v1838 = vmul.f32 %v302, %v1582
        %v1839 = vmul.f32 %v303, %v1583
        %v1840 = vmul.f32 %v304, %v1584
        %v1841 = vmul.f32 %v305, %v1585
        %v1842 = vmul.f32 %v306, %v1586
        %v1843 = vmul.f32 %v307, %v1587
        %v1844 = vmul.f32 %v308, %v1588
        %v1845 = vmul.f32 %v309, %v1589
        %v1846 = vmul.f32 %v310, %v1590
        %v1847 = vmul.f32 %v311, %v1591
        %v1848 = vmul.f32 %v312, %v1592
        %v1849 = vmul.f32 %v313, %v1593
        %v1850 = vmul.f32 %v314, %v1594
        %v1851 = vmul.f32 %v315, %v1595
        %v1852 = vmul.f32 %v316, %v1596
        %v1853 = vmul.f32 %v317, %v1597
        %v1854 = vmul.f32 %v318, %v1598
        %v1855 = vmul.f32 %v319, %v1599
        %v1856 = vmul.f32 %v320, %v1600
        %v1857 = vmul.f32 %v321, %v1601
        %v1858 = vmul.f32 %v322, %v1602
        %v1859 = vmul.f32 %v323, %v1603
        %v1860 = vmul.f32 %v324, %v1604
        %v1861 = vmul.f32 %v325, %v1605
        %v1862 = vmul.f32 %v326, %v1606
        %v1863 = vmul.f32 %v327, %v1607
        %v1864 = vmul.f32 %v328, %v1608
        %v1865 = vmul.f32 %v329, %v1609
        %v1866 = vmul.f32 %v330, %v1610
        %v1867 = vmul.f32 %v331, %v1611
        %v1868 = vmul.f32 %v332, %v1612
        %v1869 = vmul.f32 %v333, %v1613
        %v1870 = vmul.f32 %v334, %v1614
        %v1871 = vmul.f32 %v335, %v1615
        %v1872 = vmul.f32 %v336, %v1616
        %v1873 = vmul.f32 %v337, %v1617
        %v1874 = vmul.f32 %v338, %v1618
        %v1875 = vmul.f32 %v339, %v1619
        %v1876 = vmul.f32 %v340, %v1620
        %v1877 = vmul.f32 %v341, %v1621
        %v1878 = vmul.f32 %v342, %v1622
        %v1879 = vmul.f32 %v343, %v1623
        %v1880 = vmul.f32 %v344, %v1624
        %v1881 = vmul.f32 %v345, %v1625
        %v1882 = vmul.f32 %v346, %v1626
        %v1883 = vmul.f32 %v347, %v1627
        %v1884 = vmul.f32 %v348, %v1628
        %v1885 = vmul.f32 %v349, %v1629
        %v1886 = vmul.f32 %v350, %v1630
        %v1887 = vmul.f32 %v351, %v1631
        %v1888 = vmul.f32 %v352, %v1632
        %v1889 = vmul.f32 %v353, %v1633
        %v1890 = vmul.f32 %v354, %v1634
        %v1891 = vmul.f32 %v355, %v1635
        %v1892 = vmul.f32 %v356, %v1636
        %v1893 = vmul.f32 %v357, %v1637
        %v1894 = vmul.f32 %v358, %v1638
        %v1895 = vmul.f32 %v359, %v1639
        %v1896 = vmul.f32 %v360, %v1640
        %v1897 = vmul.f32 %v361, %v1641
        %v1898 = vmul.f32 %v362, %v1642
        %v1899 = vmul.f32 %v363, %v1643
        %v1900 = vmul.f32 %v364, %v1644
        %v1901 = vmul.f32 %v365, %v1645
        %v1902 = vmul.f32 %v366, %v1646
        %v1903 = vmul.f32 %v367, %v1647
        %v1904 = vmul.f32 %v368, %v1648
        %v1905 = vmul.f32 %v369, %v1649
        %v1906 = vmul.f32 %v370, %v1650
        %v1907 = vmul.f32 %v371, %v1651
        %v1908 = vmul.f32 %v372, %v1652
        %v1909 = vmul.f32 %v373, %v1653
        %v1910 = vmul.f32 %v374, %v1654
        %v1911 = vmul.f32 %v375, %v1655
        %v1912 = vmul.f32 %v376, %v1656
        %v1913 = vmul.f32 %v377, %v1657
        %v1914 = vmul.f32 %v378, %v1658
        %v1915 = vmul.f32 %v379, %v1659
        %v1916 = vmul.f32 %v380, %v1660
        %v1917 = vmul.f32 %v381, %v1661
        %v1918 = vmul.f32 %v382, %v1662
        %v1919 = vmul.f32 %v383, %v1663
        %v1920 = vmul.f32 %v384, %v1664
        %v1921 = vmul.f32 %v385, %v1665
        %v1922 = vmul.f32 %v386, %v1666
        %v1923 = vmul.f32 %v387, %v1667
        %v1924 = vmul.f32 %v388, %v1668
        %v1925 = vmul.f32 %v389, %v1669
        %v1926 = vmul.f32 %v390, %v1670
        %v1927 = vmul.f32 %v391, %v1671
        %v1928 = vmul.f32 %v392, %v1672
        %v1929 = vmul.f32 %v393, %v1673
        %v1930 = vmul.f32 %v394, %v1674
        %v1931 = vmul.f32 %v395, %v1675
        %v1932 = vmul.f32 %v396, %v1676
        %v1933 = vmul.f32 %v397, %v1677
        %v1934 = vmul.f32 %v398, %v1678
        %v1935 = vmul.f32 %v399, %v1679
        %v1936 = vmul.f32 %v400, %v1680
        %v1937 = vmul.f32 %v401, %v1681
        %v1938 = vmul.f32 %v402, %v1682
        %v1939 = vmul.f32 %v403, %v1683
        %v1940 = vmul.f32 %v404, %v1684
        %v1941 = vmul.f32 %v405, %v1685
        %v1942 = vmul.f32 %v406, %v1686
        %v1943 = vmul.f32 %v407, %v1687
        %v1944 = vmul.f32 %v408, %v1688
        %v1945 = vmul.f32 %v409, %v1689
        %v1946 = vmul.f32 %v410, %v1690
        %v1947 = vmul.f32 %v411, %v1691
        %v1948 = vmul.f32 %v412, %v1692
        %v1949 = vmul.f32 %v413, %v1693
        %v1950 = vmul.f32 %v414, %v1694
        %v1951 = vmul.f32 %v415, %v1695
        %v1952 = vmul.f32 %v416, %v1696
        %v1953 = vmul.f32 %v417, %v1697
        %v1954 = vmul.f32 %v418, %v1698
        %v1955 = vmul.f32 %v419, %v1699
        %v1956 = vmul.f32 %v420, %v1700
        %v1957 = vmul.f32 %v421, %v1701
        %v1958 = vmul.f32 %v422, %v1702
        %v1959 = vmul.f32 %v423, %v1703
        %v1960 = vmul.f32 %v424, %v1704
        %v1961 = vmul.f32 %v425, %v1705
        %v1962 = vmul.f32 %v426, %v1706
        %v1963 = vmul.f32 %v427, %v1707
        %v1964 = vmul.f32 %v428, %v1708
        %v1965 = vmul.f32 %v429, %v1709
        %v1966 = vmul.f32 %v430, %v1710
        %v1967 = vmul.f32 %v431, %v1711
        %v1968 = vmul.f32 %v432, %v1712
        %v1969 = vmul.f32 %v433, %v1713
        %v1970 = vmul.f32 %v434, %v1714
        %v1971 = vmul.f32 %v435, %v1715
        %v1972 = vmul.f32 %v436, %v1716
        %v1973 = vmul.f32 %v437, %v1717
        %v1974 = vmul.f32 %v438, %v1718
        %v1975 = vmul.f32 %v439, %v1719
        %v1976 = vmul.f32 %v440, %v1720
        %v1977 = vmul.f32 %v441, %v1721
        %v1978 = vmul.f32 %v442, %v1722
        %v1979 = vmul.f32 %v443, %v1723
        %v1980 = vmul.f32 %v444, %v1724
        %v1981 = vmul.f32 %v445, %v1725
        %v1982 = vmul.f32 %v446, %v1726
        %v1983 = vmul.f32 %v447, %v1727
        %v1984 = vmul.f32 %v448, %v1728
        %v1985 = vmul.f32 %v449, %v1729
        %v1986 = vmul.f32 %v450, %v1730
        %v1987 = vmul.f32 %v451, %v1731
        %v1988 = vmul.f32 %v452, %v1732
        %v1989 = vmul.f32 %v453, %v1733
        %v1990 = vmul.f32 %v454, %v1734
        %v1991 = vmul.f32 %v455, %v1735
        %v1992 = vmul.f32 %v456, %v1736
        %v1993 = vmul.f32 %v457, %v1737
        %v1994 = vmul.f32 %v458, %v1738
        %v1995 = vmul.f32 %v459, %v1739
        %v1996 = vmul.f32 %v460, %v1740
        %v1997 = vmul.f32 %v461, %v1741
        %v1998 = vmul.f32 %v462, %v1742
        %v1999 = vmul.f32 %v463, %v1743
        %v2000 = vmul.f32 %v464, %v1744
        %v2001 = vmul.f32 %v465, %v1745
        %v2002 = vmul.f32 %v466, %v1746
        %v2003 = vmul.f32 %v467, %v1747
        %v2004 = vmul.f32 %v468, %v1748
        %v2005 = vmul.f32 %v469, %v1749
        %v2006 = vmul.f32 %v470, %v1750
        %v2007 = vmul.f32 %v471, %v1751
        %v2008 = vmul.f32 %v472, %v1752
        %v2009 = vmul.f32 %v473, %v1753
        %v2010 = vmul.f32 %v474, %v1754
        %v2011 = vmul.f32 %v475, %v1755
        %v2012 = vmul.f32 %v476, %v1756
        %v2013 = vmul.f32 %v477, %v1757
        %v2014 = vmul.f32 %v478, %v1758
        %v2015 = vmul.f32 %v479, %v1759
        %v2016 = vmul.f32 %v480, %v1760
        %v2017 = vmul.f32 %v481, %v1761
        %v2018 = vmul.f32 %v482, %v1762
        %v2019 = vmul.f32 %v483, %v1763
        %v2020 = vmul.f32 %v484, %v1764
        %v2021 = vmul.f32 %v485, %v1765
        %v2022 = vmul.f32 %v486, %v1766
        %v2023 = vmul.f32 %v487, %v1767
        %v2024 = vmul.f32 %v488, %v1768
        %v2025 = vmul.f32 %v489, %v1769
        %v2026 = vmul.f32 %v490, %v1770
        %v2027 = vmul.f32 %v491, %v1771
        %v2028 = vmul.f32 %v492, %v1772
        %v2029 = vmul.f32 %v493, %v1773
        %v2030 = vmul.f32 %v494, %v1774
        %v2031 = vmul.f32 %v495, %v1775
        %v2032 = vmul.f32 %v496, %v1776
        %v2033 = vmul.f32 %v497, %v1777
        %v2034 = vmul.f32 %v498, %v1778
        %v2035 = vmul.f32 %v499, %v1779
        %v2036 = vmul.f32 %v500, %v1780
        %v2037 = vmul.f32 %v501, %v1781
        %v2038 = vmul.f32 %v502, %v1782
        %v2039 = vmul.f32 %v503, %v1783
        %v2040 = vmul.f32 %v504, %v1784
        %v2041 = vmul.f32 %v505, %v1785
        %v2042 = vmul.f32 %v506, %v1786
        %v2043 = vmul.f32 %v507, %v1787
        %v2044 = vmul.f32 %v508, %v1788
        %v2045 = vmul.f32 %v509, %v1789
        %v2046 = vmul.f32 %v510, %v1790
        %v2047 = vmul.f32 %v511, %v1791
        %v2048 = vmul.f32 %v512, %v1792
        %v2049 = vmul.f32 %v513, %v1793
        %v2050 = vmul.f32 %v514, %v1794
        %v2051 = vmul.f32 %v515, %v1795
        %v2052 = vmul.f32 %v516, %v1796
        %v2053 = vmul.f32 %v517, %v1797
        %v2054 = vmul.f32 %v518, %v1798
        %v2055 = vmul.f32 %v519, %v1799
        %v2056 = vmul.f32 %v520, %v1800
        %v2057 = vmul.f32 %v521, %v1801
        %v2058 = vmul.f32 %v522, %v1802
        %v2059 = vpack.c.bf16 %v1804, %v1803
        %v2060 = vpack.c.bf16 %v1806, %v1805
        %v2061 = vpack.c.bf16 %v1808, %v1807
        %v2062 = vpack.c.bf16 %v1810, %v1809
        %v2063 = vpack.c.bf16 %v1812, %v1811
        %v2064 = vpack.c.bf16 %v1814, %v1813
        %v2065 = vpack.c.bf16 %v1816, %v1815
        %v2066 = vpack.c.bf16 %v1818, %v1817
        %v2067 = vpack.c.bf16 %v1820, %v1819
        %v2068 = vpack.c.bf16 %v1822, %v1821
        %v2069 = vpack.c.bf16 %v1824, %v1823
        %v2070 = vpack.c.bf16 %v1826, %v1825
        %v2071 = vpack.c.bf16 %v1828, %v1827
        %v2072 = vpack.c.bf16 %v1830, %v1829
        %v2073 = vpack.c.bf16 %v1832, %v1831
        %v2074 = vpack.c.bf16 %v1834, %v1833
        %v2075 = vpack.c.bf16 %v1836, %v1835
        %v2076 = vpack.c.bf16 %v1838, %v1837
        %v2077 = vpack.c.bf16 %v1840, %v1839
        %v2078 = vpack.c.bf16 %v1842, %v1841
        %v2079 = vpack.c.bf16 %v1844, %v1843
        %v2080 = vpack.c.bf16 %v1846, %v1845
        %v2081 = vpack.c.bf16 %v1848, %v1847
        %v2082 = vpack.c.bf16 %v1850, %v1849
        %v2083 = vpack.c.bf16 %v1852, %v1851
        %v2084 = vpack.c.bf16 %v1854, %v1853
        %v2085 = vpack.c.bf16 %v1856, %v1855
        %v2086 = vpack.c.bf16 %v1858, %v1857
        %v2087 = vpack.c.bf16 %v1860, %v1859
        %v2088 = vpack.c.bf16 %v1862, %v1861
        %v2089 = vpack.c.bf16 %v1864, %v1863
        %v2090 = vpack.c.bf16 %v1866, %v1865
        %v2091 = vpack.c.bf16 %v1868, %v1867
        %v2092 = vpack.c.bf16 %v1870, %v1869
        %v2093 = vpack.c.bf16 %v1872, %v1871
        %v2094 = vpack.c.bf16 %v1874, %v1873
        %v2095 = vpack.c.bf16 %v1876, %v1875
        %v2096 = vpack.c.bf16 %v1878, %v1877
        %v2097 = vpack.c.bf16 %v1880, %v1879
        %v2098 = vpack.c.bf16 %v1882, %v1881
        %v2099 = vpack.c.bf16 %v1884, %v1883
        %v2100 = vpack.c.bf16 %v1886, %v1885
        %v2101 = vpack.c.bf16 %v1888, %v1887
        %v2102 = vpack.c.bf16 %v1890, %v1889
        %v2103 = vpack.c.bf16 %v1892, %v1891
        %v2104 = vpack.c.bf16 %v1894, %v1893
        %v2105 = vpack.c.bf16 %v1896, %v1895
        %v2106 = vpack.c.bf16 %v1898, %v1897
        %v2107 = vpack.c.bf16 %v1900, %v1899
        %v2108 = vpack.c.bf16 %v1902, %v1901
        %v2109 = vpack.c.bf16 %v1904, %v1903
        %v2110 = vpack.c.bf16 %v1906, %v1905
        %v2111 = vpack.c.bf16 %v1908, %v1907
        %v2112 = vpack.c.bf16 %v1910, %v1909
        %v2113 = vpack.c.bf16 %v1912, %v1911
        %v2114 = vpack.c.bf16 %v1914, %v1913
        %v2115 = vpack.c.bf16 %v1916, %v1915
        %v2116 = vpack.c.bf16 %v1918, %v1917
        %v2117 = vpack.c.bf16 %v1920, %v1919
        %v2118 = vpack.c.bf16 %v1922, %v1921
        %v2119 = vpack.c.bf16 %v1924, %v1923
        %v2120 = vpack.c.bf16 %v1926, %v1925
        %v2121 = vpack.c.bf16 %v1928, %v1927
        %v2122 = vpack.c.bf16 %v1930, %v1929
        %v2123 = vpack.c.bf16 %v1932, %v1931
        %v2124 = vpack.c.bf16 %v1934, %v1933
        %v2125 = vpack.c.bf16 %v1936, %v1935
        %v2126 = vpack.c.bf16 %v1938, %v1937
        %v2127 = vpack.c.bf16 %v1940, %v1939
        %v2128 = vpack.c.bf16 %v1942, %v1941
        %v2129 = vpack.c.bf16 %v1944, %v1943
        %v2130 = vpack.c.bf16 %v1946, %v1945
        %v2131 = vpack.c.bf16 %v1948, %v1947
        %v2132 = vpack.c.bf16 %v1950, %v1949
        %v2133 = vpack.c.bf16 %v1952, %v1951
        %v2134 = vpack.c.bf16 %v1954, %v1953
        %v2135 = vpack.c.bf16 %v1956, %v1955
        %v2136 = vpack.c.bf16 %v1958, %v1957
        %v2137 = vpack.c.bf16 %v1960, %v1959
        %v2138 = vpack.c.bf16 %v1962, %v1961
        %v2139 = vpack.c.bf16 %v1964, %v1963
        %v2140 = vpack.c.bf16 %v1966, %v1965
        %v2141 = vpack.c.bf16 %v1968, %v1967
        %v2142 = vpack.c.bf16 %v1970, %v1969
        %v2143 = vpack.c.bf16 %v1972, %v1971
        %v2144 = vpack.c.bf16 %v1974, %v1973
        %v2145 = vpack.c.bf16 %v1976, %v1975
        %v2146 = vpack.c.bf16 %v1978, %v1977
        %v2147 = vpack.c.bf16 %v1980, %v1979
        %v2148 = vpack.c.bf16 %v1982, %v1981
        %v2149 = vpack.c.bf16 %v1984, %v1983
        %v2150 = vpack.c.bf16 %v1986, %v1985
        %v2151 = vpack.c.bf16 %v1988, %v1987
        %v2152 = vpack.c.bf16 %v1990, %v1989
        %v2153 = vpack.c.bf16 %v1992, %v1991
        %v2154 = vpack.c.bf16 %v1994, %v1993
        %v2155 = vpack.c.bf16 %v1996, %v1995
        %v2156 = vpack.c.bf16 %v1998, %v1997
        %v2157 = vpack.c.bf16 %v2000, %v1999
        %v2158 = vpack.c.bf16 %v2002, %v2001
        %v2159 = vpack.c.bf16 %v2004, %v2003
        %v2160 = vpack.c.bf16 %v2006, %v2005
        %v2161 = vpack.c.bf16 %v2008, %v2007
        %v2162 = vpack.c.bf16 %v2010, %v2009
        %v2163 = vpack.c.bf16 %v2012, %v2011
        %v2164 = vpack.c.bf16 %v2014, %v2013
        %v2165 = vpack.c.bf16 %v2016, %v2015
        %v2166 = vpack.c.bf16 %v2018, %v2017
        %v2167 = vpack.c.bf16 %v2020, %v2019
        %v2168 = vpack.c.bf16 %v2022, %v2021
        %v2169 = vpack.c.bf16 %v2024, %v2023
        %v2170 = vpack.c.bf16 %v2026, %v2025
        %v2171 = vpack.c.bf16 %v2028, %v2027
        %v2172 = vpack.c.bf16 %v2030, %v2029
        %v2173 = vpack.c.bf16 %v2032, %v2031
        %v2174 = vpack.c.bf16 %v2034, %v2033
        %v2175 = vpack.c.bf16 %v2036, %v2035
        %v2176 = vpack.c.bf16 %v2038, %v2037
        %v2177 = vpack.c.bf16 %v2040, %v2039
        %v2178 = vpack.c.bf16 %v2042, %v2041
        %v2179 = vpack.c.bf16 %v2044, %v2043
        %v2180 = vpack.c.bf16 %v2046, %v2045
        %v2181 = vpack.c.bf16 %v2048, %v2047
        %v2182 = vpack.c.bf16 %v2050, %v2049
        %v2183 = vpack.c.bf16 %v2052, %v2051
        %v2184 = vpack.c.bf16 %v2054, %v2053
        %v2185 = vpack.c.bf16 %v2056, %v2055
        %v2186 = vpack.c.bf16 %v2058, %v2057
        %v2187 = vld [vmem:[#allocation2] sm:$0xf]
        %v2188 = vld [vmem:[#allocation2 + $0x4] sm:$0xf]
        %v2191 = vunpack.c.l.b16 %v2187
        %v2192 = vunpack.c.l.b16 %v2188
        %v2193 = vpack.c.b16 %v2192, %v2191
        %2195 = vmatprep.subr.bf16.mxu0 0
        %2196 = vmatpush1.bf16.xpose.msra.mxu0 %v2066
        %2197 = vmatprep.subr.bf16.mxu0 0
        %2198 = vmatpush1.bf16.xpose.msra.mxu0 %v2065
        %2199 = vmatprep.subr.bf16.mxu0 0
        %2200 = vmatpush1.bf16.xpose.msra.mxu0 %v2064
        %2201 = vmatprep.subr.bf16.mxu0 0
        %2202 = vmatpush1.bf16.xpose.msra.mxu0 %v2063
        %2203 = vmatprep.subr.bf16.mxu0 0
        %2204 = vmatpush1.bf16.xpose.msra.mxu0 %v2062
        %2205 = vmatprep.subr.bf16.mxu0 0
        %2206 = vmatpush1.bf16.xpose.msra.mxu0 %v2061
        %2207 = vmatprep.subr.bf16.mxu0 0
        %2208 = vmatpush1.bf16.xpose.msra.mxu0 %v2060
        %2209 = vmatprep.subr.bf16.mxu0 0
        %2210 = vmatpush1.bf16.xpose.msra.mxu0 %v2059
        %2211 = vmatprep.subr.bf16.mxu0 0
        %2212 = vmatpush2.bf16.xpose.msra.mxu0 %v2074
        %2213 = vmatprep.subr.bf16.mxu0 0
        %2214 = vmatpush2.bf16.xpose.msra.mxu0 %v2073
        %2215 = vmatprep.subr.bf16.mxu0 0
        %2216 = vmatpush2.bf16.xpose.msra.mxu0 %v2072
        %2217 = vmatprep.subr.bf16.mxu0 0
        %2218 = vmatpush2.bf16.xpose.msra.mxu0 %v2071
        %2219 = vmatprep.subr.bf16.mxu0 0
        %2220 = vmatpush2.bf16.xpose.msra.mxu0 %v2070
        %2221 = vmatprep.subr.bf16.mxu0 0
        %2222 = vmatpush2.bf16.xpose.msra.mxu0 %v2069
        %2223 = vmatprep.subr.bf16.mxu0 0
        %2224 = vmatpush2.bf16.xpose.msra.mxu0 %v2068
        %2225 = vmatprep.subr.bf16.mxu0 0
        %2226 = vmatpush2.bf16.xpose.msra.mxu0 %v2067
        %2227 = vmatprep.mubr.bf16.mxu0 0
        %2228 = vmatmul.mubr.bf16.gmra.mxu0 %v2193
        %v2229 = vpop.f32.mrf.mxu0
        %v2230 = vadd.f32 0.0, %v2229
        %v2231 = vpop.f32.mrf.mxu0
        %v2232 = vadd.f32 0.0, %v2231
        %v2233 = vpop.f32.mrf.mxu0
        %v2234 = vadd.f32 0.0, %v2233
        %v2235 = vpop.f32.mrf.mxu0
        %v2236 = vadd.f32 0.0, %v2235
        %2237 = vdwg.mxu0
        %2238 = vmatprep.subr.bf16.mxu0 0
        %2239 = vmatpush1.bf16.xpose.msra.mxu0 %v2082
        %2240 = vmatprep.subr.bf16.mxu0 0
        %2241 = vmatpush1.bf16.xpose.msra.mxu0 %v2081
        %2242 = vmatprep.subr.bf16.mxu0 0
        %2243 = vmatpush1.bf16.xpose.msra.mxu0 %v2080
        %2244 = vmatprep.subr.bf16.mxu0 0
        %2245 = vmatpush1.bf16.xpose.msra.mxu0 %v2079
        %2246 = vmatprep.subr.bf16.mxu0 0
        %2247 = vmatpush1.bf16.xpose.msra.mxu0 %v2078
        %2248 = vmatprep.subr.bf16.mxu0 0
        %2249 = vmatpush1.bf16.xpose.msra.mxu0 %v2077
        %2250 = vmatprep.subr.bf16.mxu0 0
        %2251 = vmatpush1.bf16.xpose.msra.mxu0 %v2076
        %2252 = vmatprep.subr.bf16.mxu0 0
        %2253 = vmatpush1.bf16.xpose.msra.mxu0 %v2075
        %2254 = vmatprep.subr.bf16.mxu0 0
        %2255 = vmatpush2.bf16.xpose.msra.mxu0 %v2090
        %2256 = vmatprep.subr.bf16.mxu0 0
        %2257 = vmatpush2.bf16.xpose.msra.mxu0 %v2089
        %2258 = vmatprep.subr.bf16.mxu0 0
        %2259 = vmatpush2.bf16.xpose.msra.mxu0 %v2088
        %2260 = vmatprep.subr.bf16.mxu0 0
        %2261 = vmatpush2.bf16.xpose.msra.mxu0 %v2087
        %2262 = vmatprep.subr.bf16.mxu0 0
        %2263 = vmatpush2.bf16.xpose.msra.mxu0 %v2086
        %2264 = vmatprep.subr.bf16.mxu0 0
        %2265 = vmatpush2.bf16.xpose.msra.mxu0 %v2085
        %2266 = vmatprep.subr.bf16.mxu0 0
        %2267 = vmatpush2.bf16.xpose.msra.mxu0 %v2084
        %2268 = vmatprep.subr.bf16.mxu0 0
        %2269 = vmatpush2.bf16.xpose.msra.mxu0 %v2083
        %2270 = vmatprep.mubr.bf16.mxu0 0
        %2271 = vmatmul.mubr.bf16.gmra.mxu0 %v2193
        %v2272 = vpop.f32.mrf.mxu0
        %v2273 = vadd.f32 0.0, %v2272
        %v2274 = vpop.f32.mrf.mxu0
        %v2275 = vadd.f32 0.0, %v2274
        %v2276 = vpop.f32.mrf.mxu0
        %v2277 = vadd.f32 0.0, %v2276
        %v2278 = vpop.f32.mrf.mxu0
        %v2279 = vadd.f32 0.0, %v2278
        %2280 = vdwg.mxu0
        %2281 = vmatprep.subr.bf16.mxu0 0
        %2282 = vmatpush1.bf16.xpose.msra.mxu0 %v2098
        %2283 = vmatprep.subr.bf16.mxu0 0
        %2284 = vmatpush1.bf16.xpose.msra.mxu0 %v2097
        %2285 = vmatprep.subr.bf16.mxu0 0
        %2286 = vmatpush1.bf16.xpose.msra.mxu0 %v2096
        %2287 = vmatprep.subr.bf16.mxu0 0
        %2288 = vmatpush1.bf16.xpose.msra.mxu0 %v2095
        %2289 = vmatprep.subr.bf16.mxu0 0
        %2290 = vmatpush1.bf16.xpose.msra.mxu0 %v2094
        %2291 = vmatprep.subr.bf16.mxu0 0
        %2292 = vmatpush1.bf16.xpose.msra.mxu0 %v2093
        %2293 = vmatprep.subr.bf16.mxu0 0
        %2294 = vmatpush1.bf16.xpose.msra.mxu0 %v2092
        %2295 = vmatprep.subr.bf16.mxu0 0
        %2296 = vmatpush1.bf16.xpose.msra.mxu0 %v2091
        %2297 = vmatprep.subr.bf16.mxu0 0
        %2298 = vmatpush2.bf16.xpose.msra.mxu0 %v2106
        %2299 = vmatprep.subr.bf16.mxu0 0
        %2300 = vmatpush2.bf16.xpose.msra.mxu0 %v2105
        %2301 = vmatprep.subr.bf16.mxu0 0
        %2302 = vmatpush2.bf16.xpose.msra.mxu0 %v2104
        %2303 = vmatprep.subr.bf16.mxu0 0
        %2304 = vmatpush2.bf16.xpose.msra.mxu0 %v2103
        %2305 = vmatprep.subr.bf16.mxu0 0
        %2306 = vmatpush2.bf16.xpose.msra.mxu0 %v2102
        %2307 = vmatprep.subr.bf16.mxu0 0
        %2308 = vmatpush2.bf16.xpose.msra.mxu0 %v2101
        %2309 = vmatprep.subr.bf16.mxu0 0
        %2310 = vmatpush2.bf16.xpose.msra.mxu0 %v2100
        %2311 = vmatprep.subr.bf16.mxu0 0
        %2312 = vmatpush2.bf16.xpose.msra.mxu0 %v2099
        %2313 = vmatprep.mubr.bf16.mxu0 0
        %2314 = vmatmul.mubr.bf16.gmra.mxu0 %v2193
        %v2315 = vpop.f32.mrf.mxu0
        %v2316 = vadd.f32 0.0, %v2315
        %v2317 = vpop.f32.mrf.mxu0
        %v2318 = vadd.f32 0.0, %v2317
        %v2319 = vpop.f32.mrf.mxu0
        %v2320 = vadd.f32 0.0, %v2319
        %v2321 = vpop.f32.mrf.mxu0
        %v2322 = vadd.f32 0.0, %v2321
        %2323 = vdwg.mxu0
        %2324 = vmatprep.subr.bf16.mxu0 0
        %2325 = vmatpush1.bf16.xpose.msra.mxu0 %v2114
        %2326 = vmatprep.subr.bf16.mxu0 0
        %2327 = vmatpush1.bf16.xpose.msra.mxu0 %v2113
        %2328 = vmatprep.subr.bf16.mxu0 0
        %2329 = vmatpush1.bf16.xpose.msra.mxu0 %v2112
        %2330 = vmatprep.subr.bf16.mxu0 0
        %2331 = vmatpush1.bf16.xpose.msra.mxu0 %v2111
        %2332 = vmatprep.subr.bf16.mxu0 0
        %2333 = vmatpush1.bf16.xpose.msra.mxu0 %v2110
        %2334 = vmatprep.subr.bf16.mxu0 0
        %2335 = vmatpush1.bf16.xpose.msra.mxu0 %v2109
        %2336 = vmatprep.subr.bf16.mxu0 0
        %2337 = vmatpush1.bf16.xpose.msra.mxu0 %v2108
        %2338 = vmatprep.subr.bf16.mxu0 0
        %2339 = vmatpush1.bf16.xpose.msra.mxu0 %v2107
        %2340 = vmatprep.subr.bf16.mxu0 0
        %2341 = vmatpush2.bf16.xpose.msra.mxu0 %v2122
        %2342 = vmatprep.subr.bf16.mxu0 0
        %2343 = vmatpush2.bf16.xpose.msra.mxu0 %v2121
        %2344 = vmatprep.subr.bf16.mxu0 0
        %2345 = vmatpush2.bf16.xpose.msra.mxu0 %v2120
        %2346 = vmatprep.subr.bf16.mxu0 0
        %2347 = vmatpush2.bf16.xpose.msra.mxu0 %v2119
        %2348 = vmatprep.subr.bf16.mxu0 0
        %2349 = vmatpush2.bf16.xpose.msra.mxu0 %v2118
        %2350 = vmatprep.subr.bf16.mxu0 0
        %2351 = vmatpush2.bf16.xpose.msra.mxu0 %v2117
        %2352 = vmatprep.subr.bf16.mxu0 0
        %2353 = vmatpush2.bf16.xpose.msra.mxu0 %v2116
        %2354 = vmatprep.subr.bf16.mxu0 0
        %2355 = vmatpush2.bf16.xpose.msra.mxu0 %v2115
        %2356 = vmatprep.mubr.bf16.mxu0 0
        %2357 = vmatmul.mubr.bf16.gmra.mxu0 %v2193
        %v2358 = vpop.f32.mrf.mxu0
        %v2359 = vadd.f32 0.0, %v2358
        %v2360 = vpop.f32.mrf.mxu0
        %v2361 = vadd.f32 0.0, %v2360
        %v2362 = vpop.f32.mrf.mxu0
        %v2363 = vadd.f32 0.0, %v2362
        %v2364 = vpop.f32.mrf.mxu0
        %v2365 = vadd.f32 0.0, %v2364
        %2366 = vdwg.mxu0
        %2367 = vmatprep.subr.bf16.mxu0 0
        %2368 = vmatpush1.bf16.xpose.msra.mxu0 %v2130
        %2369 = vmatprep.subr.bf16.mxu0 0
        %2370 = vmatpush1.bf16.xpose.msra.mxu0 %v2129
        %2371 = vmatprep.subr.bf16.mxu0 0
        %2372 = vmatpush1.bf16.xpose.msra.mxu0 %v2128
        %2373 = vmatprep.subr.bf16.mxu0 0
        %2374 = vmatpush1.bf16.xpose.msra.mxu0 %v2127
        %2375 = vmatprep.subr.bf16.mxu0 0
        %2376 = vmatpush1.bf16.xpose.msra.mxu0 %v2126
        %2377 = vmatprep.subr.bf16.mxu0 0
        %2378 = vmatpush1.bf16.xpose.msra.mxu0 %v2125
        %2379 = vmatprep.subr.bf16.mxu0 0
        %2380 = vmatpush1.bf16.xpose.msra.mxu0 %v2124
        %2381 = vmatprep.subr.bf16.mxu0 0
        %2382 = vmatpush1.bf16.xpose.msra.mxu0 %v2123
        %2383 = vmatprep.subr.bf16.mxu0 0
        %2384 = vmatpush2.bf16.xpose.msra.mxu0 %v2138
        %2385 = vmatprep.subr.bf16.mxu0 0
        %2386 = vmatpush2.bf16.xpose.msra.mxu0 %v2137
        %2387 = vmatprep.subr.bf16.mxu0 0
        %2388 = vmatpush2.bf16.xpose.msra.mxu0 %v2136
        %2389 = vmatprep.subr.bf16.mxu0 0
        %2390 = vmatpush2.bf16.xpose.msra.mxu0 %v2135
        %2391 = vmatprep.subr.bf16.mxu0 0
        %2392 = vmatpush2.bf16.xpose.msra.mxu0 %v2134
        %2393 = vmatprep.subr.bf16.mxu0 0
        %2394 = vmatpush2.bf16.xpose.msra.mxu0 %v2133
        %2395 = vmatprep.subr.bf16.mxu0 0
        %2396 = vmatpush2.bf16.xpose.msra.mxu0 %v2132
        %2397 = vmatprep.subr.bf16.mxu0 0
        %2398 = vmatpush2.bf16.xpose.msra.mxu0 %v2131
        %2399 = vmatprep.mubr.bf16.mxu0 0
        %2400 = vmatmul.mubr.bf16.gmra.mxu0 %v2193
        %v2401 = vpop.f32.mrf.mxu0
        %v2402 = vadd.f32 0.0, %v2401
        %v2403 = vpop.f32.mrf.mxu0
        %v2404 = vadd.f32 0.0, %v2403
        %v2405 = vpop.f32.mrf.mxu0
        %v2406 = vadd.f32 0.0, %v2405
        %v2407 = vpop.f32.mrf.mxu0
        %v2408 = vadd.f32 0.0, %v2407
        %2409 = vdwg.mxu0
        %2410 = vmatprep.subr.bf16.mxu0 0
        %2411 = vmatpush1.bf16.xpose.msra.mxu0 %v2146
        %2412 = vmatprep.subr.bf16.mxu0 0
        %2413 = vmatpush1.bf16.xpose.msra.mxu0 %v2145
        %2414 = vmatprep.subr.bf16.mxu0 0
        %2415 = vmatpush1.bf16.xpose.msra.mxu0 %v2144
        %2416 = vmatprep.subr.bf16.mxu0 0
        %2417 = vmatpush1.bf16.xpose.msra.mxu0 %v2143
        %2418 = vmatprep.subr.bf16.mxu0 0
        %2419 = vmatpush1.bf16.xpose.msra.mxu0 %v2142
        %2420 = vmatprep.subr.bf16.mxu0 0
        %2421 = vmatpush1.bf16.xpose.msra.mxu0 %v2141
        %2422 = vmatprep.subr.bf16.mxu0 0
        %2423 = vmatpush1.bf16.xpose.msra.mxu0 %v2140
        %2424 = vmatprep.subr.bf16.mxu0 0
        %2425 = vmatpush1.bf16.xpose.msra.mxu0 %v2139
        %2426 = vmatprep.subr.bf16.mxu0 0
        %2427 = vmatpush2.bf16.xpose.msra.mxu0 %v2154
        %2428 = vmatprep.subr.bf16.mxu0 0
        %2429 = vmatpush2.bf16.xpose.msra.mxu0 %v2153
        %2430 = vmatprep.subr.bf16.mxu0 0
        %2431 = vmatpush2.bf16.xpose.msra.mxu0 %v2152
        %2432 = vmatprep.subr.bf16.mxu0 0
        %2433 = vmatpush2.bf16.xpose.msra.mxu0 %v2151
        %2434 = vmatprep.subr.bf16.mxu0 0
        %2435 = vmatpush2.bf16.xpose.msra.mxu0 %v2150
        %2436 = vmatprep.subr.bf16.mxu0 0
        %2437 = vmatpush2.bf16.xpose.msra.mxu0 %v2149
        %2438 = vmatprep.subr.bf16.mxu0 0
        %2439 = vmatpush2.bf16.xpose.msra.mxu0 %v2148
        %2440 = vmatprep.subr.bf16.mxu0 0
        %2441 = vmatpush2.bf16.xpose.msra.mxu0 %v2147
        %2442 = vmatprep.mubr.bf16.mxu0 0
        %2443 = vmatmul.mubr.bf16.gmra.mxu0 %v2193
        %v2444 = vpop.f32.mrf.mxu0
        %v2445 = vadd.f32 0.0, %v2444
        %v2446 = vpop.f32.mrf.mxu0
        %v2447 = vadd.f32 0.0, %v2446
        %v2448 = vpop.f32.mrf.mxu0
        %v2449 = vadd.f32 0.0, %v2448
        %v2450 = vpop.f32.mrf.mxu0
        %v2451 = vadd.f32 0.0, %v2450
        %2452 = vdwg.mxu0
        %2453 = vmatprep.subr.bf16.mxu0 0
        %2454 = vmatpush1.bf16.xpose.msra.mxu0 %v2162
        %2455 = vmatprep.subr.bf16.mxu0 0
        %2456 = vmatpush1.bf16.xpose.msra.mxu0 %v2161
        %2457 = vmatprep.subr.bf16.mxu0 0
        %2458 = vmatpush1.bf16.xpose.msra.mxu0 %v2160
        %2459 = vmatprep.subr.bf16.mxu0 0
        %2460 = vmatpush1.bf16.xpose.msra.mxu0 %v2159
        %2461 = vmatprep.subr.bf16.mxu0 0
        %2462 = vmatpush1.bf16.xpose.msra.mxu0 %v2158
        %2463 = vmatprep.subr.bf16.mxu0 0
        %2464 = vmatpush1.bf16.xpose.msra.mxu0 %v2157
        %2465 = vmatprep.subr.bf16.mxu0 0
        %2466 = vmatpush1.bf16.xpose.msra.mxu0 %v2156
        %2467 = vmatprep.subr.bf16.mxu0 0
        %2468 = vmatpush1.bf16.xpose.msra.mxu0 %v2155
        %2469 = vmatprep.subr.bf16.mxu0 0
        %2470 = vmatpush2.bf16.xpose.msra.mxu0 %v2170
        %2471 = vmatprep.subr.bf16.mxu0 0
        %2472 = vmatpush2.bf16.xpose.msra.mxu0 %v2169
        %2473 = vmatprep.subr.bf16.mxu0 0
        %2474 = vmatpush2.bf16.xpose.msra.mxu0 %v2168
        %2475 = vmatprep.subr.bf16.mxu0 0
        %2476 = vmatpush2.bf16.xpose.msra.mxu0 %v2167
        %2477 = vmatprep.subr.bf16.mxu0 0
        %2478 = vmatpush2.bf16.xpose.msra.mxu0 %v2166
        %2479 = vmatprep.subr.bf16.mxu0 0
        %2480 = vmatpush2.bf16.xpose.msra.mxu0 %v2165
        %2481 = vmatprep.subr.bf16.mxu0 0
        %2482 = vmatpush2.bf16.xpose.msra.mxu0 %v2164
        %2483 = vmatprep.subr.bf16.mxu0 0
        %2484 = vmatpush2.bf16.xpose.msra.mxu0 %v2163
        %2485 = vmatprep.mubr.bf16.mxu0 0
        %2486 = vmatmul.mubr.bf16.gmra.mxu0 %v2193
        %v2487 = vpop.f32.mrf.mxu0
        %v2488 = vadd.f32 0.0, %v2487
        %v2489 = vpop.f32.mrf.mxu0
        %v2490 = vadd.f32 0.0, %v2489
        %v2491 = vpop.f32.mrf.mxu0
        %v2492 = vadd.f32 0.0, %v2491
        %v2493 = vpop.f32.mrf.mxu0
        %v2494 = vadd.f32 0.0, %v2493
        %2495 = vdwg.mxu0
        %2496 = vmatprep.subr.bf16.mxu0 0
        %2497 = vmatpush1.bf16.xpose.msra.mxu0 %v2178
        %2498 = vmatprep.subr.bf16.mxu0 0
        %2499 = vmatpush1.bf16.xpose.msra.mxu0 %v2177
        %2500 = vmatprep.subr.bf16.mxu0 0
        %2501 = vmatpush1.bf16.xpose.msra.mxu0 %v2176
        %2502 = vmatprep.subr.bf16.mxu0 0
        %2503 = vmatpush1.bf16.xpose.msra.mxu0 %v2175
        %2504 = vmatprep.subr.bf16.mxu0 0
        %2505 = vmatpush1.bf16.xpose.msra.mxu0 %v2174
        %2506 = vmatprep.subr.bf16.mxu0 0
        %2507 = vmatpush1.bf16.xpose.msra.mxu0 %v2173
        %2508 = vmatprep.subr.bf16.mxu0 0
        %2509 = vmatpush1.bf16.xpose.msra.mxu0 %v2172
        %2510 = vmatprep.subr.bf16.mxu0 0
        %2511 = vmatpush1.bf16.xpose.msra.mxu0 %v2171
        %2512 = vmatprep.subr.bf16.mxu0 0
        %2513 = vmatpush2.bf16.xpose.msra.mxu0 %v2186
        %2514 = vmatprep.subr.bf16.mxu0 0
        %2515 = vmatpush2.bf16.xpose.msra.mxu0 %v2185
        %2516 = vmatprep.subr.bf16.mxu0 0
        %2517 = vmatpush2.bf16.xpose.msra.mxu0 %v2184
        %2518 = vmatprep.subr.bf16.mxu0 0
        %2519 = vmatpush2.bf16.xpose.msra.mxu0 %v2183
        %2520 = vmatprep.subr.bf16.mxu0 0
        %2521 = vmatpush2.bf16.xpose.msra.mxu0 %v2182
        %2522 = vmatprep.subr.bf16.mxu0 0
        %2523 = vmatpush2.bf16.xpose.msra.mxu0 %v2181
        %2524 = vmatprep.subr.bf16.mxu0 0
        %2525 = vmatpush2.bf16.xpose.msra.mxu0 %v2180
        %2526 = vmatprep.subr.bf16.mxu0 0
        %2527 = vmatpush2.bf16.xpose.msra.mxu0 %v2179
        %2528 = vmatprep.mubr.bf16.mxu0 0
        %2529 = vmatmul.mubr.bf16.gmra.mxu0 %v2193
        %v2530 = vpop.f32.mrf.mxu0
        %v2531 = vadd.f32 0.0, %v2530
        %v2532 = vpop.f32.mrf.mxu0
        %v2533 = vadd.f32 0.0, %v2532
        %v2534 = vpop.f32.mrf.mxu0
        %v2535 = vadd.f32 0.0, %v2534
        %v2536 = vpop.f32.mrf.mxu0
        %v2537 = vadd.f32 0.0, %v2536
        %2538 = vdwg.mxu0
        %v2539 = vmul.f32 %v2230, %v2230
        %v2540 = vmul.f32 %v2232, %v2232
        %v2541 = vmul.f32 %v2273, %v2273
        %v2542 = vmul.f32 %v2275, %v2275
        %v2543 = vmul.f32 %v2316, %v2316
        %v2544 = vmul.f32 %v2318, %v2318
        %v2545 = vmul.f32 %v2359, %v2359
        %v2546 = vmul.f32 %v2361, %v2361
        %v2547 = vmul.f32 %v2402, %v2402
        %v2548 = vmul.f32 %v2404, %v2404
        %v2549 = vmul.f32 %v2445, %v2445
        %v2550 = vmul.f32 %v2447, %v2447
        %v2551 = vmul.f32 %v2488, %v2488
        %v2552 = vmul.f32 %v2490, %v2490
        %v2553 = vmul.f32 %v2531, %v2531
        %v2554 = vmul.f32 %v2533, %v2533
        %v2555 = vmul.f32 %v2234, %v2234
        %v2556 = vmul.f32 %v2236, %v2236
        %v2557 = vmul.f32 %v2277, %v2277
        %v2558 = vmul.f32 %v2279, %v2279
        %v2559 = vmul.f32 %v2320, %v2320
        %v2560 = vmul.f32 %v2322, %v2322
        %v2561 = vmul.f32 %v2363, %v2363
        %v2562 = vmul.f32 %v2365, %v2365
        %v2563 = vmul.f32 %v2406, %v2406
        %v2564 = vmul.f32 %v2408, %v2408
        %v2565 = vmul.f32 %v2449, %v2449
        %v2566 = vmul.f32 %v2451, %v2451
        %v2567 = vmul.f32 %v2492, %v2492
        %v2568 = vmul.f32 %v2494, %v2494
        %v2569 = vmul.f32 %v2535, %v2535
        %v2570 = vmul.f32 %v2537, %v2537
        %v2571 = vsub.f32 1.0, %v2539
        %v2572 = vsub.f32 1.0, %v2540
        %v2573 = vsub.f32 1.0, %v2541
        %v2574 = vsub.f32 1.0, %v2542
        %v2575 = vsub.f32 1.0, %v2543
        %v2576 = vsub.f32 1.0, %v2544
        %v2577 = vsub.f32 1.0, %v2545
        %v2578 = vsub.f32 1.0, %v2546
        %v2579 = vsub.f32 1.0, %v2547
        %v2580 = vsub.f32 1.0, %v2548
        %v2581 = vsub.f32 1.0, %v2549
        %v2582 = vsub.f32 1.0, %v2550
        %v2583 = vsub.f32 1.0, %v2551
        %v2584 = vsub.f32 1.0, %v2552
        %v2585 = vsub.f32 1.0, %v2553
        %v2586 = vsub.f32 1.0, %v2554
        %v2587 = vsub.f32 1.0, %v2555
        %v2588 = vsub.f32 1.0, %v2556
        %v2589 = vsub.f32 1.0, %v2557
        %v2590 = vsub.f32 1.0, %v2558
        %v2591 = vsub.f32 1.0, %v2559
        %v2592 = vsub.f32 1.0, %v2560
        %v2593 = vsub.f32 1.0, %v2561
        %v2594 = vsub.f32 1.0, %v2562
        %v2595 = vsub.f32 1.0, %v2563
        %v2596 = vsub.f32 1.0, %v2564
        %v2597 = vsub.f32 1.0, %v2565
        %v2598 = vsub.f32 1.0, %v2566
        %v2599 = vsub.f32 1.0, %v2567
        %v2600 = vsub.f32 1.0, %v2568
        %v2601 = vsub.f32 1.0, %v2569
        %v2602 = vsub.f32 1.0, %v2570
        %v2603 = vmax.f32 %v2571, 0.0
        %v2604 = vmax.f32 %v2572, 0.0
        %v2605 = vmax.f32 %v2573, 0.0
        %v2606 = vmax.f32 %v2574, 0.0
        %v2607 = vmax.f32 %v2575, 0.0
        %v2608 = vmax.f32 %v2576, 0.0
        %v2609 = vmax.f32 %v2577, 0.0
        %v2610 = vmax.f32 %v2578, 0.0
        %v2611 = vmax.f32 %v2579, 0.0
        %v2612 = vmax.f32 %v2580, 0.0
        %v2613 = vmax.f32 %v2581, 0.0
        %v2614 = vmax.f32 %v2582, 0.0
        %v2615 = vmax.f32 %v2583, 0.0
        %v2616 = vmax.f32 %v2584, 0.0
        %v2617 = vmax.f32 %v2585, 0.0
        %v2618 = vmax.f32 %v2586, 0.0
        %v2619 = vmax.f32 %v2587, 0.0
        %v2620 = vmax.f32 %v2588, 0.0
        %v2621 = vmax.f32 %v2589, 0.0
        %v2622 = vmax.f32 %v2590, 0.0
        %v2623 = vmax.f32 %v2591, 0.0
        %v2624 = vmax.f32 %v2592, 0.0
        %v2625 = vmax.f32 %v2593, 0.0
        %v2626 = vmax.f32 %v2594, 0.0
        %v2627 = vmax.f32 %v2595, 0.0
        %v2628 = vmax.f32 %v2596, 0.0
        %v2629 = vmax.f32 %v2597, 0.0
        %v2630 = vmax.f32 %v2598, 0.0
        %v2631 = vmax.f32 %v2599, 0.0
        %v2632 = vmax.f32 %v2600, 0.0
        %v2633 = vmax.f32 %v2601, 0.0
        %v2634 = vmax.f32 %v2602, 0.0
        %v2635 = vmin.f32 %v2603, 1.0
        %v2636 = vmin.f32 %v2604, 1.0
        %v2637 = vmin.f32 %v2605, 1.0
        %v2638 = vmin.f32 %v2606, 1.0
        %v2639 = vmin.f32 %v2607, 1.0
        %v2640 = vmin.f32 %v2608, 1.0
        %v2641 = vmin.f32 %v2609, 1.0
        %v2642 = vmin.f32 %v2610, 1.0
        %v2643 = vmin.f32 %v2611, 1.0
        %v2644 = vmin.f32 %v2612, 1.0
        %v2645 = vmin.f32 %v2613, 1.0
        %v2646 = vmin.f32 %v2614, 1.0
        %v2647 = vmin.f32 %v2615, 1.0
        %v2648 = vmin.f32 %v2616, 1.0
        %v2649 = vmin.f32 %v2617, 1.0
        %v2650 = vmin.f32 %v2618, 1.0
        %v2651 = vmin.f32 %v2619, 1.0
        %v2652 = vmin.f32 %v2620, 1.0
        %v2653 = vmin.f32 %v2621, 1.0
        %v2654 = vmin.f32 %v2622, 1.0
        %v2655 = vmin.f32 %v2623, 1.0
        %v2656 = vmin.f32 %v2624, 1.0
        %v2657 = vmin.f32 %v2625, 1.0
        %v2658 = vmin.f32 %v2626, 1.0
        %v2659 = vmin.f32 %v2627, 1.0
        %v2660 = vmin.f32 %v2628, 1.0
        %v2661 = vmin.f32 %v2629, 1.0
        %v2662 = vmin.f32 %v2630, 1.0
        %v2663 = vmin.f32 %v2631, 1.0
        %v2664 = vmin.f32 %v2632, 1.0
        %v2665 = vmin.f32 %v2633, 1.0
        %v2666 = vmin.f32 %v2634, 1.0
        %v2667 = vrsqrt.pop %v2635
        %v2668 = vmul.f32 %v2635, %v2667
        %vm2669 = vcmp.eq.f32.partialorder %v2635, inf
        %v2670 = vsel %vm2669, %v2635, %v2668
        %vm2671 = vcmp.eq.f32.partialorder %v2635, 0.0
        %v2672 = vand.u32 %v2635, 2147483648
        %v2673 = vsel %vm2671, %v2672, %v2670
        %v2674 = vrsqrt.pop %v2636
        %v2675 = vmul.f32 %v2636, %v2674
        %vm2676 = vcmp.eq.f32.partialorder %v2636, inf
        %v2677 = vsel %vm2676, %v2636, %v2675
        %vm2678 = vcmp.eq.f32.partialorder %v2636, 0.0
        %v2679 = vand.u32 %v2636, 2147483648
        %v2680 = vsel %vm2678, %v2679, %v2677
        %v2681 = vrsqrt.pop %v2637
        %v2682 = vmul.f32 %v2637, %v2681
        %vm2683 = vcmp.eq.f32.partialorder %v2637, inf
        %v2684 = vsel %vm2683, %v2637, %v2682
        %vm2685 = vcmp.eq.f32.partialorder %v2637, 0.0
        %v2686 = vand.u32 %v2637, 2147483648
        %v2687 = vsel %vm2685, %v2686, %v2684
        %v2688 = vrsqrt.pop %v2638
        %v2689 = vmul.f32 %v2638, %v2688
        %vm2690 = vcmp.eq.f32.partialorder %v2638, inf
        %v2691 = vsel %vm2690, %v2638, %v2689
        %vm2692 = vcmp.eq.f32.partialorder %v2638, 0.0
        %v2693 = vand.u32 %v2638, 2147483648
        %v2694 = vsel %vm2692, %v2693, %v2691
        %v2695 = vrsqrt.pop %v2639
        %v2696 = vmul.f32 %v2639, %v2695
        %vm2697 = vcmp.eq.f32.partialorder %v2639, inf
        %v2698 = vsel %vm2697, %v2639, %v2696
        %vm2699 = vcmp.eq.f32.partialorder %v2639, 0.0
        %v2700 = vand.u32 %v2639, 2147483648
        %v2701 = vsel %vm2699, %v2700, %v2698
        %v2702 = vrsqrt.pop %v2640
        %v2703 = vmul.f32 %v2640, %v2702
        %vm2704 = vcmp.eq.f32.partialorder %v2640, inf
        %v2705 = vsel %vm2704, %v2640, %v2703
        %vm2706 = vcmp.eq.f32.partialorder %v2640, 0.0
        %v2707 = vand.u32 %v2640, 2147483648
        %v2708 = vsel %vm2706, %v2707, %v2705
        %v2709 = vrsqrt.pop %v2641
        %v2710 = vmul.f32 %v2641, %v2709
        %vm2711 = vcmp.eq.f32.partialorder %v2641, inf
        %v2712 = vsel %vm2711, %v2641, %v2710
        %vm2713 = vcmp.eq.f32.partialorder %v2641, 0.0
        %v2714 = vand.u32 %v2641, 2147483648
        %v2715 = vsel %vm2713, %v2714, %v2712
        %v2716 = vrsqrt.pop %v2642
        %v2717 = vmul.f32 %v2642, %v2716
        %vm2718 = vcmp.eq.f32.partialorder %v2642, inf
        %v2719 = vsel %vm2718, %v2642, %v2717
        %vm2720 = vcmp.eq.f32.partialorder %v2642, 0.0
        %v2721 = vand.u32 %v2642, 2147483648
        %v2722 = vsel %vm2720, %v2721, %v2719
        %v2723 = vrsqrt.pop %v2643
        %v2724 = vmul.f32 %v2643, %v2723
        %vm2725 = vcmp.eq.f32.partialorder %v2643, inf
        %v2726 = vsel %vm2725, %v2643, %v2724
        %vm2727 = vcmp.eq.f32.partialorder %v2643, 0.0
        %v2728 = vand.u32 %v2643, 2147483648
        %v2729 = vsel %vm2727, %v2728, %v2726
        %v2730 = vrsqrt.pop %v2644
        %v2731 = vmul.f32 %v2644, %v2730
        %vm2732 = vcmp.eq.f32.partialorder %v2644, inf
        %v2733 = vsel %vm2732, %v2644, %v2731
        %vm2734 = vcmp.eq.f32.partialorder %v2644, 0.0
        %v2735 = vand.u32 %v2644, 2147483648
        %v2736 = vsel %vm2734, %v2735, %v2733
        %v2737 = vrsqrt.pop %v2645
        %v2738 = vmul.f32 %v2645, %v2737
        %vm2739 = vcmp.eq.f32.partialorder %v2645, inf
        %v2740 = vsel %vm2739, %v2645, %v2738
        %vm2741 = vcmp.eq.f32.partialorder %v2645, 0.0
        %v2742 = vand.u32 %v2645, 2147483648
        %v2743 = vsel %vm2741, %v2742, %v2740
        %v2744 = vrsqrt.pop %v2646
        %v2745 = vmul.f32 %v2646, %v2744
        %vm2746 = vcmp.eq.f32.partialorder %v2646, inf
        %v2747 = vsel %vm2746, %v2646, %v2745
        %vm2748 = vcmp.eq.f32.partialorder %v2646, 0.0
        %v2749 = vand.u32 %v2646, 2147483648
        %v2750 = vsel %vm2748, %v2749, %v2747
        %v2751 = vrsqrt.pop %v2647
        %v2752 = vmul.f32 %v2647, %v2751
        %vm2753 = vcmp.eq.f32.partialorder %v2647, inf
        %v2754 = vsel %vm2753, %v2647, %v2752
        %vm2755 = vcmp.eq.f32.partialorder %v2647, 0.0
        %v2756 = vand.u32 %v2647, 2147483648
        %v2757 = vsel %vm2755, %v2756, %v2754
        %v2758 = vrsqrt.pop %v2648
        %v2759 = vmul.f32 %v2648, %v2758
        %vm2760 = vcmp.eq.f32.partialorder %v2648, inf
        %v2761 = vsel %vm2760, %v2648, %v2759
        %vm2762 = vcmp.eq.f32.partialorder %v2648, 0.0
        %v2763 = vand.u32 %v2648, 2147483648
        %v2764 = vsel %vm2762, %v2763, %v2761
        %v2765 = vrsqrt.pop %v2649
        %v2766 = vmul.f32 %v2649, %v2765
        %vm2767 = vcmp.eq.f32.partialorder %v2649, inf
        %v2768 = vsel %vm2767, %v2649, %v2766
        %vm2769 = vcmp.eq.f32.partialorder %v2649, 0.0
        %v2770 = vand.u32 %v2649, 2147483648
        %v2771 = vsel %vm2769, %v2770, %v2768
        %v2772 = vrsqrt.pop %v2650
        %v2773 = vmul.f32 %v2650, %v2772
        %vm2774 = vcmp.eq.f32.partialorder %v2650, inf
        %v2775 = vsel %vm2774, %v2650, %v2773
        %vm2776 = vcmp.eq.f32.partialorder %v2650, 0.0
        %v2777 = vand.u32 %v2650, 2147483648
        %v2778 = vsel %vm2776, %v2777, %v2775
        %v2779 = vrsqrt.pop %v2651
        %v2780 = vmul.f32 %v2651, %v2779
        %vm2781 = vcmp.eq.f32.partialorder %v2651, inf
        %v2782 = vsel %vm2781, %v2651, %v2780
        %vm2783 = vcmp.eq.f32.partialorder %v2651, 0.0
        %v2784 = vand.u32 %v2651, 2147483648
        %v2785 = vsel %vm2783, %v2784, %v2782
        %v2786 = vrsqrt.pop %v2652
        %v2787 = vmul.f32 %v2652, %v2786
        %vm2788 = vcmp.eq.f32.partialorder %v2652, inf
        %v2789 = vsel %vm2788, %v2652, %v2787
        %vm2790 = vcmp.eq.f32.partialorder %v2652, 0.0
        %v2791 = vand.u32 %v2652, 2147483648
        %v2792 = vsel %vm2790, %v2791, %v2789
        %v2793 = vrsqrt.pop %v2653
        %v2794 = vmul.f32 %v2653, %v2793
        %vm2795 = vcmp.eq.f32.partialorder %v2653, inf
        %v2796 = vsel %vm2795, %v2653, %v2794
        %vm2797 = vcmp.eq.f32.partialorder %v2653, 0.0
        %v2798 = vand.u32 %v2653, 2147483648
        %v2799 = vsel %vm2797, %v2798, %v2796
        %v2800 = vrsqrt.pop %v2654
        %v2801 = vmul.f32 %v2654, %v2800
        %vm2802 = vcmp.eq.f32.partialorder %v2654, inf
        %v2803 = vsel %vm2802, %v2654, %v2801
        %vm2804 = vcmp.eq.f32.partialorder %v2654, 0.0
        %v2805 = vand.u32 %v2654, 2147483648
        %v2806 = vsel %vm2804, %v2805, %v2803
        %v2807 = vrsqrt.pop %v2655
        %v2808 = vmul.f32 %v2655, %v2807
        %vm2809 = vcmp.eq.f32.partialorder %v2655, inf
        %v2810 = vsel %vm2809, %v2655, %v2808
        %vm2811 = vcmp.eq.f32.partialorder %v2655, 0.0
        %v2812 = vand.u32 %v2655, 2147483648
        %v2813 = vsel %vm2811, %v2812, %v2810
        %v2814 = vrsqrt.pop %v2656
        %v2815 = vmul.f32 %v2656, %v2814
        %vm2816 = vcmp.eq.f32.partialorder %v2656, inf
        %v2817 = vsel %vm2816, %v2656, %v2815
        %vm2818 = vcmp.eq.f32.partialorder %v2656, 0.0
        %v2819 = vand.u32 %v2656, 2147483648
        %v2820 = vsel %vm2818, %v2819, %v2817
        %v2821 = vrsqrt.pop %v2657
        %v2822 = vmul.f32 %v2657, %v2821
        %vm2823 = vcmp.eq.f32.partialorder %v2657, inf
        %v2824 = vsel %vm2823, %v2657, %v2822
        %vm2825 = vcmp.eq.f32.partialorder %v2657, 0.0
        %v2826 = vand.u32 %v2657, 2147483648
        %v2827 = vsel %vm2825, %v2826, %v2824
        %v2828 = vrsqrt.pop %v2658
        %v2829 = vmul.f32 %v2658, %v2828
        %vm2830 = vcmp.eq.f32.partialorder %v2658, inf
        %v2831 = vsel %vm2830, %v2658, %v2829
        %vm2832 = vcmp.eq.f32.partialorder %v2658, 0.0
        %v2833 = vand.u32 %v2658, 2147483648
        %v2834 = vsel %vm2832, %v2833, %v2831
        %v2835 = vrsqrt.pop %v2659
        %v2836 = vmul.f32 %v2659, %v2835
        %vm2837 = vcmp.eq.f32.partialorder %v2659, inf
        %v2838 = vsel %vm2837, %v2659, %v2836
        %vm2839 = vcmp.eq.f32.partialorder %v2659, 0.0
        %v2840 = vand.u32 %v2659, 2147483648
        %v2841 = vsel %vm2839, %v2840, %v2838
        %v2842 = vrsqrt.pop %v2660
        %v2843 = vmul.f32 %v2660, %v2842
        %vm2844 = vcmp.eq.f32.partialorder %v2660, inf
        %v2845 = vsel %vm2844, %v2660, %v2843
        %vm2846 = vcmp.eq.f32.partialorder %v2660, 0.0
        %v2847 = vand.u32 %v2660, 2147483648
        %v2848 = vsel %vm2846, %v2847, %v2845
        %v2849 = vrsqrt.pop %v2661
        %v2850 = vmul.f32 %v2661, %v2849
        %vm2851 = vcmp.eq.f32.partialorder %v2661, inf
        %v2852 = vsel %vm2851, %v2661, %v2850
        %vm2853 = vcmp.eq.f32.partialorder %v2661, 0.0
        %v2854 = vand.u32 %v2661, 2147483648
        %v2855 = vsel %vm2853, %v2854, %v2852
        %v2856 = vrsqrt.pop %v2662
        %v2857 = vmul.f32 %v2662, %v2856
        %vm2858 = vcmp.eq.f32.partialorder %v2662, inf
        %v2859 = vsel %vm2858, %v2662, %v2857
        %vm2860 = vcmp.eq.f32.partialorder %v2662, 0.0
        %v2861 = vand.u32 %v2662, 2147483648
        %v2862 = vsel %vm2860, %v2861, %v2859
        %v2863 = vrsqrt.pop %v2663
        %v2864 = vmul.f32 %v2663, %v2863
        %vm2865 = vcmp.eq.f32.partialorder %v2663, inf
        %v2866 = vsel %vm2865, %v2663, %v2864
        %vm2867 = vcmp.eq.f32.partialorder %v2663, 0.0
        %v2868 = vand.u32 %v2663, 2147483648
        %v2869 = vsel %vm2867, %v2868, %v2866
        %v2870 = vrsqrt.pop %v2664
        %v2871 = vmul.f32 %v2664, %v2870
        %vm2872 = vcmp.eq.f32.partialorder %v2664, inf
        %v2873 = vsel %vm2872, %v2664, %v2871
        %vm2874 = vcmp.eq.f32.partialorder %v2664, 0.0
        %v2875 = vand.u32 %v2664, 2147483648
        %v2876 = vsel %vm2874, %v2875, %v2873
        %v2877 = vrsqrt.pop %v2665
        %v2878 = vmul.f32 %v2665, %v2877
        %vm2879 = vcmp.eq.f32.partialorder %v2665, inf
        %v2880 = vsel %vm2879, %v2665, %v2878
        %vm2881 = vcmp.eq.f32.partialorder %v2665, 0.0
        %v2882 = vand.u32 %v2665, 2147483648
        %v2883 = vsel %vm2881, %v2882, %v2880
        %v2884 = vrsqrt.pop %v2666
        %v2885 = vmul.f32 %v2666, %v2884
        %vm2886 = vcmp.eq.f32.partialorder %v2666, inf
        %v2887 = vsel %vm2886, %v2666, %v2885
        %vm2888 = vcmp.eq.f32.partialorder %v2666, 0.0
        %v2889 = vand.u32 %v2666, 2147483648
        %v2890 = vsel %vm2888, %v2889, %v2887
        %v2891 = vmul.f32 %v2230, 0.87758255
        %v2892 = vmul.f32 %v2232, 0.87758255
        %v2893 = vmul.f32 %v2273, 0.87758255
        %v2894 = vmul.f32 %v2275, 0.87758255
        %v2895 = vmul.f32 %v2316, 0.87758255
        %v2896 = vmul.f32 %v2318, 0.87758255
        %v2897 = vmul.f32 %v2359, 0.87758255
        %v2898 = vmul.f32 %v2361, 0.87758255
        %v2899 = vmul.f32 %v2402, 0.87758255
        %v2900 = vmul.f32 %v2404, 0.87758255
        %v2901 = vmul.f32 %v2445, 0.87758255
        %v2902 = vmul.f32 %v2447, 0.87758255
        %v2903 = vmul.f32 %v2488, 0.87758255
        %v2904 = vmul.f32 %v2490, 0.87758255
        %v2905 = vmul.f32 %v2531, 0.87758255
        %v2906 = vmul.f32 %v2533, 0.87758255
        %v2907 = vmul.f32 %v2234, 0.87758255
        %v2908 = vmul.f32 %v2236, 0.87758255
        %v2909 = vmul.f32 %v2277, 0.87758255
        %v2910 = vmul.f32 %v2279, 0.87758255
        %v2911 = vmul.f32 %v2320, 0.87758255
        %v2912 = vmul.f32 %v2322, 0.87758255
        %v2913 = vmul.f32 %v2363, 0.87758255
        %v2914 = vmul.f32 %v2365, 0.87758255
        %v2915 = vmul.f32 %v2406, 0.87758255
        %v2916 = vmul.f32 %v2408, 0.87758255
        %v2917 = vmul.f32 %v2449, 0.87758255
        %v2918 = vmul.f32 %v2451, 0.87758255
        %v2919 = vmul.f32 %v2492, 0.87758255
        %v2920 = vmul.f32 %v2494, 0.87758255
        %v2921 = vmul.f32 %v2535, 0.87758255
        %v2922 = vmul.f32 %v2537, 0.87758255
        %v2923 = vmul.f32 %v2673, 0.47942555
        %v2924 = vmul.f32 %v2680, 0.47942555
        %v2925 = vmul.f32 %v2687, 0.47942555
        %v2926 = vmul.f32 %v2694, 0.47942555
        %v2927 = vmul.f32 %v2701, 0.47942555
        %v2928 = vmul.f32 %v2708, 0.47942555
        %v2929 = vmul.f32 %v2715, 0.47942555
        %v2930 = vmul.f32 %v2722, 0.47942555
        %v2931 = vmul.f32 %v2729, 0.47942555
        %v2932 = vmul.f32 %v2736, 0.47942555
        %v2933 = vmul.f32 %v2743, 0.47942555
        %v2934 = vmul.f32 %v2750, 0.47942555
        %v2935 = vmul.f32 %v2757, 0.47942555
        %v2936 = vmul.f32 %v2764, 0.47942555
        %v2937 = vmul.f32 %v2771, 0.47942555
        %v2938 = vmul.f32 %v2778, 0.47942555
        %v2939 = vmul.f32 %v2785, 0.47942555
        %v2940 = vmul.f32 %v2792, 0.47942555
        %v2941 = vmul.f32 %v2799, 0.47942555
        %v2942 = vmul.f32 %v2806, 0.47942555
        %v2943 = vmul.f32 %v2813, 0.47942555
        %v2944 = vmul.f32 %v2820, 0.47942555
        %v2945 = vmul.f32 %v2827, 0.47942555
        %v2946 = vmul.f32 %v2834, 0.47942555
        %v2947 = vmul.f32 %v2841, 0.47942555
        %v2948 = vmul.f32 %v2848, 0.47942555
        %v2949 = vmul.f32 %v2855, 0.47942555
        %v2950 = vmul.f32 %v2862, 0.47942555
        %v2951 = vmul.f32 %v2869, 0.47942555
        %v2952 = vmul.f32 %v2876, 0.47942555
        %v2953 = vmul.f32 %v2883, 0.47942555
        %v2954 = vmul.f32 %v2890, 0.47942555
        %v2955 = vsub.f32 %v2891, %v2923
        %v2956 = vsub.f32 %v2892, %v2924
        %v2957 = vsub.f32 %v2893, %v2925
        %v2958 = vsub.f32 %v2894, %v2926
        %v2959 = vsub.f32 %v2895, %v2927
        %v2960 = vsub.f32 %v2896, %v2928
        %v2961 = vsub.f32 %v2897, %v2929
        %v2962 = vsub.f32 %v2898, %v2930
        %v2963 = vsub.f32 %v2899, %v2931
        %v2964 = vsub.f32 %v2900, %v2932
        %v2965 = vsub.f32 %v2901, %v2933
        %v2966 = vsub.f32 %v2902, %v2934
        %v2967 = vsub.f32 %v2903, %v2935
        %v2968 = vsub.f32 %v2904, %v2936
        %v2969 = vsub.f32 %v2905, %v2937
        %v2970 = vsub.f32 %v2906, %v2938
        %v2971 = vsub.f32 %v2907, %v2939
        %v2972 = vsub.f32 %v2908, %v2940
        %v2973 = vsub.f32 %v2909, %v2941
        %v2974 = vsub.f32 %v2910, %v2942
        %v2975 = vsub.f32 %v2911, %v2943
        %v2976 = vsub.f32 %v2912, %v2944
        %v2977 = vsub.f32 %v2913, %v2945
        %v2978 = vsub.f32 %v2914, %v2946
        %v2979 = vsub.f32 %v2915, %v2947
        %v2980 = vsub.f32 %v2916, %v2948
        %v2981 = vsub.f32 %v2917, %v2949
        %v2982 = vsub.f32 %v2918, %v2950
        %v2983 = vsub.f32 %v2919, %v2951
        %v2984 = vsub.f32 %v2920, %v2952
        %v2985 = vsub.f32 %v2921, %v2953
        %v2986 = vsub.f32 %v2922, %v2954
        %vm2987 = vcmp.gt.f32.partialorder %v2230, -0.87758255
        %vm2988 = vcmp.gt.f32.partialorder %v2232, -0.87758255
        %vm2989 = vcmp.gt.f32.partialorder %v2273, -0.87758255
        %vm2990 = vcmp.gt.f32.partialorder %v2275, -0.87758255
        %vm2991 = vcmp.gt.f32.partialorder %v2316, -0.87758255
        %vm2992 = vcmp.gt.f32.partialorder %v2318, -0.87758255
        %vm2993 = vcmp.gt.f32.partialorder %v2359, -0.87758255
        %vm2994 = vcmp.gt.f32.partialorder %v2361, -0.87758255
        %vm2995 = vcmp.gt.f32.partialorder %v2402, -0.87758255
        %vm2996 = vcmp.gt.f32.partialorder %v2404, -0.87758255
        %vm2997 = vcmp.gt.f32.partialorder %v2445, -0.87758255
        %vm2998 = vcmp.gt.f32.partialorder %v2447, -0.87758255
        %vm2999 = vcmp.gt.f32.partialorder %v2488, -0.87758255
        %vm3000 = vcmp.gt.f32.partialorder %v2490, -0.87758255
        %vm3001 = vcmp.gt.f32.partialorder %v2531, -0.87758255
        %vm3002 = vcmp.gt.f32.partialorder %v2533, -0.87758255
        %vm3003 = vcmp.gt.f32.partialorder %v2234, -0.87758255
        %vm3004 = vcmp.gt.f32.partialorder %v2236, -0.87758255
        %vm3005 = vcmp.gt.f32.partialorder %v2277, -0.87758255
        %vm3006 = vcmp.gt.f32.partialorder %v2279, -0.87758255
        %vm3007 = vcmp.gt.f32.partialorder %v2320, -0.87758255
        %vm3008 = vcmp.gt.f32.partialorder %v2322, -0.87758255
        %vm3009 = vcmp.gt.f32.partialorder %v2363, -0.87758255
        %vm3010 = vcmp.gt.f32.partialorder %v2365, -0.87758255
        %vm3011 = vcmp.gt.f32.partialorder %v2406, -0.87758255
        %vm3012 = vcmp.gt.f32.partialorder %v2408, -0.87758255
        %vm3013 = vcmp.gt.f32.partialorder %v2449, -0.87758255
        %vm3014 = vcmp.gt.f32.partialorder %v2451, -0.87758255
        %vm3015 = vcmp.gt.f32.partialorder %v2492, -0.87758255
        %vm3016 = vcmp.gt.f32.partialorder %v2494, -0.87758255
        %vm3017 = vcmp.gt.f32.partialorder %v2535, -0.87758255
        %vm3018 = vcmp.gt.f32.partialorder %v2537, -0.87758255
        %v3019 = vsub.f32 %v2230, 0.23971277
        %v3020 = vsub.f32 %v2232, 0.23971277
        %v3021 = vsub.f32 %v2273, 0.23971277
        %v3022 = vsub.f32 %v2275, 0.23971277
        %v3023 = vsub.f32 %v2316, 0.23971277
        %v3024 = vsub.f32 %v2318, 0.23971277
        %v3025 = vsub.f32 %v2359, 0.23971277
        %v3026 = vsub.f32 %v2361, 0.23971277
        %v3027 = vsub.f32 %v2402, 0.23971277
        %v3028 = vsub.f32 %v2404, 0.23971277
        %v3029 = vsub.f32 %v2445, 0.23971277
        %v3030 = vsub.f32 %v2447, 0.23971277
        %v3031 = vsub.f32 %v2488, 0.23971277
        %v3032 = vsub.f32 %v2490, 0.23971277
        %v3033 = vsub.f32 %v2531, 0.23971277
        %v3034 = vsub.f32 %v2533, 0.23971277
        %v3035 = vsub.f32 %v2234, 0.23971277
        %v3036 = vsub.f32 %v2236, 0.23971277
        %v3037 = vsub.f32 %v2277, 0.23971277
        %v3038 = vsub.f32 %v2279, 0.23971277
        %v3039 = vsub.f32 %v2320, 0.23971277
        %v3040 = vsub.f32 %v2322, 0.23971277
        %v3041 = vsub.f32 %v2363, 0.23971277
        %v3042 = vsub.f32 %v2365, 0.23971277
        %v3043 = vsub.f32 %v2406, 0.23971277
        %v3044 = vsub.f32 %v2408, 0.23971277
        %v3045 = vsub.f32 %v2449, 0.23971277
        %v3046 = vsub.f32 %v2451, 0.23971277
        %v3047 = vsub.f32 %v2492, 0.23971277
        %v3048 = vsub.f32 %v2494, 0.23971277
        %v3049 = vsub.f32 %v2535, 0.23971277
        %v3050 = vsub.f32 %v2537, 0.23971277
        %v3051 = vsel %vm2987, %v2955, %v3019
        %v3052 = vsel %vm2988, %v2956, %v3020
        %v3053 = vsel %vm2989, %v2957, %v3021
        %v3054 = vsel %vm2990, %v2958, %v3022
        %v3055 = vsel %vm2991, %v2959, %v3023
        %v3056 = vsel %vm2992, %v2960, %v3024
        %v3057 = vsel %vm2993, %v2961, %v3025
        %v3058 = vsel %vm2994, %v2962, %v3026
        %v3059 = vsel %vm2995, %v2963, %v3027
        %v3060 = vsel %vm2996, %v2964, %v3028
        %v3061 = vsel %vm2997, %v2965, %v3029
        %v3062 = vsel %vm2998, %v2966, %v3030
        %v3063 = vsel %vm2999, %v2967, %v3031
        %v3064 = vsel %vm3000, %v2968, %v3032
        %v3065 = vsel %vm3001, %v2969, %v3033
        %v3066 = vsel %vm3002, %v2970, %v3034
        %v3067 = vsel %vm3003, %v2971, %v3035
        %v3068 = vsel %vm3004, %v2972, %v3036
        %v3069 = vsel %vm3005, %v2973, %v3037
        %v3070 = vsel %vm3006, %v2974, %v3038
        %v3071 = vsel %vm3007, %v2975, %v3039
        %v3072 = vsel %vm3008, %v2976, %v3040
        %v3073 = vsel %vm3009, %v2977, %v3041
        %v3074 = vsel %vm3010, %v2978, %v3042
        %v3075 = vsel %vm3011, %v2979, %v3043
        %v3076 = vsel %vm3012, %v2980, %v3044
        %v3077 = vsel %vm3013, %v2981, %v3045
        %v3078 = vsel %vm3014, %v2982, %v3046
        %v3079 = vsel %vm3015, %v2983, %v3047
        %v3080 = vsel %vm3016, %v2984, %v3048
        %v3081 = vsel %vm3017, %v2985, %v3049
        %v3082 = vsel %vm3018, %v2986, %v3050
        %v3083 = vlaneseq
        %v3084 = vand.u32 %v3083, 127
        %v3085 = vadd.s32 %v3084, 128
        %v3086 = vadd.s32 %v3084, 256
        %v3087 = vadd.s32 %v3084, 384
        %v3088 = vadd.s32 %v3084, 512
        %v3089 = vadd.s32 %v3084, 640
        %v3090 = vadd.s32 %v3084, 768
        %v3091 = vadd.s32 %v3084, 896
        %v3092 = vadd.s32 %v3084, 1024
        %v3093 = vadd.s32 %v3084, 1152
        %v3094 = vadd.s32 %v3084, 1280
        %v3095 = vadd.s32 %v3084, 1408
        %v3096 = vadd.s32 %v3084, 1536
        %v3097 = vadd.s32 %v3084, 1664
        %v3098 = vadd.s32 %v3084, 1792
        %v3099 = vadd.s32 %v3084, 1920
        %s3100 = smul.u32 %s26, 2048
        %v3101 = vstv %s3100
        %v3102 = vadd.s32 %v3084, %v3101
        %v3103 = vadd.s32 %v3085, %v3101
        %v3104 = vadd.s32 %v3086, %v3101
        %v3105 = vadd.s32 %v3087, %v3101
        %v3106 = vadd.s32 %v3088, %v3101
        %v3107 = vadd.s32 %v3089, %v3101
        %v3108 = vadd.s32 %v3090, %v3101
        %v3109 = vadd.s32 %v3091, %v3101
        %v3110 = vadd.s32 %v3092, %v3101
        %v3111 = vadd.s32 %v3093, %v3101
        %v3112 = vadd.s32 %v3094, %v3101
        %v3113 = vadd.s32 %v3095, %v3101
        %v3114 = vadd.s32 %v3096, %v3101
        %v3115 = vadd.s32 %v3097, %v3101
        %v3116 = vadd.s32 %v3098, %v3101
        %v3117 = vadd.s32 %v3099, %v3101
        %v3118 = vld [vmem:[%s258] sm:$0xff]
        %v3119 = vld [vmem:[%s258 + $0x8] sm:$0xff]
        %3120 = vset.pattern.permute.xlu0 0
        %3121 = vperm.xlu0 %3120, %v3118
        %v3122 = vpop.permute.xlu0 %3121
        %3123 = vset.pattern.permute.xlu0 0
        %3124 = vperm.xlu0 %3123, %v3119
        %v3125 = vpop.permute.xlu0 %3124
        %vm3126 = vcmp.eq.s32.totalorder %v3102, %v3122
        %vm3127 = vcmp.eq.s32.totalorder %v3103, %v3122
        %vm3128 = vcmp.eq.s32.totalorder %v3104, %v3122
        %vm3129 = vcmp.eq.s32.totalorder %v3105, %v3122
        %vm3130 = vcmp.eq.s32.totalorder %v3106, %v3122
        %vm3131 = vcmp.eq.s32.totalorder %v3107, %v3122
        %vm3132 = vcmp.eq.s32.totalorder %v3108, %v3122
        %vm3133 = vcmp.eq.s32.totalorder %v3109, %v3122
        %vm3134 = vcmp.eq.s32.totalorder %v3110, %v3122
        %vm3135 = vcmp.eq.s32.totalorder %v3111, %v3122
        %vm3136 = vcmp.eq.s32.totalorder %v3112, %v3122
        %vm3137 = vcmp.eq.s32.totalorder %v3113, %v3122
        %vm3138 = vcmp.eq.s32.totalorder %v3114, %v3122
        %vm3139 = vcmp.eq.s32.totalorder %v3115, %v3122
        %vm3140 = vcmp.eq.s32.totalorder %v3116, %v3122
        %vm3141 = vcmp.eq.s32.totalorder %v3117, %v3122
        %vm3142 = vcmp.eq.s32.totalorder %v3102, %v3125
        %vm3143 = vcmp.eq.s32.totalorder %v3103, %v3125
        %vm3144 = vcmp.eq.s32.totalorder %v3104, %v3125
        %vm3145 = vcmp.eq.s32.totalorder %v3105, %v3125
        %vm3146 = vcmp.eq.s32.totalorder %v3106, %v3125
        %vm3147 = vcmp.eq.s32.totalorder %v3107, %v3125
        %vm3148 = vcmp.eq.s32.totalorder %v3108, %v3125
        %vm3149 = vcmp.eq.s32.totalorder %v3109, %v3125
        %vm3150 = vcmp.eq.s32.totalorder %v3110, %v3125
        %vm3151 = vcmp.eq.s32.totalorder %v3111, %v3125
        %vm3152 = vcmp.eq.s32.totalorder %v3112, %v3125
        %vm3153 = vcmp.eq.s32.totalorder %v3113, %v3125
        %vm3154 = vcmp.eq.s32.totalorder %v3114, %v3125
        %vm3155 = vcmp.eq.s32.totalorder %v3115, %v3125
        %vm3156 = vcmp.eq.s32.totalorder %v3116, %v3125
        %vm3157 = vcmp.eq.s32.totalorder %v3117, %v3125
        %v3158 = vsel %vm3126, %v3051, %v2230
        %v3159 = vsel %vm3127, %v3052, %v2232
        %v3160 = vsel %vm3128, %v3053, %v2273
        %v3161 = vsel %vm3129, %v3054, %v2275
        %v3162 = vsel %vm3130, %v3055, %v2316
        %v3163 = vsel %vm3131, %v3056, %v2318
        %v3164 = vsel %vm3132, %v3057, %v2359
        %v3165 = vsel %vm3133, %v3058, %v2361
        %v3166 = vsel %vm3134, %v3059, %v2402
        %v3167 = vsel %vm3135, %v3060, %v2404
        %v3168 = vsel %vm3136, %v3061, %v2445
        %v3169 = vsel %vm3137, %v3062, %v2447
        %v3170 = vsel %vm3138, %v3063, %v2488
        %v3171 = vsel %vm3139, %v3064, %v2490
        %v3172 = vsel %vm3140, %v3065, %v2531
        %v3173 = vsel %vm3141, %v3066, %v2533
        %v3174 = vsel %vm3142, %v3067, %v2234
        %v3175 = vsel %vm3143, %v3068, %v2236
        %v3176 = vsel %vm3144, %v3069, %v2277
        %v3177 = vsel %vm3145, %v3070, %v2279
        %v3178 = vsel %vm3146, %v3071, %v2320
        %v3179 = vsel %vm3147, %v3072, %v2322
        %v3180 = vsel %vm3148, %v3073, %v2363
        %v3181 = vsel %vm3149, %v3074, %v2365
        %v3182 = vsel %vm3150, %v3075, %v2406
        %v3183 = vsel %vm3151, %v3076, %v2408
        %v3184 = vsel %vm3152, %v3077, %v2449
        %v3185 = vsel %vm3153, %v3078, %v2451
        %v3186 = vsel %vm3154, %v3079, %v2492
        %v3187 = vsel %vm3155, %v3080, %v2494
        %v3188 = vsel %vm3156, %v3081, %v2535
        %v3189 = vsel %vm3157, %v3082, %v2537
        %v3190 = vmul.f32 %v3158, 64.0
        %v3191 = vmul.f32 %v3159, 64.0
        %v3192 = vmul.f32 %v3160, 64.0
        %v3193 = vmul.f32 %v3161, 64.0
        %v3194 = vmul.f32 %v3162, 64.0
        %v3195 = vmul.f32 %v3163, 64.0
        %v3196 = vmul.f32 %v3164, 64.0
        %v3197 = vmul.f32 %v3165, 64.0
        %v3198 = vmul.f32 %v3166, 64.0
        %v3199 = vmul.f32 %v3167, 64.0
        %v3200 = vmul.f32 %v3168, 64.0
        %v3201 = vmul.f32 %v3169, 64.0
        %v3202 = vmul.f32 %v3170, 64.0
        %v3203 = vmul.f32 %v3171, 64.0
        %v3204 = vmul.f32 %v3172, 64.0
        %v3205 = vmul.f32 %v3173, 64.0
        %v3206 = vmul.f32 %v3174, 64.0
        %v3207 = vmul.f32 %v3175, 64.0
        %v3208 = vmul.f32 %v3176, 64.0
        %v3209 = vmul.f32 %v3177, 64.0
        %v3210 = vmul.f32 %v3178, 64.0
        %v3211 = vmul.f32 %v3179, 64.0
        %v3212 = vmul.f32 %v3180, 64.0
        %v3213 = vmul.f32 %v3181, 64.0
        %v3214 = vmul.f32 %v3182, 64.0
        %v3215 = vmul.f32 %v3183, 64.0
        %v3216 = vmul.f32 %v3184, 64.0
        %v3217 = vmul.f32 %v3185, 64.0
        %v3218 = vmul.f32 %v3186, 64.0
        %v3219 = vmul.f32 %v3187, 64.0
        %v3220 = vmul.f32 %v3188, 64.0
        %v3221 = vmul.f32 %v3189, 64.0
        %3222 = vst [vmem:[%s247] sm:$0xff] %v3190
        %3223 = vst [vmem:[%s247 + $0x8] sm:$0xff] %v3191
        %3224 = vst [vmem:[%s247 + $0x10] sm:$0xff] %v3192
        %3225 = vst [vmem:[%s247 + $0x18] sm:$0xff] %v3193
        %3226 = vst [vmem:[%s247 + $0x20] sm:$0xff] %v3194
        %3227 = vst [vmem:[%s247 + $0x28] sm:$0xff] %v3195
        %3228 = vst [vmem:[%s247 + $0x30] sm:$0xff] %v3196
        %3229 = vst [vmem:[%s247 + $0x38] sm:$0xff] %v3197
        %3230 = vst [vmem:[%s247 + $0x40] sm:$0xff] %v3198
        %3231 = vst [vmem:[%s247 + $0x48] sm:$0xff] %v3199
        %3232 = vst [vmem:[%s247 + $0x50] sm:$0xff] %v3200
        %3233 = vst [vmem:[%s247 + $0x58] sm:$0xff] %v3201
        %3234 = vst [vmem:[%s247 + $0x60] sm:$0xff] %v3202
        %3235 = vst [vmem:[%s247 + $0x68] sm:$0xff] %v3203
        %3236 = vst [vmem:[%s247 + $0x70] sm:$0xff] %v3204
        %3237 = vst [vmem:[%s247 + $0x78] sm:$0xff] %v3205
        %3238 = vst [vmem:[%s247 + $0x80] sm:$0xff] %v3206
        %3239 = vst [vmem:[%s247 + $0x88] sm:$0xff] %v3207
        %3240 = vst [vmem:[%s247 + $0x90] sm:$0xff] %v3208
        %3241 = vst [vmem:[%s247 + $0x98] sm:$0xff] %v3209
        %3242 = vst [vmem:[%s247 + $0xa0] sm:$0xff] %v3210
        %3243 = vst [vmem:[%s247 + $0xa8] sm:$0xff] %v3211
        %3244 = vst [vmem:[%s247 + $0xb0] sm:$0xff] %v3212
        %3245 = vst [vmem:[%s247 + $0xb8] sm:$0xff] %v3213
        %3246 = vst [vmem:[%s247 + $0xc0] sm:$0xff] %v3214
        %3247 = vst [vmem:[%s247 + $0xc8] sm:$0xff] %v3215
        %3248 = vst [vmem:[%s247 + $0xd0] sm:$0xff] %v3216
        %3249 = vst [vmem:[%s247 + $0xd8] sm:$0xff] %v3217
        %3250 = vst [vmem:[%s247 + $0xe0] sm:$0xff] %v3218
        %3251 = vst [vmem:[%s247 + $0xe8] sm:$0xff] %v3219
        %3252 = vst [vmem:[%s247 + $0xf0] sm:$0xff] %v3220
        %3253 = vst [vmem:[%s247 + $0xf8] sm:$0xff] %v3221
        %s3254 = sand.u32 %s121, 1
        %s3255 = scalar_lea.sflag [#allocation4], %s3254
        %s3256 = sand.u32 %s121, 1
        %s3257 = smul.addr %s3256, 256
        %s3258 = scalar_lea.vmem [#allocation7], %s3257
        // Predicated region
        $region41: #{tpu_custom_call.1} parent=31 // pred_check
          %p3259 = pneg %p131
        $region42: #{tpu_custom_call.1} parent=31 // pred_check_branch
          %3261 = sbr.rel (%p3259) target = $region44
        $region43: #{tpu_custom_call.1} parent=31 // pred_region
          %s3262 = smul.u32 2, %s25
          %s3263 = smul.u32 16, %s26
          %s3264 = ssub.s32 83, %s3263
          %p3265 = scmp.lt.s32.totalorder %s3264, 16
          %s3266 = scalar_select %p3265, %s3264, 16
          %s3267 = smul.u32 256, %s3266
          %s3269 = ssub.s32 4096, %s3267
          %3270 = vsyncadd %s3255, %s3269
          %p3271 = scmp.ne.s32.totalorder 0, %s3267
          %s3272 = smul.addr %s3262, 83
          %s3273 = sadd.s32 %s3263, %s3272
          %s3274 = smul.addr %s3273, 128
          %s3275 = scalar_lea.hbm %s3, %s3274
          %s3276 = smul.u32 %s3266, 8
          %s3277 = smul.u32 %s3276, 2
          %s3278 = sshll.u32 %s3258, 4
          %s3279 = int_to_ptr.vmem [resolvable:$true] %s3278
          %s3280 = sshll.u32 %s3277, 4
          %3284 = dma.vmem_to_hbm [thread:$0]  (%p3271), %s3279, %s3280, %s3275, %s3255, 2048, 10624, %s3276
        $region44: #{tpu_custom_call.1} parent=31 // pred_fallthru
          _
      $region32: #{tpu_custom_call.1} parent=5 // pred_fallthru
        _
      %p3285 = scmp.le.s32.totalorder 2, %s16
      // Predicated region
      $region45: #{tpu_custom_call.1} parent=5 // pred_check
        %p3286 = pneg %p3285
      $region46: #{tpu_custom_call.1} parent=5 // pred_check_branch
        %3288 = sbr.rel (%p3286) target = $region48
      $region47: #{tpu_custom_call.1} parent=5 // pred_region
        %s3289 = ssub.s32 %s16, 2
        // Predicated region
        $region49: #{tpu_custom_call.1} parent=47 // pred_check
          %p3290 = pneg %p137
        $region50: #{tpu_custom_call.1} parent=47 // pred_check_branch
          %3292 = sbr.rel (%p3290) target = $region52
        $region51: #{tpu_custom_call.1} parent=47 // pred_region
          %s3293 = sand.u32 %s122, 1
          %s3294 = scalar_lea.sflag [#allocation4], %s3293
          %s3295 = sand.u32 %s122, 1
          %s3296 = smul.addr %s3295, 256
          %s3297 = scalar_lea.vmem [#allocation7], %s3296
          %3298 = dma.done %s3294, 4096
        $region52: #{tpu_custom_call.1} parent=47 // pred_fallthru
          _
      $region48: #{tpu_custom_call.1} parent=5 // pred_fallthru
        _
    $region6: #{tpu_custom_call.1} parent=1 // loop_footer
      %s20 = sadd.s32 1, %s16
    $region7: #{tpu_custom_call.1} parent=1 // loop_footer_branch
      %15 = sbr.rel target = $region3
    $region8: #{tpu_custom_call.1} parent=1 // loop_exit
      _
    %3299 = vsyncpa [#allocation3], 1
    %s3300 = scalar_lea.sflag [#allocation3], 1
    %3301 = vsyncpa %s3300, 1
    %3302 = vsyncpa [#allocation6], 1
    %s3303 = scalar_lea.sflag [#allocation6], 1
    %3304 = vsyncpa %s3303, 1
    %3305 = vsyncpa [#allocation4], 1
    %s3306 = scalar_lea.sflag [#allocation4], 1
    %3307 = vsyncpa %s3306, 1

</llo_original>
